<compile_context>
chip_gen: v6e
topology: v6e:2x2x1
jax: 0.10.0
libtpu: 0.0.40
codegen_flags: <defaults>
</compile_context>

<pallas_src>
import functools

import numpy as np

import jax
import jax.numpy as jnp
from jax.experimental import pallas as pl
from jax.experimental.pallas import tpu as pltpu


# ---------------------------------------------------------------------------
# In-kernel helpers (traced inline into the single encoder kernel)
# ---------------------------------------------------------------------------
def _conv3x3_bn_relu(act, wcat, bias, mask_top, mask_bot):
    """3x3 'same' conv + folded eval-mode BN + ReLU on a (rows, W*Cin) slab.

    wcat: (W*Cin, 3*W*Cout) bf16 banded weights [kh=0 | kh=1 | kh=2] with the
          horizontal taps, horizontal zero padding and the BN scale folded in.
    bias: (1, W*Cout) f32 folded conv+BN bias.
    mask_top/mask_bot: (rows, 1) f32 per-image vertical zero-padding masks
          (0.0 on each image's top / bottom row respectively).
    """
    h = act.shape[0]
    n = wcat.shape[1] // 3
    # One MXU pass produces all three horizontal-tap partial sums.
    p = jnp.dot(act.astype(wcat.dtype), wcat,
                preferred_element_type=jnp.float32)            # (rows, 3n) f32
    p0, p1, p2 = p[:, :n], p[:, n:2 * n], p[:, 2 * n:]         # 128-lane aligned
    # Vertical taps via XLU sublane rotations (np.roll convention):
    up = pltpu.roll(p0, shift=1, axis=0)                       # up[i] = p0[i-1]
    dn = pltpu.roll(p2, shift=h - 1, axis=0)                   # dn[i] = p2[i+1]
    y = mask_top * up + p1 + mask_bot * dn + bias              # f32 VPU epilogue
    return jnp.maximum(y, 0.0)                                 # ReLU


def _maxpool2x2(act, sel_even, chan, scratch):
    """2x2 / stride-2 max pool on a (rows, W*chan) slab (per-image rows even).

    H direction: sublane roll + max, keep even rows via a strided VMEM read.
    W direction: lane roll by `chan` + max, then one 0/1 bf16 lane-compaction
    matmul (sel_even) keeps lanes 2*wo*chan + c.
    """
    h, n = act.shape
    rmax = jnp.maximum(act, pltpu.roll(act, shift=h - 1, axis=0))  # max(a[i], a[i+1])
    scratch[pl.ds(0, h), :] = rmax
    rows = scratch[pl.ds(0, h // 2, stride=2), :]                  # even rows (h/2, n)
    wmax = jnp.maximum(rows, pltpu.roll(rows, shift=n - chan, axis=1))
    return jnp.dot(wmax.astype(sel_even.dtype), sel_even,
                   preferred_element_type=jnp.float32)             # (h/2, n/2)


def _make_encoder_kernel(pool_channels):
    """pool_channels: static (n1, n2, n3) channel counts at the three pools."""

    def kernel(*refs):
        x_ref = refs[0]                  # (1, B*H0, W0)   Cin = 1
        conv_refs = refs[1:17]           # 8 x (wcat, bias_row)
        mask_refs = refs[17:25]          # 4 x (mask_top, mask_bot)
        sel_refs = refs[25:28]           # 3 x sel_even
        o_ref = refs[28]                 # (1, B*Hf, Wf*Cf)
        pool_scratch = refs[29]          # (B*H0, 128) f32 VMEM scratch

        act = x_ref[0]                   # (B*H0, W0) f32, Cin = 1
        for li in range(8):
            wcat = conv_refs[2 * li][...]
            bias = conv_refs[2 * li + 1][...]
            stage = li // 2
            m_top = mask_refs[2 * stage][...]
            m_bot = mask_refs[2 * stage + 1][...]
            act = _conv3x3_bn_relu(act, wcat, bias, m_top, m_bot)
            if li in (1, 3, 5):          # pool1 / pool2 / pool3
                p = li // 2
                act = _maxpool2x2(act, sel_refs[p][...], pool_channels[p],
                                  pool_scratch)
        o_ref[0] = act                   # lane-dense (B*Hf, 128) f32 store

    return kernel


# ---------------------------------------------------------------------------
# Pallas wrapper
# ---------------------------------------------------------------------------
def _encoder_pallas(x_slab, conv_params, mask_params, sel_mats, pool_channels):
    g, slab_h0, w0 = x_slab.shape        # (N//B, B*H, W)
    slab_hf = slab_h0 // 8
    lanes_f = conv_params[-1][0].shape[1] // 3     # = Wf * Cf (= 128 here)

    inputs = [x_slab]
    in_specs = [pl.BlockSpec((1, slab_h0, w0), lambda b: (b, 0, 0))]
    for wcat, bias_row in conv_params:
        inputs += [wcat, bias_row]
        in_specs += [pl.BlockSpec(wcat.shape, lambda b: (0, 0)),
                     pl.BlockSpec(bias_row.shape, lambda b: (0, 0))]
    for m_top, m_bot in mask_params:
        inputs += [m_top, m_bot]
        in_specs += [pl.BlockSpec(m_top.shape, lambda b: (0, 0)),
                     pl.BlockSpec(m_bot.shape, lambda b: (0, 0))]
    for sel in sel_mats:
        inputs.append(sel)
        in_specs.append(pl.BlockSpec(sel.shape, lambda b: (0, 0)))

    return pl.pallas_call(
        _make_encoder_kernel(tuple(pool_channels)),
        out_shape=jax.ShapeDtypeStruct((g, slab_hf, lanes_f), jnp.float32),
        grid_spec=pltpu.PrefetchScalarGridSpec(
            num_scalar_prefetch=0,
            grid=(g,),                               # one image-group per step
            in_specs=in_specs,
            out_specs=pl.BlockSpec((1, slab_hf, lanes_f), lambda b: (b, 0, 0)),
            scratch_shapes=[pltpu.VMEM((slab_h0, 128), jnp.float32)],
        ),
        compiler_params=pltpu.CompilerParams(
            dimension_semantics=("parallel",)),      # >1 step -> both v7x TCs
    )(*inputs)


def encoder_forward(conv_params, mask_params, sel_mats, pool_channels, b_tile,
                    x_nchw):
    n, cin, hin, win = x_nchw.shape
    assert cin == 1 and n % b_tile == 0
    assert hin % 8 == 0 and win % 8 == 0
    # Keep every stage's slab row count a multiple of 8 sublanes.
    assert (b_tile * hin) % 64 == 0, "pick B_TILE so B_TILE*H is a multiple of 64"
    x_slab = x_nchw.reshape(n // b_tile, b_tile * hin, win)
    out = _encoder_pallas(x_slab, conv_params, mask_params, sel_mats,
                          pool_channels)             # (N//B, B*Hf, Wf*Cf)
    hf, wf = hin // 8, win // 8
    cf = out.shape[-1] // wf
    out = out.reshape(n, hf, wf, cf)                 # NHWC (lane index = w*Cf+c)
    return jnp.transpose(out, (0, 3, 1, 2))          # -> NCHW


# ---------------------------------------------------------------------------
# Parameter construction (Conv2d + eval-mode BatchNorm2d folded together)
# ---------------------------------------------------------------------------
def init_conv_bn(key, cin, cout, width):
    k1, k2, k3, k4, k5, k6 = jax.random.split(key, 6)
    fan_in = cin * 9
    w = jax.random.normal(k1, (cout, cin, 3, 3), jnp.float32) / jnp.sqrt(fan_in)
    conv_b = 0.1 * jax.random.normal(k2, (cout,), jnp.float32)
    gamma = 1.0 + 0.1 * jax.random.normal(k3, (cout,), jnp.float32)
    beta = 0.1 * jax.random.normal(k4, (cout,), jnp.float32)
    run_mean = 0.1 * jax.random.normal(k5, (cout,), jnp.float32)
    run_var = 1.0 + 0.1 * jax.random.uniform(k6, (cout,), jnp.float32)
    eps = 1e-5
    scale = gamma / jnp.sqrt(run_var + eps)          # BN with running stats
    bias = (conv_b - run_mean) * scale + beta

    # Banded matrices M[kh]: (W*Cin, W*Cout) with
    #   M[kh][(wo+kw-1)*Cin + ci, wo*Cout + co] = w[co, ci, kh, kw]
    # out-of-range wo+kw-1 rows omitted == zero padding along W.
    w_np, scale_np, bias_np = np.asarray(w), np.asarray(scale), np.asarray(bias)
    mats = np.zeros((3, width * cin, width * cout), np.float32)
    for kh in range(3):
        for kw in range(3):
            blk = w_np[:, :, kh, kw].T               # (cin, cout)
            for wo in range(width):
                wi = wo + kw - 1
                if 0 <= wi < width:
                    mats[kh, wi * cin:(wi + 1) * cin,
                         wo * cout:(wo + 1) * cout] = blk
    # Fold eval-mode BN scale into the weight columns (col j = wo*cout + co).
    mats *= np.tile(scale_np, width)[None, None, :]
    wcat = jnp.asarray(np.concatenate([mats[0], mats[1], mats[2]],
                                      axis=1)).astype(jnp.bfloat16)
    bias_row = jnp.asarray(np.tile(bias_np, width))[None, :]       # f32
    raw = (w, scale, bias)                 # for the pure-JAX reference
    kern = (wcat, bias_row)                # for the Pallas kernel
    return raw, kern


def build_boundary_masks(b_tile, h_img):
    """(B*H, 1) f32 masks: 0 on each image's top (resp. bottom) row, else 1."""
    rows = np.arange(b_tile * h_img) % h_img
    m_top = (rows != 0).astype(np.float32)[:, None]
    m_bot = (rows != h_img - 1).astype(np.float32)[:, None]
    return jnp.asarray(m_top), jnp.asarray(m_bot)


def build_pool_select(width, ch):
    """0/1 lane-compaction matrix: keep lanes (2*wo)*ch + c -> wo*ch + c."""
    se = np.zeros((width * ch, (width // 2) * ch), np.float32)
    for wo in range(width // 2):
        for c in range(ch):
            se[(2 * wo) * ch + c, wo * ch + c] = 1.0
    return jnp.asarray(se).astype(jnp.bfloat16)


# ---------------------------------------------------------------------------
# Pure-JAX reference (XLA conv) for a correctness cross-check
# ---------------------------------------------------------------------------
def reference_forward(raw_params, x_nchw):
    x = x_nchw
    li = 0
    for block in range(4):
        for _ in range(2):
            w, scale, bias = raw_params[li]
            li += 1
            y = jax.lax.conv_general_dilated(
                x, w, window_strides=(1, 1), padding=((1, 1), (1, 1)),
                dimension_numbers=("NCHW", "OIHW", "NCHW"))
            y = y * scale[None, :, None, None] + bias[None, :, None, None]
            x = jnp.maximum(y, 0.0)
        if block < 3:
            x = jax.lax.reduce_window(x, -jnp.inf, jax.lax.max,
                                      (1, 1, 2, 2), (1, 1, 2, 2), "VALID")
    return x


if __name__ == "__main__":
    n0 = 4
    n1, n2, n3, n4 = n0, 2 * n0, 4 * n0, 8 * n0
    N, H, W = 2, 32, 32
    B_TILE = 2            # stack both images along sublanes (M >= 8 everywhere)
    assert W * n0 == 128  # lane-dense invariant: W*C == 128 after every conv

    key = jax.random.PRNGKey(0)
    key, xk = jax.random.split(key)
    x = jax.random.normal(xk, (N, 1, H, W), jnp.float32)     # NCHW like PyTorch

    chans = [1, n1, n1, n2, n2, n3, n3, n4, n4]
    widths = [W, W, W // 2, W // 2, W // 4, W // 4, W // 8, W // 8]
    raw_params, conv_params = [], []
    for i in range(8):
        key, sub = jax.random.split(key)
        raw, kern = init_conv_bn(sub, chans[i], chans[i + 1], widths[i])
        raw_params.append(raw)
        conv_params.append(kern)
    mask_params = [build_boundary_masks(B_TILE, H >> s) for s in range(4)]
    sel_mats = [build_pool_select(W, n1),
                build_pool_select(W // 2, n2),
                build_pool_select(W // 4, n3)]
    pool_channels = (n1, n2, n3)

    fwd = jax.jit(functools.partial(
        encoder_forward, conv_params, mask_params, sel_mats, pool_channels,
        B_TILE))
    out = jax.block_until_ready(fwd(x))
    assert out.shape == (N, n4, H // 8, W // 8), out.shape
    assert bool(jnp.all(jnp.isfinite(out)))

    # Cross-check vs the f32 XLA reference.  Matmul inputs are bf16 (per perf
    # review), so the gap vs the pure-f32 reference is a few 1e-2 at most --
    # documented here rather than silently relied upon.
    ref = jax.block_until_ready(
        jax.jit(functools.partial(reference_forward, raw_params))(x))
    max_err = float(jnp.max(jnp.abs(out - ref)))
    ref_max = float(jnp.max(jnp.abs(ref)))
    assert max_err <= 7.5e-2 * max(1.0, ref_max), (max_err, ref_max)

    print("KERNEL_OK")
</pallas_src>

<mosaic_0001>
module attributes {stable_mosaic.version = 11 : i64} {
  func.func @kernel(%arg0: i32, %arg1: memref<1x64x32xf32, #tpu.memory_space<vmem>>, %arg2: memref<32x384xbf16, #tpu.memory_space<vmem>>, %arg3: memref<1x128xf32, #tpu.memory_space<vmem>>, %arg4: memref<128x384xbf16, #tpu.memory_space<vmem>>, %arg5: memref<1x128xf32, #tpu.memory_space<vmem>>, %arg6: memref<64x384xbf16, #tpu.memory_space<vmem>>, %arg7: memref<1x128xf32, #tpu.memory_space<vmem>>, %arg8: memref<128x384xbf16, #tpu.memory_space<vmem>>, %arg9: memref<1x128xf32, #tpu.memory_space<vmem>>, %arg10: memref<64x384xbf16, #tpu.memory_space<vmem>>, %arg11: memref<1x128xf32, #tpu.memory_space<vmem>>, %arg12: memref<128x384xbf16, #tpu.memory_space<vmem>>, %arg13: memref<1x128xf32, #tpu.memory_space<vmem>>, %arg14: memref<64x384xbf16, #tpu.memory_space<vmem>>, %arg15: memref<1x128xf32, #tpu.memory_space<vmem>>, %arg16: memref<128x384xbf16, #tpu.memory_space<vmem>>, %arg17: memref<1x128xf32, #tpu.memory_space<vmem>>, %arg18: memref<64x1xf32, #tpu.memory_space<vmem>>, %arg19: memref<64x1xf32, #tpu.memory_space<vmem>>, %arg20: memref<32x1xf32, #tpu.memory_space<vmem>>, %arg21: memref<32x1xf32, #tpu.memory_space<vmem>>, %arg22: memref<16x1xf32, #tpu.memory_space<vmem>>, %arg23: memref<16x1xf32, #tpu.memory_space<vmem>>, %arg24: memref<8x1xf32, #tpu.memory_space<vmem>>, %arg25: memref<8x1xf32, #tpu.memory_space<vmem>>, %arg26: memref<128x64xbf16, #tpu.memory_space<vmem>>, %arg27: memref<128x64xbf16, #tpu.memory_space<vmem>>, %arg28: memref<128x64xbf16, #tpu.memory_space<vmem>>, %arg29: memref<1x8x128xf32, #tpu.memory_space<vmem>>, %arg30: memref<64x128xf32, #tpu.memory_space<vmem>>) attributes {dimension_semantics = [#tpu.dimension_semantics<parallel>], iteration_bounds = array<i64: 1>, scalar_prefetch = 0 : i64, scratch_operands = 1 : i64, tpu.core_type = #tpu.core_type<tc>, window_params = [{transform_indices = @transform_0, window_bounds = array<i64: 1, 64, 32>}, {pipeline_mode = #tpu.pipeline_mode<synchronous>, transform_indices = @transform_1, window_bounds = array<i64: 32, 384>}, {pipeline_mode = #tpu.pipeline_mode<synchronous>, transform_indices = @transform_2, window_bounds = array<i64: 1, 128>}, {pipeline_mode = #tpu.pipeline_mode<synchronous>, transform_indices = @transform_3, window_bounds = array<i64: 128, 384>}, {pipeline_mode = #tpu.pipeline_mode<synchronous>, transform_indices = @transform_4, window_bounds = array<i64: 1, 128>}, {pipeline_mode = #tpu.pipeline_mode<synchronous>, transform_indices = @transform_5, window_bounds = array<i64: 64, 384>}, {pipeline_mode = #tpu.pipeline_mode<synchronous>, transform_indices = @transform_6, window_bounds = array<i64: 1, 128>}, {pipeline_mode = #tpu.pipeline_mode<synchronous>, transform_indices = @transform_7, window_bounds = array<i64: 128, 384>}, {pipeline_mode = #tpu.pipeline_mode<synchronous>, transform_indices = @transform_8, window_bounds = array<i64: 1, 128>}, {pipeline_mode = #tpu.pipeline_mode<synchronous>, transform_indices = @transform_9, window_bounds = array<i64: 64, 384>}, {pipeline_mode = #tpu.pipeline_mode<synchronous>, transform_indices = @transform_10, window_bounds = array<i64: 1, 128>}, {pipeline_mode = #tpu.pipeline_mode<synchronous>, transform_indices = @transform_11, window_bounds = array<i64: 128, 384>}, {pipeline_mode = #tpu.pipeline_mode<synchronous>, transform_indices = @transform_12, window_bounds = array<i64: 1, 128>}, {pipeline_mode = #tpu.pipeline_mode<synchronous>, transform_indices = @transform_13, window_bounds = array<i64: 64, 384>}, {pipeline_mode = #tpu.pipeline_mode<synchronous>, transform_indices = @transform_14, window_bounds = array<i64: 1, 128>}, {pipeline_mode = #tpu.pipeline_mode<synchronous>, transform_indices = @transform_15, window_bounds = array<i64: 128, 384>}, {pipeline_mode = #tpu.pipeline_mode<synchronous>, transform_indices = @transform_16, window_bounds = array<i64: 1, 128>}, {pipeline_mode = #tpu.pipeline_mode<synchronous>, transform_indices = @transform_17, window_bounds = array<i64: 64, 1>}, {pipeline_mode = #tpu.pipeline_mode<synchronous>, transform_indices = @transform_18, window_bounds = array<i64: 64, 1>}, {pipeline_mode = #tpu.pipeline_mode<synchronous>, transform_indices = @transform_19, window_bounds = array<i64: 32, 1>}, {pipeline_mode = #tpu.pipeline_mode<synchronous>, transform_indices = @transform_20, window_bounds = array<i64: 32, 1>}, {pipeline_mode = #tpu.pipeline_mode<synchronous>, transform_indices = @transform_21, window_bounds = array<i64: 16, 1>}, {pipeline_mode = #tpu.pipeline_mode<synchronous>, transform_indices = @transform_22, window_bounds = array<i64: 16, 1>}, {pipeline_mode = #tpu.pipeline_mode<synchronous>, transform_indices = @transform_23, window_bounds = array<i64: 8, 1>}, {pipeline_mode = #tpu.pipeline_mode<synchronous>, transform_indices = @transform_24, window_bounds = array<i64: 8, 1>}, {pipeline_mode = #tpu.pipeline_mode<synchronous>, transform_indices = @transform_25, window_bounds = array<i64: 128, 64>}, {pipeline_mode = #tpu.pipeline_mode<synchronous>, transform_indices = @transform_26, window_bounds = array<i64: 128, 64>}, {pipeline_mode = #tpu.pipeline_mode<synchronous>, transform_indices = @transform_27, window_bounds = array<i64: 128, 64>}, {transform_indices = @transform_28, window_bounds = array<i64: 1, 8, 128>}]} {
    %c0 = arith.constant 0 : index
    %c0_0 = arith.constant 0 : index
    %c0_1 = arith.constant 0 : index
    %0 = vector.load %arg1[%c0, %c0_0, %c0_1] : memref<1x64x32xf32, #tpu.memory_space<vmem>>, vector<1x64x32xf32>
    %1 = vector.shape_cast %0 : vector<1x64x32xf32> to vector<64x32xf32>
    %c0_2 = arith.constant 0 : index
    %c0_3 = arith.constant 0 : index
    %2 = vector.load %arg2[%c0_2, %c0_3] : memref<32x384xbf16, #tpu.memory_space<vmem>>, vector<32x384xbf16>
    %c0_4 = arith.constant 0 : index
    %c0_5 = arith.constant 0 : index
    %3 = vector.load %arg3[%c0_4, %c0_5] : memref<1x128xf32, #tpu.memory_space<vmem>>, vector<1x128xf32>
    %c0_6 = arith.constant 0 : index
    %c0_7 = arith.constant 0 : index
    %4 = vector.load %arg18[%c0_6, %c0_7] : memref<64x1xf32, #tpu.memory_space<vmem>>, vector<64x1xf32>
    %c0_8 = arith.constant 0 : index
    %c0_9 = arith.constant 0 : index
    %5 = vector.load %arg19[%c0_8, %c0_9] : memref<64x1xf32, #tpu.memory_space<vmem>>, vector<64x1xf32>
    %6 = arith.truncf %1 : vector<64x32xf32> to vector<64x32xbf16>
    %cst = arith.constant dense<0.000000e+00> : vector<64x384xf32>
    %7 = tpu.matmul %6, %2, %cst {dimension_numbers = #tpu.dot_dimension_numbers<[1], [0], [0], [1], [0, 0, 1, 1], [], []>} : vector<64x32xbf16>, vector<32x384xbf16>, vector<64x384xf32> -> vector<64x384xf32>
    %8 = vector.extract_strided_slice %7 {offsets = [0, 0], sizes = [64, 128], strides = [1, 1]} : vector<64x384xf32> to vector<64x128xf32>
    %9 = vector.extract_strided_slice %7 {offsets = [0, 128], sizes = [64, 128], strides = [1, 1]} : vector<64x384xf32> to vector<64x128xf32>
    %10 = vector.extract_strided_slice %7 {offsets = [0, 256], sizes = [64, 128], strides = [1, 1]} : vector<64x384xf32> to vector<64x128xf32>
    %c1_i32 = arith.constant 1 : i32
    %11 = tpu.dynamic_rotate %8 by %c1_i32 dim 0 : vector<64x128xf32>, i32 -> vector<64x128xf32>
    %c63_i32 = arith.constant 63 : i32
    %12 = tpu.dynamic_rotate %10 by %c63_i32 dim 0 : vector<64x128xf32>, i32 -> vector<64x128xf32>
    %13 = vector.broadcast %4 : vector<64x1xf32> to vector<64x128xf32>
    %14 = arith.mulf %13, %11 : vector<64x128xf32>
    %15 = arith.addf %14, %9 : vector<64x128xf32>
    %16 = vector.broadcast %5 : vector<64x1xf32> to vector<64x128xf32>
    %17 = arith.mulf %16, %12 : vector<64x128xf32>
    %18 = arith.addf %15, %17 : vector<64x128xf32>
    %19 = vector.broadcast %3 : vector<1x128xf32> to vector<64x128xf32>
    %20 = arith.addf %18, %19 : vector<64x128xf32>
    %cst_10 = arith.constant 0.000000e+00 : f32
    %21 = vector.broadcast %cst_10 : f32 to vector<64x128xf32>
    %22 = arith.maximumf %20, %21 : vector<64x128xf32>
    %c0_11 = arith.constant 0 : index
    %c0_12 = arith.constant 0 : index
    %23 = vector.load %arg4[%c0_11, %c0_12] : memref<128x384xbf16, #tpu.memory_space<vmem>>, vector<128x384xbf16>
    %c0_13 = arith.constant 0 : index
    %c0_14 = arith.constant 0 : index
    %24 = vector.load %arg5[%c0_13, %c0_14] : memref<1x128xf32, #tpu.memory_space<vmem>>, vector<1x128xf32>
    %c0_15 = arith.constant 0 : index
    %c0_16 = arith.constant 0 : index
    %25 = vector.load %arg18[%c0_15, %c0_16] : memref<64x1xf32, #tpu.memory_space<vmem>>, vector<64x1xf32>
    %c0_17 = arith.constant 0 : index
    %c0_18 = arith.constant 0 : index
    %26 = vector.load %arg19[%c0_17, %c0_18] : memref<64x1xf32, #tpu.memory_space<vmem>>, vector<64x1xf32>
    %27 = arith.truncf %22 : vector<64x128xf32> to vector<64x128xbf16>
    %cst_19 = arith.constant dense<0.000000e+00> : vector<64x384xf32>
    %28 = tpu.matmul %27, %23, %cst_19 {dimension_numbers = #tpu.dot_dimension_numbers<[1], [0], [0], [1], [0, 0, 1, 1], [], []>} : vector<64x128xbf16>, vector<128x384xbf16>, vector<64x384xf32> -> vector<64x384xf32>
    %29 = vector.extract_strided_slice %28 {offsets = [0, 0], sizes = [64, 128], strides = [1, 1]} : vector<64x384xf32> to vector<64x128xf32>
    %30 = vector.extract_strided_slice %28 {offsets = [0, 128], sizes = [64, 128], strides = [1, 1]} : vector<64x384xf32> to vector<64x128xf32>
    %31 = vector.extract_strided_slice %28 {offsets = [0, 256], sizes = [64, 128], strides = [1, 1]} : vector<64x384xf32> to vector<64x128xf32>
    %c1_i32_20 = arith.constant 1 : i32
    %32 = tpu.dynamic_rotate %29 by %c1_i32_20 dim 0 : vector<64x128xf32>, i32 -> vector<64x128xf32>
    %c63_i32_21 = arith.constant 63 : i32
    %33 = tpu.dynamic_rotate %31 by %c63_i32_21 dim 0 : vector<64x128xf32>, i32 -> vector<64x128xf32>
    %34 = vector.broadcast %25 : vector<64x1xf32> to vector<64x128xf32>
    %35 = arith.mulf %34, %32 : vector<64x128xf32>
    %36 = arith.addf %35, %30 : vector<64x128xf32>
    %37 = vector.broadcast %26 : vector<64x1xf32> to vector<64x128xf32>
    %38 = arith.mulf %37, %33 : vector<64x128xf32>
    %39 = arith.addf %36, %38 : vector<64x128xf32>
    %40 = vector.broadcast %24 : vector<1x128xf32> to vector<64x128xf32>
    %41 = arith.addf %39, %40 : vector<64x128xf32>
    %cst_22 = arith.constant 0.000000e+00 : f32
    %42 = vector.broadcast %cst_22 : f32 to vector<64x128xf32>
    %43 = arith.maximumf %41, %42 : vector<64x128xf32>
    %c0_23 = arith.constant 0 : index
    %c0_24 = arith.constant 0 : index
    %44 = vector.load %arg26[%c0_23, %c0_24] : memref<128x64xbf16, #tpu.memory_space<vmem>>, vector<128x64xbf16>
    %c63_i32_25 = arith.constant 63 : i32
    %45 = tpu.dynamic_rotate %43 by %c63_i32_25 dim 0 : vector<64x128xf32>, i32 -> vector<64x128xf32>
    %46 = arith.maximumf %43, %45 : vector<64x128xf32>
    %c0_26 = arith.constant 0 : index
    %c0_27 = arith.constant 0 : index
    %47 = vector.load %arg30[%c0_26, %c0_27] : memref<64x128xf32, #tpu.memory_space<vmem>>, vector<64x128xf32>
    tpu.vector_store %arg30[%c0_26, %c0_27], %46 {strides = array<i32>} : memref<64x128xf32, #tpu.memory_space<vmem>>, vector<64x128xf32>,
    %c0_28 = arith.constant 0 : index
    %c0_29 = arith.constant 0 : index
    %48 = tpu.strided_load %arg30[%c0_28, %c0_29] {strides = array<i32: 2, 1>} : memref<64x128xf32, #tpu.memory_space<vmem>>, vector<32x128xf32>
    %c124_i32 = arith.constant 124 : i32
    %49 = tpu.dynamic_rotate %48 by %c124_i32 dim 1 : vector<32x128xf32>, i32 -> vector<32x128xf32>
    %50 = arith.maximumf %48, %49 : vector<32x128xf32>
    %51 = arith.truncf %50 : vector<32x128xf32> to vector<32x128xbf16>
    %cst_30 = arith.constant dense<0.000000e+00> : vector<32x64xf32>
    %52 = tpu.matmul %51, %44, %cst_30 {dimension_numbers = #tpu.dot_dimension_numbers<[1], [0], [0], [1], [0, 0, 1, 1], [], []>} : vector<32x128xbf16>, vector<128x64xbf16>, vector<32x64xf32> -> vector<32x64xf32>
    %c0_31 = arith.constant 0 : index
    %c0_32 = arith.constant 0 : index
    %53 = vector.load %arg6[%c0_31, %c0_32] : memref<64x384xbf16, #tpu.memory_space<vmem>>, vector<64x384xbf16>
    %c0_33 = arith.constant 0 : index
    %c0_34 = arith.constant 0 : index
    %54 = vector.load %arg7[%c0_33, %c0_34] : memref<1x128xf32, #tpu.memory_space<vmem>>, vector<1x128xf32>
    %c0_35 = arith.constant 0 : index
    %c0_36 = arith.constant 0 : index
    %55 = vector.load %arg20[%c0_35, %c0_36] : memref<32x1xf32, #tpu.memory_space<vmem>>, vector<32x1xf32>
    %c0_37 = arith.constant 0 : index
    %c0_38 = arith.constant 0 : index
    %56 = vector.load %arg21[%c0_37, %c0_38] : memref<32x1xf32, #tpu.memory_space<vmem>>, vector<32x1xf32>
    %57 = arith.truncf %52 : vector<32x64xf32> to vector<32x64xbf16>
    %cst_39 = arith.constant dense<0.000000e+00> : vector<32x384xf32>
    %58 = tpu.matmul %57, %53, %cst_39 {dimension_numbers = #tpu.dot_dimension_numbers<[1], [0], [0], [1], [0, 0, 1, 1], [], []>} : vector<32x64xbf16>, vector<64x384xbf16>, vector<32x384xf32> -> vector<32x384xf32>
    %59 = vector.extract_strided_slice %58 {offsets = [0, 0], sizes = [32, 128], strides = [1, 1]} : vector<32x384xf32> to vector<32x128xf32>
    %60 = vector.extract_strided_slice %58 {offsets = [0, 128], sizes = [32, 128], strides = [1, 1]} : vector<32x384xf32> to vector<32x128xf32>
    %61 = vector.extract_strided_slice %58 {offsets = [0, 256], sizes = [32, 128], strides = [1, 1]} : vector<32x384xf32> to vector<32x128xf32>
    %c1_i32_40 = arith.constant 1 : i32
    %62 = tpu.dynamic_rotate %59 by %c1_i32_40 dim 0 : vector<32x128xf32>, i32 -> vector<32x128xf32>
    %c31_i32 = arith.constant 31 : i32
    %63 = tpu.dynamic_rotate %61 by %c31_i32 dim 0 : vector<32x128xf32>, i32 -> vector<32x128xf32>
    %64 = vector.broadcast %55 : vector<32x1xf32> to vector<32x128xf32>
    %65 = arith.mulf %64, %62 : vector<32x128xf32>
    %66 = arith.addf %65, %60 : vector<32x128xf32>
    %67 = vector.broadcast %56 : vector<32x1xf32> to vector<32x128xf32>
    %68 = arith.mulf %67, %63 : vector<32x128xf32>
    %69 = arith.addf %66, %68 : vector<32x128xf32>
    %70 = vector.broadcast %54 : vector<1x128xf32> to vector<32x128xf32>
    %71 = arith.addf %69, %70 : vector<32x128xf32>
    %cst_41 = arith.constant 0.000000e+00 : f32
    %72 = vector.broadcast %cst_41 : f32 to vector<32x128xf32>
    %73 = arith.maximumf %71, %72 : vector<32x128xf32>
    %c0_42 = arith.constant 0 : index
    %c0_43 = arith.constant 0 : index
    %74 = vector.load %arg8[%c0_42, %c0_43] : memref<128x384xbf16, #tpu.memory_space<vmem>>, vector<128x384xbf16>
    %c0_44 = arith.constant 0 : index
    %c0_45 = arith.constant 0 : index
    %75 = vector.load %arg9[%c0_44, %c0_45] : memref<1x128xf32, #tpu.memory_space<vmem>>, vector<1x128xf32>
    %c0_46 = arith.constant 0 : index
    %c0_47 = arith.constant 0 : index
    %76 = vector.load %arg20[%c0_46, %c0_47] : memref<32x1xf32, #tpu.memory_space<vmem>>, vector<32x1xf32>
    %c0_48 = arith.constant 0 : index
    %c0_49 = arith.constant 0 : index
    %77 = vector.load %arg21[%c0_48, %c0_49] : memref<32x1xf32, #tpu.memory_space<vmem>>, vector<32x1xf32>
    %78 = arith.truncf %73 : vector<32x128xf32> to vector<32x128xbf16>
    %cst_50 = arith.constant dense<0.000000e+00> : vector<32x384xf32>
    %79 = tpu.matmul %78, %74, %cst_50 {dimension_numbers = #tpu.dot_dimension_numbers<[1], [0], [0], [1], [0, 0, 1, 1], [], []>} : vector<32x128xbf16>, vector<128x384xbf16>, vector<32x384xf32> -> vector<32x384xf32>
    %80 = vector.extract_strided_slice %79 {offsets = [0, 0], sizes = [32, 128], strides = [1, 1]} : vector<32x384xf32> to vector<32x128xf32>
    %81 = vector.extract_strided_slice %79 {offsets = [0, 128], sizes = [32, 128], strides = [1, 1]} : vector<32x384xf32> to vector<32x128xf32>
    %82 = vector.extract_strided_slice %79 {offsets = [0, 256], sizes = [32, 128], strides = [1, 1]} : vector<32x384xf32> to vector<32x128xf32>
    %c1_i32_51 = arith.constant 1 : i32
    %83 = tpu.dynamic_rotate %80 by %c1_i32_51 dim 0 : vector<32x128xf32>, i32 -> vector<32x128xf32>
    %c31_i32_52 = arith.constant 31 : i32
    %84 = tpu.dynamic_rotate %82 by %c31_i32_52 dim 0 : vector<32x128xf32>, i32 -> vector<32x128xf32>
    %85 = vector.broadcast %76 : vector<32x1xf32> to vector<32x128xf32>
    %86 = arith.mulf %85, %83 : vector<32x128xf32>
    %87 = arith.addf %86, %81 : vector<32x128xf32>
    %88 = vector.broadcast %77 : vector<32x1xf32> to vector<32x128xf32>
    %89 = arith.mulf %88, %84 : vector<32x128xf32>
    %90 = arith.addf %87, %89 : vector<32x128xf32>
    %91 = vector.broadcast %75 : vector<1x128xf32> to vector<32x128xf32>
    %92 = arith.addf %90, %91 : vector<32x128xf32>
    %cst_53 = arith.constant 0.000000e+00 : f32
    %93 = vector.broadcast %cst_53 : f32 to vector<32x128xf32>
    %94 = arith.maximumf %92, %93 : vector<32x128xf32>
    %c0_54 = arith.constant 0 : index
    %c0_55 = arith.constant 0 : index
    %95 = vector.load %arg27[%c0_54, %c0_55] : memref<128x64xbf16, #tpu.memory_space<vmem>>, vector<128x64xbf16>
    %c31_i32_56 = arith.constant 31 : i32
    %96 = tpu.dynamic_rotate %94 by %c31_i32_56 dim 0 : vector<32x128xf32>, i32 -> vector<32x128xf32>
    %97 = arith.maximumf %94, %96 : vector<32x128xf32>
    %c0_57 = arith.constant 0 : index
    %c0_58 = arith.constant 0 : index
    %98 = vector.load %arg30[%c0_57, %c0_58] : memref<64x128xf32, #tpu.memory_space<vmem>>, vector<32x128xf32>
    tpu.vector_store %arg30[%c0_57, %c0_58], %97 {strides = array<i32>} : memref<64x128xf32, #tpu.memory_space<vmem>>, vector<32x128xf32>,
    %c0_59 = arith.constant 0 : index
    %c0_60 = arith.constant 0 : index
    %99 = tpu.strided_load %arg30[%c0_59, %c0_60] {strides = array<i32: 2, 1>} : memref<64x128xf32, #tpu.memory_space<vmem>>, vector<16x128xf32>
    %c120_i32 = arith.constant 120 : i32
    %100 = tpu.dynamic_rotate %99 by %c120_i32 dim 1 : vector<16x128xf32>, i32 -> vector<16x128xf32>
    %101 = arith.maximumf %99, %100 : vector<16x128xf32>
    %102 = arith.truncf %101 : vector<16x128xf32> to vector<16x128xbf16>
    %cst_61 = arith.constant dense<0.000000e+00> : vector<16x64xf32>
    %103 = tpu.matmul %102, %95, %cst_61 {dimension_numbers = #tpu.dot_dimension_numbers<[1], [0], [0], [1], [0, 0, 1, 1], [], []>} : vector<16x128xbf16>, vector<128x64xbf16>, vector<16x64xf32> -> vector<16x64xf32>
    %c0_62 = arith.constant 0 : index
    %c0_63 = arith.constant 0 : index
    %104 = vector.load %arg10[%c0_62, %c0_63] : memref<64x384xbf16, #tpu.memory_space<vmem>>, vector<64x384xbf16>
    %c0_64 = arith.constant 0 : index
    %c0_65 = arith.constant 0 : index
    %105 = vector.load %arg11[%c0_64, %c0_65] : memref<1x128xf32, #tpu.memory_space<vmem>>, vector<1x128xf32>
    %c0_66 = arith.constant 0 : index
    %c0_67 = arith.constant 0 : index
    %106 = vector.load %arg22[%c0_66, %c0_67] : memref<16x1xf32, #tpu.memory_space<vmem>>, vector<16x1xf32>
    %c0_68 = arith.constant 0 : index
    %c0_69 = arith.constant 0 : index
    %107 = vector.load %arg23[%c0_68, %c0_69] : memref<16x1xf32, #tpu.memory_space<vmem>>, vector<16x1xf32>
    %108 = arith.truncf %103 : vector<16x64xf32> to vector<16x64xbf16>
    %cst_70 = arith.constant dense<0.000000e+00> : vector<16x384xf32>
    %109 = tpu.matmul %108, %104, %cst_70 {dimension_numbers = #tpu.dot_dimension_numbers<[1], [0], [0], [1], [0, 0, 1, 1], [], []>} : vector<16x64xbf16>, vector<64x384xbf16>, vector<16x384xf32> -> vector<16x384xf32>
    %110 = vector.extract_strided_slice %109 {offsets = [0, 0], sizes = [16, 128], strides = [1, 1]} : vector<16x384xf32> to vector<16x128xf32>
    %111 = vector.extract_strided_slice %109 {offsets = [0, 128], sizes = [16, 128], strides = [1, 1]} : vector<16x384xf32> to vector<16x128xf32>
    %112 = vector.extract_strided_slice %109 {offsets = [0, 256], sizes = [16, 128], strides = [1, 1]} : vector<16x384xf32> to vector<16x128xf32>
    %c1_i32_71 = arith.constant 1 : i32
    %113 = tpu.dynamic_rotate %110 by %c1_i32_71 dim 0 : vector<16x128xf32>, i32 -> vector<16x128xf32>
    %c15_i32 = arith.constant 15 : i32
    %114 = tpu.dynamic_rotate %112 by %c15_i32 dim 0 : vector<16x128xf32>, i32 -> vector<16x128xf32>
    %115 = vector.broadcast %106 : vector<16x1xf32> to vector<16x128xf32>
    %116 = arith.mulf %115, %113 : vector<16x128xf32>
    %117 = arith.addf %116, %111 : vector<16x128xf32>
    %118 = vector.broadcast %107 : vector<16x1xf32> to vector<16x128xf32>
    %119 = arith.mulf %118, %114 : vector<16x128xf32>
    %120 = arith.addf %117, %119 : vector<16x128xf32>
    %121 = vector.broadcast %105 : vector<1x128xf32> to vector<16x128xf32>
    %122 = arith.addf %120, %121 : vector<16x128xf32>
    %cst_72 = arith.constant 0.000000e+00 : f32
    %123 = vector.broadcast %cst_72 : f32 to vector<16x128xf32>
    %124 = arith.maximumf %122, %123 : vector<16x128xf32>
    %c0_73 = arith.constant 0 : index
    %c0_74 = arith.constant 0 : index
    %125 = vector.load %arg12[%c0_73, %c0_74] : memref<128x384xbf16, #tpu.memory_space<vmem>>, vector<128x384xbf16>
    %c0_75 = arith.constant 0 : index
    %c0_76 = arith.constant 0 : index
    %126 = vector.load %arg13[%c0_75, %c0_76] : memref<1x128xf32, #tpu.memory_space<vmem>>, vector<1x128xf32>
    %c0_77 = arith.constant 0 : index
    %c0_78 = arith.constant 0 : index
    %127 = vector.load %arg22[%c0_77, %c0_78] : memref<16x1xf32, #tpu.memory_space<vmem>>, vector<16x1xf32>
    %c0_79 = arith.constant 0 : index
    %c0_80 = arith.constant 0 : index
    %128 = vector.load %arg23[%c0_79, %c0_80] : memref<16x1xf32, #tpu.memory_space<vmem>>, vector<16x1xf32>
    %129 = arith.truncf %124 : vector<16x128xf32> to vector<16x128xbf16>
    %cst_81 = arith.constant dense<0.000000e+00> : vector<16x384xf32>
    %130 = tpu.matmul %129, %125, %cst_81 {dimension_numbers = #tpu.dot_dimension_numbers<[1], [0], [0], [1], [0, 0, 1, 1], [], []>} : vector<16x128xbf16>, vector<128x384xbf16>, vector<16x384xf32> -> vector<16x384xf32>
    %131 = vector.extract_strided_slice %130 {offsets = [0, 0], sizes = [16, 128], strides = [1, 1]} : vector<16x384xf32> to vector<16x128xf32>
    %132 = vector.extract_strided_slice %130 {offsets = [0, 128], sizes = [16, 128], strides = [1, 1]} : vector<16x384xf32> to vector<16x128xf32>
    %133 = vector.extract_strided_slice %130 {offsets = [0, 256], sizes = [16, 128], strides = [1, 1]} : vector<16x384xf32> to vector<16x128xf32>
    %c1_i32_82 = arith.constant 1 : i32
    %134 = tpu.dynamic_rotate %131 by %c1_i32_82 dim 0 : vector<16x128xf32>, i32 -> vector<16x128xf32>
    %c15_i32_83 = arith.constant 15 : i32
    %135 = tpu.dynamic_rotate %133 by %c15_i32_83 dim 0 : vector<16x128xf32>, i32 -> vector<16x128xf32>
    %136 = vector.broadcast %127 : vector<16x1xf32> to vector<16x128xf32>
    %137 = arith.mulf %136, %134 : vector<16x128xf32>
    %138 = arith.addf %137, %132 : vector<16x128xf32>
    %139 = vector.broadcast %128 : vector<16x1xf32> to vector<16x128xf32>
    %140 = arith.mulf %139, %135 : vector<16x128xf32>
    %141 = arith.addf %138, %140 : vector<16x128xf32>
    %142 = vector.broadcast %126 : vector<1x128xf32> to vector<16x128xf32>
    %143 = arith.addf %141, %142 : vector<16x128xf32>
    %cst_84 = arith.constant 0.000000e+00 : f32
    %144 = vector.broadcast %cst_84 : f32 to vector<16x128xf32>
    %145 = arith.maximumf %143, %144 : vector<16x128xf32>
    %c0_85 = arith.constant 0 : index
    %c0_86 = arith.constant 0 : index
    %146 = vector.load %arg28[%c0_85, %c0_86] : memref<128x64xbf16, #tpu.memory_space<vmem>>, vector<128x64xbf16>
    %c15_i32_87 = arith.constant 15 : i32
    %147 = tpu.dynamic_rotate %145 by %c15_i32_87 dim 0 : vector<16x128xf32>, i32 -> vector<16x128xf32>
    %148 = arith.maximumf %145, %147 : vector<16x128xf32>
    %c0_88 = arith.constant 0 : index
    %c0_89 = arith.constant 0 : index
    %149 = vector.load %arg30[%c0_88, %c0_89] : memref<64x128xf32, #tpu.memory_space<vmem>>, vector<16x128xf32>
    tpu.vector_store %arg30[%c0_88, %c0_89], %148 {strides = array<i32>} : memref<64x128xf32, #tpu.memory_space<vmem>>, vector<16x128xf32>,
    %c0_90 = arith.constant 0 : index
    %c0_91 = arith.constant 0 : index
    %150 = tpu.strided_load %arg30[%c0_90, %c0_91] {strides = array<i32: 2, 1>} : memref<64x128xf32, #tpu.memory_space<vmem>>, vector<8x128xf32>
    %c112_i32 = arith.constant 112 : i32
    %151 = tpu.dynamic_rotate %150 by %c112_i32 dim 1 : vector<8x128xf32>, i32 -> vector<8x128xf32>
    %152 = arith.maximumf %150, %151 : vector<8x128xf32>
    %153 = arith.truncf %152 : vector<8x128xf32> to vector<8x128xbf16>
    %cst_92 = arith.constant dense<0.000000e+00> : vector<8x64xf32>
    %154 = tpu.matmul %153, %146, %cst_92 {dimension_numbers = #tpu.dot_dimension_numbers<[1], [0], [0], [1], [0, 0, 1, 1], [], []>} : vector<8x128xbf16>, vector<128x64xbf16>, vector<8x64xf32> -> vector<8x64xf32>
    %c0_93 = arith.constant 0 : index
    %c0_94 = arith.constant 0 : index
    %155 = vector.load %arg14[%c0_93, %c0_94] : memref<64x384xbf16, #tpu.memory_space<vmem>>, vector<64x384xbf16>
    %c0_95 = arith.constant 0 : index
    %c0_96 = arith.constant 0 : index
    %156 = vector.load %arg15[%c0_95, %c0_96] : memref<1x128xf32, #tpu.memory_space<vmem>>, vector<1x128xf32>
    %c0_97 = arith.constant 0 : index
    %c0_98 = arith.constant 0 : index
    %157 = vector.load %arg24[%c0_97, %c0_98] : memref<8x1xf32, #tpu.memory_space<vmem>>, vector<8x1xf32>
    %c0_99 = arith.constant 0 : index
    %c0_100 = arith.constant 0 : index
    %158 = vector.load %arg25[%c0_99, %c0_100] : memref<8x1xf32, #tpu.memory_space<vmem>>, vector<8x1xf32>
    %159 = arith.truncf %154 : vector<8x64xf32> to vector<8x64xbf16>
    %cst_101 = arith.constant dense<0.000000e+00> : vector<8x384xf32>
    %160 = tpu.matmul %159, %155, %cst_101 {dimension_numbers = #tpu.dot_dimension_numbers<[1], [0], [0], [1], [0, 0, 1, 1], [], []>} : vector<8x64xbf16>, vector<64x384xbf16>, vector<8x384xf32> -> vector<8x384xf32>
    %161 = vector.extract_strided_slice %160 {offsets = [0, 0], sizes = [8, 128], strides = [1, 1]} : vector<8x384xf32> to vector<8x128xf32>
    %162 = vector.extract_strided_slice %160 {offsets = [0, 128], sizes = [8, 128], strides = [1, 1]} : vector<8x384xf32> to vector<8x128xf32>
    %163 = vector.extract_strided_slice %160 {offsets = [0, 256], sizes = [8, 128], strides = [1, 1]} : vector<8x384xf32> to vector<8x128xf32>
    %c1_i32_102 = arith.constant 1 : i32
    %164 = tpu.dynamic_rotate %161 by %c1_i32_102 dim 0 : vector<8x128xf32>, i32 -> vector<8x128xf32>
    %c7_i32 = arith.constant 7 : i32
    %165 = tpu.dynamic_rotate %163 by %c7_i32 dim 0 : vector<8x128xf32>, i32 -> vector<8x128xf32>
    %166 = vector.broadcast %157 : vector<8x1xf32> to vector<8x128xf32>
    %167 = arith.mulf %166, %164 : vector<8x128xf32>
    %168 = arith.addf %167, %162 : vector<8x128xf32>
    %169 = vector.broadcast %158 : vector<8x1xf32> to vector<8x128xf32>
    %170 = arith.mulf %169, %165 : vector<8x128xf32>
    %171 = arith.addf %168, %170 : vector<8x128xf32>
    %172 = vector.broadcast %156 : vector<1x128xf32> to vector<8x128xf32>
    %173 = arith.addf %171, %172 : vector<8x128xf32>
    %cst_103 = arith.constant 0.000000e+00 : f32
    %174 = vector.broadcast %cst_103 : f32 to vector<8x128xf32>
    %175 = arith.maximumf %173, %174 : vector<8x128xf32>
    %c0_104 = arith.constant 0 : index
    %c0_105 = arith.constant 0 : index
    %176 = vector.load %arg16[%c0_104, %c0_105] : memref<128x384xbf16, #tpu.memory_space<vmem>>, vector<128x384xbf16>
    %c0_106 = arith.constant 0 : index
    %c0_107 = arith.constant 0 : index
    %177 = vector.load %arg17[%c0_106, %c0_107] : memref<1x128xf32, #tpu.memory_space<vmem>>, vector<1x128xf32>
    %c0_108 = arith.constant 0 : index
    %c0_109 = arith.constant 0 : index
    %178 = vector.load %arg24[%c0_108, %c0_109] : memref<8x1xf32, #tpu.memory_space<vmem>>, vector<8x1xf32>
    %c0_110 = arith.constant 0 : index
    %c0_111 = arith.constant 0 : index
    %179 = vector.load %arg25[%c0_110, %c0_111] : memref<8x1xf32, #tpu.memory_space<vmem>>, vector<8x1xf32>
    %180 = arith.truncf %175 : vector<8x128xf32> to vector<8x128xbf16>
    %cst_112 = arith.constant dense<0.000000e+00> : vector<8x384xf32>
    %181 = tpu.matmul %180, %176, %cst_112 {dimension_numbers = #tpu.dot_dimension_numbers<[1], [0], [0], [1], [0, 0, 1, 1], [], []>} : vector<8x128xbf16>, vector<128x384xbf16>, vector<8x384xf32> -> vector<8x384xf32>
    %182 = vector.extract_strided_slice %181 {offsets = [0, 0], sizes = [8, 128], strides = [1, 1]} : vector<8x384xf32> to vector<8x128xf32>
    %183 = vector.extract_strided_slice %181 {offsets = [0, 128], sizes = [8, 128], strides = [1, 1]} : vector<8x384xf32> to vector<8x128xf32>
    %184 = vector.extract_strided_slice %181 {offsets = [0, 256], sizes = [8, 128], strides = [1, 1]} : vector<8x384xf32> to vector<8x128xf32>
    %c1_i32_113 = arith.constant 1 : i32
    %185 = tpu.dynamic_rotate %182 by %c1_i32_113 dim 0 : vector<8x128xf32>, i32 -> vector<8x128xf32>
    %c7_i32_114 = arith.constant 7 : i32
    %186 = tpu.dynamic_rotate %184 by %c7_i32_114 dim 0 : vector<8x128xf32>, i32 -> vector<8x128xf32>
    %187 = vector.broadcast %178 : vector<8x1xf32> to vector<8x128xf32>
    %188 = arith.mulf %187, %185 : vector<8x128xf32>
    %189 = arith.addf %188, %183 : vector<8x128xf32>
    %190 = vector.broadcast %179 : vector<8x1xf32> to vector<8x128xf32>
    %191 = arith.mulf %190, %186 : vector<8x128xf32>
    %192 = arith.addf %189, %191 : vector<8x128xf32>
    %193 = vector.broadcast %177 : vector<1x128xf32> to vector<8x128xf32>
    %194 = arith.addf %192, %193 : vector<8x128xf32>
    %cst_115 = arith.constant 0.000000e+00 : f32
    %195 = vector.broadcast %cst_115 : f32 to vector<8x128xf32>
    %196 = arith.maximumf %194, %195 : vector<8x128xf32>
    %c0_116 = arith.constant 0 : index
    %c0_117 = arith.constant 0 : index
    %c0_118 = arith.constant 0 : index
    %197 = vector.load %arg29[%c0_116, %c0_117, %c0_118] : memref<1x8x128xf32, #tpu.memory_space<vmem>>, vector<1x8x128xf32>
    %198 = vector.shape_cast %197 : vector<1x8x128xf32> to vector<8x128xf32>
    %199 = vector.shape_cast %196 : vector<8x128xf32> to vector<1x8x128xf32>
    tpu.vector_store %arg29[%c0_116, %c0_117, %c0_118], %199 {strides = array<i32>} : memref<1x8x128xf32, #tpu.memory_space<vmem>>, vector<1x8x128xf32>,
    return
  }
  func.func @transform_0(%arg0: i32) -> (i32, i32, i32) {
    %c0_i32 = arith.constant 0 : i32
    %c0_i32_0 = arith.constant 0 : i32
    %c0_i32_1 = arith.constant 0 : i32
    return %arg0, %c0_i32, %c0_i32_0 : i32, i32, i32
  }
  func.func @transform_1(%arg0: i32) -> (i32, i32) {
    %c0_i32 = arith.constant 0 : i32
    %c0_i32_0 = arith.constant 0 : i32
    %c0_i32_1 = arith.constant 0 : i32
    return %c0_i32, %c0_i32_0 : i32, i32
  }
  func.func @transform_2(%arg0: i32) -> (i32, i32) {
    %c0_i32 = arith.constant 0 : i32
    %c0_i32_0 = arith.constant 0 : i32
    %c0_i32_1 = arith.constant 0 : i32
    return %c0_i32, %c0_i32_0 : i32, i32
  }
  func.func @transform_3(%arg0: i32) -> (i32, i32) {
    %c0_i32 = arith.constant 0 : i32
    %c0_i32_0 = arith.constant 0 : i32
    %c0_i32_1 = arith.constant 0 : i32
    return %c0_i32, %c0_i32_0 : i32, i32
  }
  func.func @transform_4(%arg0: i32) -> (i32, i32) {
    %c0_i32 = arith.constant 0 : i32
    %c0_i32_0 = arith.constant 0 : i32
    %c0_i32_1 = arith.constant 0 : i32
    return %c0_i32, %c0_i32_0 : i32, i32
  }
  func.func @transform_5(%arg0: i32) -> (i32, i32) {
    %c0_i32 = arith.constant 0 : i32
    %c0_i32_0 = arith.constant 0 : i32
    %c0_i32_1 = arith.constant 0 : i32
    return %c0_i32, %c0_i32_0 : i32, i32
  }
  func.func @transform_6(%arg0: i32) -> (i32, i32) {
    %c0_i32 = arith.constant 0 : i32
    %c0_i32_0 = arith.constant 0 : i32
    %c0_i32_1 = arith.constant 0 : i32
    return %c0_i32, %c0_i32_0 : i32, i32
  }
  func.func @transform_7(%arg0: i32) -> (i32, i32) {
    %c0_i32 = arith.constant 0 : i32
    %c0_i32_0 = arith.constant 0 : i32
    %c0_i32_1 = arith.constant 0 : i32
    return %c0_i32, %c0_i32_0 : i32, i32
  }
  func.func @transform_8(%arg0: i32) -> (i32, i32) {
    %c0_i32 = arith.constant 0 : i32
    %c0_i32_0 = arith.constant 0 : i32
    %c0_i32_1 = arith.constant 0 : i32
    return %c0_i32, %c0_i32_0 : i32, i32
  }
  func.func @transform_9(%arg0: i32) -> (i32, i32) {
    %c0_i32 = arith.constant 0 : i32
    %c0_i32_0 = arith.constant 0 : i32
    %c0_i32_1 = arith.constant 0 : i32
    return %c0_i32, %c0_i32_0 : i32, i32
  }
  func.func @transform_10(%arg0: i32) -> (i32, i32) {
    %c0_i32 = arith.constant 0 : i32
    %c0_i32_0 = arith.constant 0 : i32
    %c0_i32_1 = arith.constant 0 : i32
    return %c0_i32, %c0_i32_0 : i32, i32
  }
  func.func @transform_11(%arg0: i32) -> (i32, i32) {
    %c0_i32 = arith.constant 0 : i32
    %c0_i32_0 = arith.constant 0 : i32
    %c0_i32_1 = arith.constant 0 : i32
    return %c0_i32, %c0_i32_0 : i32, i32
  }
  func.func @transform_12(%arg0: i32) -> (i32, i32) {
    %c0_i32 = arith.constant 0 : i32
    %c0_i32_0 = arith.constant 0 : i32
    %c0_i32_1 = arith.constant 0 : i32
    return %c0_i32, %c0_i32_0 : i32, i32
  }
  func.func @transform_13(%arg0: i32) -> (i32, i32) {
    %c0_i32 = arith.constant 0 : i32
    %c0_i32_0 = arith.constant 0 : i32
    %c0_i32_1 = arith.constant 0 : i32
    return %c0_i32, %c0_i32_0 : i32, i32
  }
  func.func @transform_14(%arg0: i32) -> (i32, i32) {
    %c0_i32 = arith.constant 0 : i32
    %c0_i32_0 = arith.constant 0 : i32
    %c0_i32_1 = arith.constant 0 : i32
    return %c0_i32, %c0_i32_0 : i32, i32
  }
  func.func @transform_15(%arg0: i32) -> (i32, i32) {
    %c0_i32 = arith.constant 0 : i32
    %c0_i32_0 = arith.constant 0 : i32
    %c0_i32_1 = arith.constant 0 : i32
    return %c0_i32, %c0_i32_0 : i32, i32
  }
  func.func @transform_16(%arg0: i32) -> (i32, i32) {
    %c0_i32 = arith.constant 0 : i32
    %c0_i32_0 = arith.constant 0 : i32
    %c0_i32_1 = arith.constant 0 : i32
    return %c0_i32, %c0_i32_0 : i32, i32
  }
  func.func @transform_17(%arg0: i32) -> (i32, i32) {
    %c0_i32 = arith.constant 0 : i32
    %c0_i32_0 = arith.constant 0 : i32
    %c0_i32_1 = arith.constant 0 : i32
    return %c0_i32, %c0_i32_0 : i32, i32
  }
  func.func @transform_18(%arg0: i32) -> (i32, i32) {
    %c0_i32 = arith.constant 0 : i32
    %c0_i32_0 = arith.constant 0 : i32
    %c0_i32_1 = arith.constant 0 : i32
    return %c0_i32, %c0_i32_0 : i32, i32
  }
  func.func @transform_19(%arg0: i32) -> (i32, i32) {
    %c0_i32 = arith.constant 0 : i32
    %c0_i32_0 = arith.constant 0 : i32
    %c0_i32_1 = arith.constant 0 : i32
    return %c0_i32, %c0_i32_0 : i32, i32
  }
  func.func @transform_20(%arg0: i32) -> (i32, i32) {
    %c0_i32 = arith.constant 0 : i32
    %c0_i32_0 = arith.constant 0 : i32
    %c0_i32_1 = arith.constant 0 : i32
    return %c0_i32, %c0_i32_0 : i32, i32
  }
  func.func @transform_21(%arg0: i32) -> (i32, i32) {
    %c0_i32 = arith.constant 0 : i32
    %c0_i32_0 = arith.constant 0 : i32
    %c0_i32_1 = arith.constant 0 : i32
    return %c0_i32, %c0_i32_0 : i32, i32
  }
  func.func @transform_22(%arg0: i32) -> (i32, i32) {
    %c0_i32 = arith.constant 0 : i32
    %c0_i32_0 = arith.constant 0 : i32
    %c0_i32_1 = arith.constant 0 : i32
    return %c0_i32, %c0_i32_0 : i32, i32
  }
  func.func @transform_23(%arg0: i32) -> (i32, i32) {
    %c0_i32 = arith.constant 0 : i32
    %c0_i32_0 = arith.constant 0 : i32
    %c0_i32_1 = arith.constant 0 : i32
    return %c0_i32, %c0_i32_0 : i32, i32
  }
  func.func @transform_24(%arg0: i32) -> (i32, i32) {
    %c0_i32 = arith.constant 0 : i32
    %c0_i32_0 = arith.constant 0 : i32
    %c0_i32_1 = arith.constant 0 : i32
    return %c0_i32, %c0_i32_0 : i32, i32
  }
  func.func @transform_25(%arg0: i32) -> (i32, i32) {
    %c0_i32 = arith.constant 0 : i32
    %c0_i32_0 = arith.constant 0 : i32
    %c0_i32_1 = arith.constant 0 : i32
    return %c0_i32, %c0_i32_0 : i32, i32
  }
  func.func @transform_26(%arg0: i32) -> (i32, i32) {
    %c0_i32 = arith.constant 0 : i32
    %c0_i32_0 = arith.constant 0 : i32
    %c0_i32_1 = arith.constant 0 : i32
    return %c0_i32, %c0_i32_0 : i32, i32
  }
  func.func @transform_27(%arg0: i32) -> (i32, i32) {
    %c0_i32 = arith.constant 0 : i32
    %c0_i32_0 = arith.constant 0 : i32
    %c0_i32_1 = arith.constant 0 : i32
    return %c0_i32, %c0_i32_0 : i32, i32
  }
  func.func @transform_28(%arg0: i32) -> (i32, i32, i32) {
    %c0_i32 = arith.constant 0 : i32
    %c0_i32_0 = arith.constant 0 : i32
    %c0_i32_1 = arith.constant 0 : i32
    return %arg0, %c0_i32, %c0_i32_0 : i32, i32, i32
  }
}

</mosaic_0001>

<llo_original>
// kernel: encoder_forward.1
$region0: #{encoder_forward.1}
  #allocation0 [shape = 'u32[]', space=smem, size = 0x4, offset = 0x4, fixed_abs, tag = 'smem constant byte address 0x4 - core index']
  #allocation1 [shape = 'u32[144,128]{1,0:T(1,128)}', space=vmem, size = 0x12000, scoped, tag = 'internal scratch']
  #allocation2 [shape = 'f32[64,128]{1,0:T(8,128)}', space=vmem, size = 0x8000, scoped, tag = 'scratch operand']
  %s0 = inlined_call_operand.hbm [shape: f32[1,64,32], index: 0, kind: input, shape index: {}]
  %s1 = inlined_call_operand.hbm [shape: bf16[32,384], index: 1, kind: input, shape index: {}]
  %s2 = inlined_call_operand.hbm [shape: f32[1,128], index: 2, kind: input, shape index: {}]
  %s3 = inlined_call_operand.hbm [shape: bf16[128,384], index: 3, kind: input, shape index: {}]
  %s4 = inlined_call_operand.hbm [shape: f32[1,128], index: 4, kind: input, shape index: {}]
  %s5 = inlined_call_operand.hbm [shape: bf16[64,384], index: 5, kind: input, shape index: {}]
  %s6 = inlined_call_operand.hbm [shape: f32[1,128], index: 6, kind: input, shape index: {}]
  %s7 = inlined_call_operand.hbm [shape: bf16[128,384], index: 7, kind: input, shape index: {}]
  %s8 = inlined_call_operand.hbm [shape: f32[1,128], index: 8, kind: input, shape index: {}]
  %s9 = inlined_call_operand.hbm [shape: bf16[64,384], index: 9, kind: input, shape index: {}]
  %s10 = inlined_call_operand.hbm [shape: f32[1,128], index: 10, kind: input, shape index: {}]
  %s11 = inlined_call_operand.hbm [shape: bf16[128,384], index: 11, kind: input, shape index: {}]
  %s12 = inlined_call_operand.hbm [shape: f32[1,128], index: 12, kind: input, shape index: {}]
  %s13 = inlined_call_operand.hbm [shape: bf16[64,384], index: 13, kind: input, shape index: {}]
  %s14 = inlined_call_operand.hbm [shape: f32[1,128], index: 14, kind: input, shape index: {}]
  %s15 = inlined_call_operand.hbm [shape: bf16[128,384], index: 15, kind: input, shape index: {}]
  %s16 = inlined_call_operand.hbm [shape: f32[1,128], index: 16, kind: input, shape index: {}]
  %s17 = inlined_call_operand.hbm [shape: f32[64,1], index: 17, kind: input, shape index: {}]
  %s18 = inlined_call_operand.hbm [shape: f32[64,1], index: 18, kind: input, shape index: {}]
  %s19 = inlined_call_operand.hbm [shape: f32[32,1], index: 19, kind: input, shape index: {}]
  %s20 = inlined_call_operand.vmem [shape: f32[32,1], index: 20, kind: input, shape index: {}]
  %s21 = inlined_call_operand.hbm [shape: f32[16,1], index: 21, kind: input, shape index: {}]
  %s22 = inlined_call_operand.hbm [shape: f32[16,1], index: 22, kind: input, shape index: {}]
  %s23 = inlined_call_operand.hbm [shape: f32[8,1], index: 23, kind: input, shape index: {}]
  %s24 = inlined_call_operand.vmem [shape: f32[8,1], index: 24, kind: input, shape index: {}]
  %s25 = inlined_call_operand.hbm [shape: bf16[128,64], index: 25, kind: input, shape index: {}]
  %s26 = inlined_call_operand.hbm [shape: bf16[128,64], index: 26, kind: input, shape index: {}]
  %s27 = inlined_call_operand.hbm [shape: bf16[128,64], index: 27, kind: input, shape index: {}]
  %s28 = inlined_call_operand.vmem [shape: f32[1,8,128], index: 28, kind: output, shape index: {}]
  %s29 = sld [smem:[#allocation0]]
  $region226: #{encoder_forward.1} parent=0
    _
  %s31 = ssub.s32 1, %s29
  %s32 = scalar_select 0, %s31, %s29
  $region1: #{encoder_forward.1} parent=0
    #allocation3 [shape = 'u8[32768]{0}', space=vmem, size = 0x8000, scoped, tag = 'input window, operand 0, single buffered']
    #allocation4 [shape = 's32[1]{0}', space=sflag, size = 0x4, scoped, tag = 'scoped memory for encoder_forward.1']
    #allocation5 [shape = 'u8[24576]{0}', space=vmem, size = 0x6000, scoped, tag = 'input window, operand 1, single buffered']
    #allocation6 [shape = 's32[1]{0}', space=sflag, size = 0x4, scoped, tag = 'scoped memory for encoder_forward.1']
    #allocation7 [shape = 'u8[512]{0}', space=vmem, size = 0x400, scoped, tag = 'input window, operand 2, single buffered']
    #allocation8 [shape = 'u8[98304]{0}', space=vmem, size = 0x18000, scoped, tag = 'input window, operand 3, single buffered']
    #allocation9 [shape = 's32[1]{0}', space=sflag, size = 0x4, scoped, tag = 'scoped memory for encoder_forward.1']
    #allocation10 [shape = 'u8[512]{0}', space=vmem, size = 0x400, scoped, tag = 'input window, operand 4, single buffered']
    #allocation11 [shape = 'u8[49152]{0}', space=vmem, size = 0xc000, scoped, tag = 'input window, operand 5, single buffered']
    #allocation12 [shape = 's32[1]{0}', space=sflag, size = 0x4, scoped, tag = 'scoped memory for encoder_forward.1']
    #allocation13 [shape = 'u8[512]{0}', space=vmem, size = 0x400, scoped, tag = 'input window, operand 6, single buffered']
    #allocation14 [shape = 'u8[98304]{0}', space=vmem, size = 0x18000, scoped, tag = 'input window, operand 7, single buffered']
    #allocation15 [shape = 's32[1]{0}', space=sflag, size = 0x4, scoped, tag = 'scoped memory for encoder_forward.1']
    #allocation16 [shape = 'u8[512]{0}', space=vmem, size = 0x400, scoped, tag = 'input window, operand 8, single buffered']
    #allocation17 [shape = 'u8[49152]{0}', space=vmem, size = 0xc000, scoped, tag = 'input window, operand 9, single buffered']
    #allocation18 [shape = 's32[1]{0}', space=sflag, size = 0x4, scoped, tag = 'scoped memory for encoder_forward.1']
    #allocation19 [shape = 'u8[512]{0}', space=vmem, size = 0x400, scoped, tag = 'input window, operand 10, single buffered']
    #allocation20 [shape = 'u8[98304]{0}', space=vmem, size = 0x18000, scoped, tag = 'input window, operand 11, single buffered']
    #allocation21 [shape = 's32[1]{0}', space=sflag, size = 0x4, scoped, tag = 'scoped memory for encoder_forward.1']
    #allocation22 [shape = 'u8[512]{0}', space=vmem, size = 0x400, scoped, tag = 'input window, operand 12, single buffered']
    #allocation23 [shape = 'u8[49152]{0}', space=vmem, size = 0xc000, scoped, tag = 'input window, operand 13, single buffered']
    #allocation24 [shape = 's32[1]{0}', space=sflag, size = 0x4, scoped, tag = 'scoped memory for encoder_forward.1']
    #allocation25 [shape = 'u8[512]{0}', space=vmem, size = 0x400, scoped, tag = 'input window, operand 14, single buffered']
    #allocation26 [shape = 'u8[98304]{0}', space=vmem, size = 0x18000, scoped, tag = 'input window, operand 15, single buffered']
    #allocation27 [shape = 's32[1]{0}', space=sflag, size = 0x4, scoped, tag = 'scoped memory for encoder_forward.1']
    #allocation28 [shape = 'u8[512]{0}', space=vmem, size = 0x400, scoped, tag = 'input window, operand 16, single buffered']
    #allocation29 [shape = 'u8[32768]{0}', space=vmem, size = 0x8000, scoped, tag = 'input window, operand 17, single buffered']
    #allocation30 [shape = 's32[1]{0}', space=sflag, size = 0x4, scoped, tag = 'scoped memory for encoder_forward.1']
    #allocation31 [shape = 'u8[32768]{0}', space=vmem, size = 0x8000, scoped, tag = 'input window, operand 18, single buffered']
    #allocation32 [shape = 'u8[16384]{0}', space=vmem, size = 0x4000, scoped, tag = 'input window, operand 19, single buffered']
    #allocation33 [shape = 's32[1]{0}', space=sflag, size = 0x4, scoped, tag = 'scoped memory for encoder_forward.1']
    #allocation34 [shape = 'u8[8192]{0}', space=vmem, size = 0x2000, scoped, tag = 'input window, operand 21, single buffered']
    #allocation35 [shape = 'u8[8192]{0}', space=vmem, size = 0x2000, scoped, tag = 'input window, operand 22, single buffered']
    #allocation36 [shape = 's32[1]{0}', space=sflag, size = 0x4, scoped, tag = 'scoped memory for encoder_forward.1']
    #allocation37 [shape = 'u8[4096]{0}', space=vmem, size = 0x1000, scoped, tag = 'input window, operand 23, single buffered']
    #allocation38 [shape = 'u8[32768]{0}', space=vmem, size = 0x8000, scoped, tag = 'input window, operand 25, single buffered']
    #allocation39 [shape = 's32[1]{0}', space=sflag, size = 0x4, scoped, tag = 'scoped memory for encoder_forward.1']
    #allocation40 [shape = 'u8[32768]{0}', space=vmem, size = 0x8000, scoped, tag = 'input window, operand 26, single buffered']
    #allocation41 [shape = 'u8[32768]{0}', space=vmem, size = 0x8000, scoped, tag = 'input window, operand 27, single buffered']
    #allocation42 [shape = 's32[1]{0}', space=sflag, size = 0x4, scoped, tag = 'scoped memory for encoder_forward.1']
    %33 = vsyncpa [#allocation4], 0
    %34 = vsyncpa [#allocation6], 0
    %35 = vsyncpa [#allocation9], 0
    %36 = vsyncpa [#allocation12], 0
    %37 = vsyncpa [#allocation15], 0
    %38 = vsyncpa [#allocation18], 0
    %39 = vsyncpa [#allocation21], 0
    %40 = vsyncpa [#allocation24], 0
    %41 = vsyncpa [#allocation27], 0
    %42 = vsyncpa [#allocation30], 0
    %43 = vsyncpa [#allocation33], 0
    %44 = vsyncpa [#allocation36], 0
    %45 = vsyncpa [#allocation39], 0
    %46 = vsyncpa [#allocation42], 0
    // Predicated region
    $region2: #{encoder_forward.1} parent=1 // pred_check
      _
    $region3: #{encoder_forward.1} parent=1 // pred_check_branch
      %48 = sbr.rel (0) target = $region5
    $region4: #{encoder_forward.1} parent=1 // pred_region
      %s50 = ssub.s32 1024, 1024
      %51 = vsyncadd [#allocation4], %s50
      %s52 = sshll.u32 [#allocation3], 4
      %s53 = int_to_ptr.vmem [resolvable:$true] %s52
      %58 = dma.hbm_to_vmem [thread:$0]  %s0, 1024, %s53, [#allocation4], 128, 128, 8
    $region5: #{encoder_forward.1} parent=1 // pred_fallthru
      _
    // Predicated region
    $region6: #{encoder_forward.1} parent=1 // pred_check
      _
    $region7: #{encoder_forward.1} parent=1 // pred_check_branch
      %60 = sbr.rel (0) target = $region9
    $region8: #{encoder_forward.1} parent=1 // pred_region
      %s62 = ssub.s32 768, 768
      %63 = vsyncadd [#allocation6], %s62
      %s64 = sshll.u32 [#allocation5], 4
      %s65 = int_to_ptr.vmem [resolvable:$true] %s64
      %70 = dma.hbm_to_vmem [thread:$0]  %s1, 768, %s65, [#allocation6], 192, 192, 12
    $region9: #{encoder_forward.1} parent=1 // pred_fallthru
      _
    // Predicated region
    $region10: #{encoder_forward.1} parent=1 // pred_check
      _
    $region11: #{encoder_forward.1} parent=1 // pred_check_branch
      %72 = sbr.rel (0) target = $region13
    $region12: #{encoder_forward.1} parent=1 // pred_region
      %s74 = ssub.s32 16, 16
      %75 = vsyncadd [#allocation6], %s74
      %s77 = sshll.u32 [#allocation7], 4
      %s78 = int_to_ptr.vmem [resolvable:$true] %s77
      %80 = dma.hbm_to_vmem [thread:$0]  %s2, 16, %s78, [#allocation6]
    $region13: #{encoder_forward.1} parent=1 // pred_fallthru
      _
    // Predicated region
    $region14: #{encoder_forward.1} parent=1 // pred_check
      _
    $region15: #{encoder_forward.1} parent=1 // pred_check_branch
      %82 = sbr.rel (0) target = $region17
    $region16: #{encoder_forward.1} parent=1 // pred_region
      %s84 = ssub.s32 3072, 3072
      %85 = vsyncadd [#allocation9], %s84
      %s86 = sshll.u32 [#allocation8], 4
      %s87 = int_to_ptr.vmem [resolvable:$true] %s86
      %92 = dma.hbm_to_vmem [thread:$0]  %s3, 3072, %s87, [#allocation9], 192, 192, 12
    $region17: #{encoder_forward.1} parent=1 // pred_fallthru
      _
    // Predicated region
    $region18: #{encoder_forward.1} parent=1 // pred_check
      _
    $region19: #{encoder_forward.1} parent=1 // pred_check_branch
      %94 = sbr.rel (0) target = $region21
    $region20: #{encoder_forward.1} parent=1 // pred_region
      %s96 = ssub.s32 16, 16
      %97 = vsyncadd [#allocation9], %s96
      %s99 = sshll.u32 [#allocation10], 4
      %s100 = int_to_ptr.vmem [resolvable:$true] %s99
      %102 = dma.hbm_to_vmem [thread:$0]  %s4, 16, %s100, [#allocation9]
    $region21: #{encoder_forward.1} parent=1 // pred_fallthru
      _
    // Predicated region
    $region22: #{encoder_forward.1} parent=1 // pred_check
      _
    $region23: #{encoder_forward.1} parent=1 // pred_check_branch
      %104 = sbr.rel (0) target = $region25
    $region24: #{encoder_forward.1} parent=1 // pred_region
      %s106 = ssub.s32 1536, 1536
      %107 = vsyncadd [#allocation12], %s106
      %s108 = sshll.u32 [#allocation11], 4
      %s109 = int_to_ptr.vmem [resolvable:$true] %s108
      %114 = dma.hbm_to_vmem [thread:$0]  %s5, 1536, %s109, [#allocation12], 192, 192, 12
    $region25: #{encoder_forward.1} parent=1 // pred_fallthru
      _
    // Predicated region
    $region26: #{encoder_forward.1} parent=1 // pred_check
      _
    $region27: #{encoder_forward.1} parent=1 // pred_check_branch
      %116 = sbr.rel (0) target = $region29
    $region28: #{encoder_forward.1} parent=1 // pred_region
      %s118 = ssub.s32 16, 16
      %119 = vsyncadd [#allocation12], %s118
      %s121 = sshll.u32 [#allocation13], 4
      %s122 = int_to_ptr.vmem [resolvable:$true] %s121
      %124 = dma.hbm_to_vmem [thread:$0]  %s6, 16, %s122, [#allocation12]
    $region29: #{encoder_forward.1} parent=1 // pred_fallthru
      _
    // Predicated region
    $region30: #{encoder_forward.1} parent=1 // pred_check
      _
    $region31: #{encoder_forward.1} parent=1 // pred_check_branch
      %126 = sbr.rel (0) target = $region33
    $region32: #{encoder_forward.1} parent=1 // pred_region
      %s128 = ssub.s32 3072, 3072
      %129 = vsyncadd [#allocation15], %s128
      %s130 = sshll.u32 [#allocation14], 4
      %s131 = int_to_ptr.vmem [resolvable:$true] %s130
      %136 = dma.hbm_to_vmem [thread:$0]  %s7, 3072, %s131, [#allocation15], 192, 192, 12
    $region33: #{encoder_forward.1} parent=1 // pred_fallthru
      _
    // Predicated region
    $region34: #{encoder_forward.1} parent=1 // pred_check
      _
    $region35: #{encoder_forward.1} parent=1 // pred_check_branch
      %138 = sbr.rel (0) target = $region37
    $region36: #{encoder_forward.1} parent=1 // pred_region
      %s140 = ssub.s32 16, 16
      %141 = vsyncadd [#allocation15], %s140
      %s143 = sshll.u32 [#allocation16], 4
      %s144 = int_to_ptr.vmem [resolvable:$true] %s143
      %146 = dma.hbm_to_vmem [thread:$0]  %s8, 16, %s144, [#allocation15]
    $region37: #{encoder_forward.1} parent=1 // pred_fallthru
      _
    // Predicated region
    $region38: #{encoder_forward.1} parent=1 // pred_check
      _
    $region39: #{encoder_forward.1} parent=1 // pred_check_branch
      %148 = sbr.rel (0) target = $region41
    $region40: #{encoder_forward.1} parent=1 // pred_region
      %s150 = ssub.s32 1536, 1536
      %151 = vsyncadd [#allocation18], %s150
      %s152 = sshll.u32 [#allocation17], 4
      %s153 = int_to_ptr.vmem [resolvable:$true] %s152
      %158 = dma.hbm_to_vmem [thread:$0]  %s9, 1536, %s153, [#allocation18], 192, 192, 12
    $region41: #{encoder_forward.1} parent=1 // pred_fallthru
      _
    // Predicated region
    $region42: #{encoder_forward.1} parent=1 // pred_check
      _
    $region43: #{encoder_forward.1} parent=1 // pred_check_branch
      %160 = sbr.rel (0) target = $region45
    $region44: #{encoder_forward.1} parent=1 // pred_region
      %s162 = ssub.s32 16, 16
      %163 = vsyncadd [#allocation18], %s162
      %s165 = sshll.u32 [#allocation19], 4
      %s166 = int_to_ptr.vmem [resolvable:$true] %s165
      %168 = dma.hbm_to_vmem [thread:$0]  %s10, 16, %s166, [#allocation18]
    $region45: #{encoder_forward.1} parent=1 // pred_fallthru
      _
    // Predicated region
    $region46: #{encoder_forward.1} parent=1 // pred_check
      _
    $region47: #{encoder_forward.1} parent=1 // pred_check_branch
      %170 = sbr.rel (0) target = $region49
    $region48: #{encoder_forward.1} parent=1 // pred_region
      %s172 = ssub.s32 3072, 3072
      %173 = vsyncadd [#allocation21], %s172
      %s174 = sshll.u32 [#allocation20], 4
      %s175 = int_to_ptr.vmem [resolvable:$true] %s174
      %180 = dma.hbm_to_vmem [thread:$0]  %s11, 3072, %s175, [#allocation21], 192, 192, 12
    $region49: #{encoder_forward.1} parent=1 // pred_fallthru
      _
    // Predicated region
    $region50: #{encoder_forward.1} parent=1 // pred_check
      _
    $region51: #{encoder_forward.1} parent=1 // pred_check_branch
      %182 = sbr.rel (0) target = $region53
    $region52: #{encoder_forward.1} parent=1 // pred_region
      %s184 = ssub.s32 16, 16
      %185 = vsyncadd [#allocation21], %s184
      %s187 = sshll.u32 [#allocation22], 4
      %s188 = int_to_ptr.vmem [resolvable:$true] %s187
      %190 = dma.hbm_to_vmem [thread:$0]  %s12, 16, %s188, [#allocation21]
    $region53: #{encoder_forward.1} parent=1 // pred_fallthru
      _
    // Predicated region
    $region54: #{encoder_forward.1} parent=1 // pred_check
      _
    $region55: #{encoder_forward.1} parent=1 // pred_check_branch
      %192 = sbr.rel (0) target = $region57
    $region56: #{encoder_forward.1} parent=1 // pred_region
      %s194 = ssub.s32 1536, 1536
      %195 = vsyncadd [#allocation24], %s194
      %s196 = sshll.u32 [#allocation23], 4
      %s197 = int_to_ptr.vmem [resolvable:$true] %s196
      %202 = dma.hbm_to_vmem [thread:$0]  %s13, 1536, %s197, [#allocation24], 192, 192, 12
    $region57: #{encoder_forward.1} parent=1 // pred_fallthru
      _
    // Predicated region
    $region58: #{encoder_forward.1} parent=1 // pred_check
      _
    $region59: #{encoder_forward.1} parent=1 // pred_check_branch
      %204 = sbr.rel (0) target = $region61
    $region60: #{encoder_forward.1} parent=1 // pred_region
      %s206 = ssub.s32 16, 16
      %207 = vsyncadd [#allocation24], %s206
      %s209 = sshll.u32 [#allocation25], 4
      %s210 = int_to_ptr.vmem [resolvable:$true] %s209
      %212 = dma.hbm_to_vmem [thread:$0]  %s14, 16, %s210, [#allocation24]
    $region61: #{encoder_forward.1} parent=1 // pred_fallthru
      _
    // Predicated region
    $region62: #{encoder_forward.1} parent=1 // pred_check
      _
    $region63: #{encoder_forward.1} parent=1 // pred_check_branch
      %214 = sbr.rel (0) target = $region65
    $region64: #{encoder_forward.1} parent=1 // pred_region
      %s216 = ssub.s32 3072, 3072
      %217 = vsyncadd [#allocation27], %s216
      %s218 = sshll.u32 [#allocation26], 4
      %s219 = int_to_ptr.vmem [resolvable:$true] %s218
      %224 = dma.hbm_to_vmem [thread:$0]  %s15, 3072, %s219, [#allocation27], 192, 192, 12
    $region65: #{encoder_forward.1} parent=1 // pred_fallthru
      _
    // Predicated region
    $region66: #{encoder_forward.1} parent=1 // pred_check
      _
    $region67: #{encoder_forward.1} parent=1 // pred_check_branch
      %226 = sbr.rel (0) target = $region69
    $region68: #{encoder_forward.1} parent=1 // pred_region
      %s228 = ssub.s32 16, 16
      %229 = vsyncadd [#allocation27], %s228
      %s231 = sshll.u32 [#allocation28], 4
      %s232 = int_to_ptr.vmem [resolvable:$true] %s231
      %234 = dma.hbm_to_vmem [thread:$0]  %s16, 16, %s232, [#allocation27]
    $region69: #{encoder_forward.1} parent=1 // pred_fallthru
      _
    // Predicated region
    $region70: #{encoder_forward.1} parent=1 // pred_check
      _
    $region71: #{encoder_forward.1} parent=1 // pred_check_branch
      %236 = sbr.rel (0) target = $region73
    $region72: #{encoder_forward.1} parent=1 // pred_region
      %s238 = ssub.s32 1024, 1024
      %239 = vsyncadd [#allocation30], %s238
      %s240 = sshll.u32 [#allocation29], 4
      %s241 = int_to_ptr.vmem [resolvable:$true] %s240
      %246 = dma.hbm_to_vmem [thread:$0]  %s17, 1024, %s241, [#allocation30], 128, 128, 8
    $region73: #{encoder_forward.1} parent=1 // pred_fallthru
      _
    // Predicated region
    $region74: #{encoder_forward.1} parent=1 // pred_check
      _
    $region75: #{encoder_forward.1} parent=1 // pred_check_branch
      %248 = sbr.rel (0) target = $region77
    $region76: #{encoder_forward.1} parent=1 // pred_region
      %s250 = ssub.s32 1024, 1024
      %251 = vsyncadd [#allocation30], %s250
      %s252 = sshll.u32 [#allocation31], 4
      %s253 = int_to_ptr.vmem [resolvable:$true] %s252
      %258 = dma.hbm_to_vmem [thread:$0]  %s18, 1024, %s253, [#allocation30], 128, 128, 8
    $region77: #{encoder_forward.1} parent=1 // pred_fallthru
      _
    // Predicated region
    $region78: #{encoder_forward.1} parent=1 // pred_check
      _
    $region79: #{encoder_forward.1} parent=1 // pred_check_branch
      %260 = sbr.rel (0) target = $region81
    $region80: #{encoder_forward.1} parent=1 // pred_region
      %s262 = ssub.s32 512, 512
      %263 = vsyncadd [#allocation33], %s262
      %s264 = sshll.u32 [#allocation32], 4
      %s265 = int_to_ptr.vmem [resolvable:$true] %s264
      %270 = dma.hbm_to_vmem [thread:$0]  %s19, 512, %s265, [#allocation33], 128, 128, 8
    $region81: #{encoder_forward.1} parent=1 // pred_fallthru
      _
    // Predicated region
    $region82: #{encoder_forward.1} parent=1 // pred_check
      _
    $region83: #{encoder_forward.1} parent=1 // pred_check_branch
      %272 = sbr.rel (0) target = $region85
    $region84: #{encoder_forward.1} parent=1 // pred_region
      _
    $region85: #{encoder_forward.1} parent=1 // pred_fallthru
      _
    // Predicated region
    $region86: #{encoder_forward.1} parent=1 // pred_check
      _
    $region87: #{encoder_forward.1} parent=1 // pred_check_branch
      %274 = sbr.rel (0) target = $region89
    $region88: #{encoder_forward.1} parent=1 // pred_region
      %s276 = ssub.s32 256, 256
      %277 = vsyncadd [#allocation33], %s276
      %s278 = sshll.u32 [#allocation34], 4
      %s279 = int_to_ptr.vmem [resolvable:$true] %s278
      %284 = dma.hbm_to_vmem [thread:$0]  %s21, 256, %s279, [#allocation33], 128, 128, 8
    $region89: #{encoder_forward.1} parent=1 // pred_fallthru
      _
    // Predicated region
    $region90: #{encoder_forward.1} parent=1 // pred_check
      _
    $region91: #{encoder_forward.1} parent=1 // pred_check_branch
      %286 = sbr.rel (0) target = $region93
    $region92: #{encoder_forward.1} parent=1 // pred_region
      %s288 = ssub.s32 256, 256
      %289 = vsyncadd [#allocation36], %s288
      %s290 = sshll.u32 [#allocation35], 4
      %s291 = int_to_ptr.vmem [resolvable:$true] %s290
      %296 = dma.hbm_to_vmem [thread:$0]  %s22, 256, %s291, [#allocation36], 128, 128, 8
    $region93: #{encoder_forward.1} parent=1 // pred_fallthru
      _
    // Predicated region
    $region94: #{encoder_forward.1} parent=1 // pred_check
      _
    $region95: #{encoder_forward.1} parent=1 // pred_check_branch
      %298 = sbr.rel (0) target = $region97
    $region96: #{encoder_forward.1} parent=1 // pred_region
      %s300 = ssub.s32 128, 128
      %301 = vsyncadd [#allocation36], %s300
      %s303 = sshll.u32 [#allocation37], 4
      %s304 = int_to_ptr.vmem [resolvable:$true] %s303
      %306 = dma.hbm_to_vmem [thread:$0]  %s23, 128, %s304, [#allocation36]
    $region97: #{encoder_forward.1} parent=1 // pred_fallthru
      _
    // Predicated region
    $region98: #{encoder_forward.1} parent=1 // pred_check
      _
    $region99: #{encoder_forward.1} parent=1 // pred_check_branch
      %308 = sbr.rel (0) target = $region101
    $region100: #{encoder_forward.1} parent=1 // pred_region
      _
    $region101: #{encoder_forward.1} parent=1 // pred_fallthru
      _
    // Predicated region
    $region102: #{encoder_forward.1} parent=1 // pred_check
      _
    $region103: #{encoder_forward.1} parent=1 // pred_check_branch
      %310 = sbr.rel (0) target = $region105
    $region104: #{encoder_forward.1} parent=1 // pred_region
      %s312 = ssub.s32 1024, 1024
      %313 = vsyncadd [#allocation39], %s312
      %s314 = sshll.u32 [#allocation38], 4
      %s315 = int_to_ptr.vmem [resolvable:$true] %s314
      %320 = dma.hbm_to_vmem [thread:$0]  %s25, 1024, %s315, [#allocation39], 64, 64, 4
    $region105: #{encoder_forward.1} parent=1 // pred_fallthru
      _
    // Predicated region
    $region106: #{encoder_forward.1} parent=1 // pred_check
      _
    $region107: #{encoder_forward.1} parent=1 // pred_check_branch
      %322 = sbr.rel (0) target = $region109
    $region108: #{encoder_forward.1} parent=1 // pred_region
      %s324 = ssub.s32 1024, 1024
      %325 = vsyncadd [#allocation39], %s324
      %s326 = sshll.u32 [#allocation40], 4
      %s327 = int_to_ptr.vmem [resolvable:$true] %s326
      %332 = dma.hbm_to_vmem [thread:$0]  %s26, 1024, %s327, [#allocation39], 64, 64, 4
    $region109: #{encoder_forward.1} parent=1 // pred_fallthru
      _
    // Predicated region
    $region110: #{encoder_forward.1} parent=1 // pred_check
      _
    $region111: #{encoder_forward.1} parent=1 // pred_check_branch
      %334 = sbr.rel (0) target = $region113
    $region112: #{encoder_forward.1} parent=1 // pred_region
      %s336 = ssub.s32 1024, 1024
      %337 = vsyncadd [#allocation42], %s336
      %s338 = sshll.u32 [#allocation41], 4
      %s339 = int_to_ptr.vmem [resolvable:$true] %s338
      %344 = dma.hbm_to_vmem [thread:$0]  %s27, 1024, %s339, [#allocation42], 64, 64, 4
    $region113: #{encoder_forward.1} parent=1 // pred_fallthru
      _
    // Predicated region
    $region114: #{encoder_forward.1} parent=1 // pred_check
      _
    $region115: #{encoder_forward.1} parent=1 // pred_check_branch
      %346 = sbr.rel (0) target = $region117
    $region116: #{encoder_forward.1} parent=1 // pred_region
      %347 = dma.done [#allocation4], 1024
    $region117: #{encoder_forward.1} parent=1 // pred_fallthru
      _
    // Predicated region
    $region118: #{encoder_forward.1} parent=1 // pred_check
      _
    $region119: #{encoder_forward.1} parent=1 // pred_check_branch
      %349 = sbr.rel (0) target = $region121
    $region120: #{encoder_forward.1} parent=1 // pred_region
      %350 = dma.done [#allocation6], 768
    $region121: #{encoder_forward.1} parent=1 // pred_fallthru
      _
    // Predicated region
    $region122: #{encoder_forward.1} parent=1 // pred_check
      _
    $region123: #{encoder_forward.1} parent=1 // pred_check_branch
      %352 = sbr.rel (0) target = $region125
    $region124: #{encoder_forward.1} parent=1 // pred_region
      %353 = dma.done [#allocation6], 16
    $region125: #{encoder_forward.1} parent=1 // pred_fallthru
      _
    // Predicated region
    $region126: #{encoder_forward.1} parent=1 // pred_check
      _
    $region127: #{encoder_forward.1} parent=1 // pred_check_branch
      %355 = sbr.rel (0) target = $region129
    $region128: #{encoder_forward.1} parent=1 // pred_region
      %356 = dma.done [#allocation9], 3072
    $region129: #{encoder_forward.1} parent=1 // pred_fallthru
      _
    // Predicated region
    $region130: #{encoder_forward.1} parent=1 // pred_check
      _
    $region131: #{encoder_forward.1} parent=1 // pred_check_branch
      %358 = sbr.rel (0) target = $region133
    $region132: #{encoder_forward.1} parent=1 // pred_region
      %359 = dma.done [#allocation9], 16
    $region133: #{encoder_forward.1} parent=1 // pred_fallthru
      _
    // Predicated region
    $region134: #{encoder_forward.1} parent=1 // pred_check
      _
    $region135: #{encoder_forward.1} parent=1 // pred_check_branch
      %361 = sbr.rel (0) target = $region137
    $region136: #{encoder_forward.1} parent=1 // pred_region
      %362 = dma.done [#allocation12], 1536
    $region137: #{encoder_forward.1} parent=1 // pred_fallthru
      _
    // Predicated region
    $region138: #{encoder_forward.1} parent=1 // pred_check
      _
    $region139: #{encoder_forward.1} parent=1 // pred_check_branch
      %364 = sbr.rel (0) target = $region141
    $region140: #{encoder_forward.1} parent=1 // pred_region
      %365 = dma.done [#allocation12], 16
    $region141: #{encoder_forward.1} parent=1 // pred_fallthru
      _
    // Predicated region
    $region142: #{encoder_forward.1} parent=1 // pred_check
      _
    $region143: #{encoder_forward.1} parent=1 // pred_check_branch
      %367 = sbr.rel (0) target = $region145
    $region144: #{encoder_forward.1} parent=1 // pred_region
      %368 = dma.done [#allocation15], 3072
    $region145: #{encoder_forward.1} parent=1 // pred_fallthru
      _
    // Predicated region
    $region146: #{encoder_forward.1} parent=1 // pred_check
      _
    $region147: #{encoder_forward.1} parent=1 // pred_check_branch
      %370 = sbr.rel (0) target = $region149
    $region148: #{encoder_forward.1} parent=1 // pred_region
      %371 = dma.done [#allocation15], 16
    $region149: #{encoder_forward.1} parent=1 // pred_fallthru
      _
    // Predicated region
    $region150: #{encoder_forward.1} parent=1 // pred_check
      _
    $region151: #{encoder_forward.1} parent=1 // pred_check_branch
      %373 = sbr.rel (0) target = $region153
    $region152: #{encoder_forward.1} parent=1 // pred_region
      %374 = dma.done [#allocation18], 1536
    $region153: #{encoder_forward.1} parent=1 // pred_fallthru
      _
    // Predicated region
    $region154: #{encoder_forward.1} parent=1 // pred_check
      _
    $region155: #{encoder_forward.1} parent=1 // pred_check_branch
      %376 = sbr.rel (0) target = $region157
    $region156: #{encoder_forward.1} parent=1 // pred_region
      %377 = dma.done [#allocation18], 16
    $region157: #{encoder_forward.1} parent=1 // pred_fallthru
      _
    // Predicated region
    $region158: #{encoder_forward.1} parent=1 // pred_check
      _
    $region159: #{encoder_forward.1} parent=1 // pred_check_branch
      %379 = sbr.rel (0) target = $region161
    $region160: #{encoder_forward.1} parent=1 // pred_region
      %380 = dma.done [#allocation21], 3072
    $region161: #{encoder_forward.1} parent=1 // pred_fallthru
      _
    // Predicated region
    $region162: #{encoder_forward.1} parent=1 // pred_check
      _
    $region163: #{encoder_forward.1} parent=1 // pred_check_branch
      %382 = sbr.rel (0) target = $region165
    $region164: #{encoder_forward.1} parent=1 // pred_region
      %383 = dma.done [#allocation21], 16
    $region165: #{encoder_forward.1} parent=1 // pred_fallthru
      _
    // Predicated region
    $region166: #{encoder_forward.1} parent=1 // pred_check
      _
    $region167: #{encoder_forward.1} parent=1 // pred_check_branch
      %385 = sbr.rel (0) target = $region169
    $region168: #{encoder_forward.1} parent=1 // pred_region
      %386 = dma.done [#allocation24], 1536
    $region169: #{encoder_forward.1} parent=1 // pred_fallthru
      _
    // Predicated region
    $region170: #{encoder_forward.1} parent=1 // pred_check
      _
    $region171: #{encoder_forward.1} parent=1 // pred_check_branch
      %388 = sbr.rel (0) target = $region173
    $region172: #{encoder_forward.1} parent=1 // pred_region
      %389 = dma.done [#allocation24], 16
    $region173: #{encoder_forward.1} parent=1 // pred_fallthru
      _
    // Predicated region
    $region174: #{encoder_forward.1} parent=1 // pred_check
      _
    $region175: #{encoder_forward.1} parent=1 // pred_check_branch
      %391 = sbr.rel (0) target = $region177
    $region176: #{encoder_forward.1} parent=1 // pred_region
      %392 = dma.done [#allocation27], 3072
    $region177: #{encoder_forward.1} parent=1 // pred_fallthru
      _
    // Predicated region
    $region178: #{encoder_forward.1} parent=1 // pred_check
      _
    $region179: #{encoder_forward.1} parent=1 // pred_check_branch
      %394 = sbr.rel (0) target = $region181
    $region180: #{encoder_forward.1} parent=1 // pred_region
      %395 = dma.done [#allocation27], 16
    $region181: #{encoder_forward.1} parent=1 // pred_fallthru
      _
    // Predicated region
    $region182: #{encoder_forward.1} parent=1 // pred_check
      _
    $region183: #{encoder_forward.1} parent=1 // pred_check_branch
      %397 = sbr.rel (0) target = $region185
    $region184: #{encoder_forward.1} parent=1 // pred_region
      %398 = dma.done [#allocation30], 1024
    $region185: #{encoder_forward.1} parent=1 // pred_fallthru
      _
    // Predicated region
    $region186: #{encoder_forward.1} parent=1 // pred_check
      _
    $region187: #{encoder_forward.1} parent=1 // pred_check_branch
      %400 = sbr.rel (0) target = $region189
    $region188: #{encoder_forward.1} parent=1 // pred_region
      %401 = dma.done [#allocation30], 1024
    $region189: #{encoder_forward.1} parent=1 // pred_fallthru
      _
    // Predicated region
    $region190: #{encoder_forward.1} parent=1 // pred_check
      _
    $region191: #{encoder_forward.1} parent=1 // pred_check_branch
      %403 = sbr.rel (0) target = $region193
    $region192: #{encoder_forward.1} parent=1 // pred_region
      %404 = dma.done [#allocation33], 512
    $region193: #{encoder_forward.1} parent=1 // pred_fallthru
      _
    // Predicated region
    $region194: #{encoder_forward.1} parent=1 // pred_check
      _
    $region195: #{encoder_forward.1} parent=1 // pred_check_branch
      %406 = sbr.rel (0) target = $region197
    $region196: #{encoder_forward.1} parent=1 // pred_region
      %407 = dma.done [#allocation33], 256
    $region197: #{encoder_forward.1} parent=1 // pred_fallthru
      _
    // Predicated region
    $region198: #{encoder_forward.1} parent=1 // pred_check
      _
    $region199: #{encoder_forward.1} parent=1 // pred_check_branch
      %409 = sbr.rel (0) target = $region201
    $region200: #{encoder_forward.1} parent=1 // pred_region
      %410 = dma.done [#allocation36], 256
    $region201: #{encoder_forward.1} parent=1 // pred_fallthru
      _
    // Predicated region
    $region202: #{encoder_forward.1} parent=1 // pred_check
      _
    $region203: #{encoder_forward.1} parent=1 // pred_check_branch
      %412 = sbr.rel (0) target = $region205
    $region204: #{encoder_forward.1} parent=1 // pred_region
      %413 = dma.done [#allocation36], 128
    $region205: #{encoder_forward.1} parent=1 // pred_fallthru
      _
    // Predicated region
    $region206: #{encoder_forward.1} parent=1 // pred_check
      _
    $region207: #{encoder_forward.1} parent=1 // pred_check_branch
      %415 = sbr.rel (0) target = $region209
    $region208: #{encoder_forward.1} parent=1 // pred_region
      %416 = dma.done [#allocation39], 1024
    $region209: #{encoder_forward.1} parent=1 // pred_fallthru
      _
    // Predicated region
    $region210: #{encoder_forward.1} parent=1 // pred_check
      _
    $region211: #{encoder_forward.1} parent=1 // pred_check_branch
      %418 = sbr.rel (0) target = $region213
    $region212: #{encoder_forward.1} parent=1 // pred_region
      %419 = dma.done [#allocation39], 1024
    $region213: #{encoder_forward.1} parent=1 // pred_fallthru
      _
    // Predicated region
    $region214: #{encoder_forward.1} parent=1 // pred_check
      _
    $region215: #{encoder_forward.1} parent=1 // pred_check_branch
      %421 = sbr.rel (0) target = $region217
    $region216: #{encoder_forward.1} parent=1 // pred_region
      %422 = dma.done [#allocation42], 1024
    $region217: #{encoder_forward.1} parent=1 // pred_fallthru
      _
    %v424 = vld [vmem:[#allocation3] sm:$0xff]
    %v425 = vld [vmem:[#allocation3 + $0x8] sm:$0xff]
    %v426 = vld [vmem:[#allocation3 + $0x10] sm:$0xff]
    %v427 = vld [vmem:[#allocation3 + $0x18] sm:$0xff]
    %v428 = vld [vmem:[#allocation3 + $0x20] sm:$0xff]
    %v429 = vld [vmem:[#allocation3 + $0x28] sm:$0xff]
    %v430 = vld [vmem:[#allocation3 + $0x30] sm:$0xff]
    %v431 = vld [vmem:[#allocation3 + $0x38] sm:$0xff]
    %v432 = vld [vmem:[#allocation5] sm:$0xff]
    %v433 = vld [vmem:[#allocation5 + $0x8] sm:$0xf]
    %v434 = vld [vmem:[#allocation5 + $0xc] sm:$0xff]
    %v435 = vld [vmem:[#allocation5 + $0x14] sm:$0xf]
    %v436 = vld [vmem:[#allocation5 + $0x18] sm:$0xff]
    %v437 = vld [vmem:[#allocation5 + $0x20] sm:$0xf]
    %v438 = vld [vmem:[#allocation5 + $0x24] sm:$0xff]
    %v439 = vld [vmem:[#allocation5 + $0x2c] sm:$0xf]
    %v440 = vld [vmem:[#allocation7] sm:$0x1]
    %v441 = vld [vmem:[#allocation29] sm:$0xff]
    %v442 = vld [vmem:[#allocation29 + $0x8] sm:$0xff]
    %v443 = vld [vmem:[#allocation29 + $0x10] sm:$0xff]
    %v444 = vld [vmem:[#allocation29 + $0x18] sm:$0xff]
    %v445 = vld [vmem:[#allocation29 + $0x20] sm:$0xff]
    %v446 = vld [vmem:[#allocation29 + $0x28] sm:$0xff]
    %v447 = vld [vmem:[#allocation29 + $0x30] sm:$0xff]
    %v448 = vld [vmem:[#allocation29 + $0x38] sm:$0xff]
    %v449 = vld [vmem:[#allocation31] sm:$0xff]
    %v450 = vld [vmem:[#allocation31 + $0x8] sm:$0xff]
    %v451 = vld [vmem:[#allocation31 + $0x10] sm:$0xff]
    %v452 = vld [vmem:[#allocation31 + $0x18] sm:$0xff]
    %v453 = vld [vmem:[#allocation31 + $0x20] sm:$0xff]
    %v454 = vld [vmem:[#allocation31 + $0x28] sm:$0xff]
    %v455 = vld [vmem:[#allocation31 + $0x30] sm:$0xff]
    %v456 = vld [vmem:[#allocation31 + $0x38] sm:$0xff]
    %v457 = vpack.c.bf16 %v425, %v424
    %v458 = vpack.c.bf16 %v427, %v426
    %v459 = vpack.c.bf16 %v429, %v428
    %v460 = vpack.c.bf16 %v431, %v430
    %v469 = vunpack.c.l.b16 %v432
    %v470 = vunpack.c.h.b16 %v432
    %v471 = vunpack.c.l.b16 %v433
    %v472 = vunpack.c.l.b16 %v434
    %v473 = vunpack.c.h.b16 %v434
    %v474 = vunpack.c.l.b16 %v435
    %v475 = vunpack.c.l.b16 %v436
    %v476 = vunpack.c.h.b16 %v436
    %v477 = vunpack.c.l.b16 %v437
    %v478 = vunpack.c.l.b16 %v438
    %v479 = vunpack.c.h.b16 %v438
    %v480 = vunpack.c.l.b16 %v439
    %v481 = vpack.c.b16 %v472, %v469
    %v482 = vpack.c.b16 %v473, %v470
    %v483 = vpack.c.b16 %v474, %v471
    %v484 = vpack.c.b16 %v478, %v475
    %v485 = vpack.c.b16 %v479, %v476
    %v486 = vpack.c.b16 %v480, %v477
    %vm493 = vcmask 261120
    %v495 = vsel %vm493, %v457, 0
    %v498 = vsel %vm493, %v458, 0
    %v501 = vsel %vm493, %v459, 0
    %v504 = vsel %vm493, %v460, 0
    %506 = vmatprep.subr.bf16.mxu0 0
    %507 = vmatpush1.bf16.msra.mxu0 0
    %508 = vmatprep.subr.bf16.mxu0 0
    %509 = vmatpush1.bf16.msra.mxu0 0
    %510 = vmatprep.subr.bf16.mxu0 0
    %511 = vmatpush1.bf16.msra.mxu0 0
    %512 = vmatprep.subr.bf16.mxu0 0
    %513 = vmatpush1.bf16.msra.mxu0 0
    %514 = vmatprep.subr.bf16.mxu0 0
    %515 = vmatpush1.bf16.msra.mxu0 0
    %516 = vmatprep.subr.bf16.mxu0 0
    %517 = vmatpush1.bf16.msra.mxu0 0
    %518 = vmatprep.subr.bf16.mxu0 %v485
    %519 = vmatpush1.bf16.msra.mxu0 %v484
    %520 = vmatprep.subr.bf16.mxu0 %v482
    %521 = vmatpush1.bf16.msra.mxu0 %v481
    %522 = vmatprep.subr.bf16.mxu0 0
    %523 = vmatpush2.bf16.msra.mxu0 0
    %524 = vmatprep.subr.bf16.mxu0 0
    %525 = vmatpush2.bf16.msra.mxu0 0
    %526 = vmatprep.subr.bf16.mxu0 0
    %527 = vmatpush2.bf16.msra.mxu0 0
    %528 = vmatprep.subr.bf16.mxu0 0
    %529 = vmatpush2.bf16.msra.mxu0 0
    %530 = vmatprep.subr.bf16.mxu0 0
    %531 = vmatpush2.bf16.msra.mxu0 0
    %532 = vmatprep.subr.bf16.mxu0 0
    %533 = vmatpush2.bf16.msra.mxu0 0
    %534 = vmatprep.subr.bf16.mxu0 0
    %535 = vmatpush2.bf16.msra.mxu0 0
    %536 = vmatprep.subr.bf16.mxu0 0
    %537 = vmatpush2.bf16.msra.mxu0 0
    %538 = vmatprep.mubr.bf16.mxu0 0
    %539 = vmatmul.mubr.bf16.gmra.mxu0 %v495
    %v540 = vpop.f32.mrf.mxu0
    %v541 = vadd.f32 0.0, %v540
    %v542 = vpop.f32.mrf.mxu0
    %v543 = vadd.f32 0.0, %v542
    %v544 = vpop.f32.mrf.mxu0
    %v545 = vadd.f32 0.0, %v544
    %v546 = vpop.f32.mrf.mxu0
    %v547 = vadd.f32 0.0, %v546
    %548 = vmatprep.mubr.bf16.mxu0 0
    %549 = vmatmul.mubr.bf16.gmra.mxu0 %v498
    %v550 = vpop.f32.mrf.mxu0
    %v551 = vadd.f32 0.0, %v550
    %v552 = vpop.f32.mrf.mxu0
    %v553 = vadd.f32 0.0, %v552
    %v554 = vpop.f32.mrf.mxu0
    %v555 = vadd.f32 0.0, %v554
    %v556 = vpop.f32.mrf.mxu0
    %v557 = vadd.f32 0.0, %v556
    %558 = vmatprep.mubr.bf16.mxu0 0
    %559 = vmatmul.mubr.bf16.gmra.mxu0 %v501
    %v560 = vpop.f32.mrf.mxu0
    %v561 = vadd.f32 0.0, %v560
    %v562 = vpop.f32.mrf.mxu0
    %v563 = vadd.f32 0.0, %v562
    %v564 = vpop.f32.mrf.mxu0
    %v565 = vadd.f32 0.0, %v564
    %v566 = vpop.f32.mrf.mxu0
    %v567 = vadd.f32 0.0, %v566
    %568 = vmatprep.mubr.bf16.mxu0 0
    %569 = vmatmul.mubr.bf16.gmra.mxu0 %v504
    %v570 = vpop.f32.mrf.mxu0
    %v571 = vadd.f32 0.0, %v570
    %v572 = vpop.f32.mrf.mxu0
    %v573 = vadd.f32 0.0, %v572
    %v574 = vpop.f32.mrf.mxu0
    %v575 = vadd.f32 0.0, %v574
    %v576 = vpop.f32.mrf.mxu0
    %v577 = vadd.f32 0.0, %v576
    %578 = vdwg.mxu0
    %579 = vmatprep.subr.bf16.mxu0 0
    %580 = vmatpush1.bf16.msra.mxu0 0
    %581 = vmatprep.subr.bf16.mxu0 0
    %582 = vmatpush1.bf16.msra.mxu0 0
    %583 = vmatprep.subr.bf16.mxu0 0
    %584 = vmatpush1.bf16.msra.mxu0 0
    %585 = vmatprep.subr.bf16.mxu0 0
    %586 = vmatpush1.bf16.msra.mxu0 0
    %587 = vmatprep.subr.bf16.mxu0 0
    %588 = vmatpush1.bf16.msra.mxu0 0
    %589 = vmatprep.subr.bf16.mxu0 0
    %590 = vmatpush1.bf16.msra.mxu0 0
    %591 = vmatprep.subr.bf16.mxu0 0
    %592 = vmatpush1.bf16.msra.mxu0 %v486
    %593 = vmatprep.subr.bf16.mxu0 0
    %594 = vmatpush1.bf16.msra.mxu0 %v483
    %595 = vmatprep.subr.bf16.mxu0 0
    %596 = vmatpush2.bf16.msra.mxu0 0
    %597 = vmatprep.subr.bf16.mxu0 0
    %598 = vmatpush2.bf16.msra.mxu0 0
    %599 = vmatprep.subr.bf16.mxu0 0
    %600 = vmatpush2.bf16.msra.mxu0 0
    %601 = vmatprep.subr.bf16.mxu0 0
    %602 = vmatpush2.bf16.msra.mxu0 0
    %603 = vmatprep.subr.bf16.mxu0 0
    %604 = vmatpush2.bf16.msra.mxu0 0
    %605 = vmatprep.subr.bf16.mxu0 0
    %606 = vmatpush2.bf16.msra.mxu0 0
    %607 = vmatprep.subr.bf16.mxu0 0
    %608 = vmatpush2.bf16.msra.mxu0 0
    %609 = vmatprep.subr.bf16.mxu0 0
    %610 = vmatpush2.bf16.msra.mxu0 0
    %611 = vmatprep.mubr.bf16.mxu0 0
    %612 = vmatmul.mubr.bf16.gmra.mxu0 %v495
    %v613 = vpop.f32.mrf.mxu0
    %v614 = vadd.f32 0.0, %v613
    %v615 = vpop.f32.mrf.mxu0
    %v616 = vpop.f32.mrf.mxu0
    %v617 = vadd.f32 0.0, %v616
    %v618 = vpop.f32.mrf.mxu0
    %619 = vmatprep.mubr.bf16.mxu0 0
    %620 = vmatmul.mubr.bf16.gmra.mxu0 %v498
    %v621 = vpop.f32.mrf.mxu0
    %v622 = vadd.f32 0.0, %v621
    %v623 = vpop.f32.mrf.mxu0
    %v624 = vpop.f32.mrf.mxu0
    %v625 = vadd.f32 0.0, %v624
    %v626 = vpop.f32.mrf.mxu0
    %627 = vmatprep.mubr.bf16.mxu0 0
    %628 = vmatmul.mubr.bf16.gmra.mxu0 %v501
    %v629 = vpop.f32.mrf.mxu0
    %v630 = vadd.f32 0.0, %v629
    %v631 = vpop.f32.mrf.mxu0
    %v632 = vpop.f32.mrf.mxu0
    %v633 = vadd.f32 0.0, %v632
    %v634 = vpop.f32.mrf.mxu0
    %635 = vmatprep.mubr.bf16.mxu0 0
    %636 = vmatmul.mubr.bf16.gmra.mxu0 %v504
    %v637 = vpop.f32.mrf.mxu0
    %v638 = vadd.f32 0.0, %v637
    %v639 = vpop.f32.mrf.mxu0
    %v640 = vpop.f32.mrf.mxu0
    %v641 = vadd.f32 0.0, %v640
    %v642 = vpop.f32.mrf.mxu0
    %643 = vdwg.mxu0
    %v644 = vrot.slane %v541, 7
    %v645 = vrot.slane %v545, 7
    %v646 = vrot.slane %v551, 7
    %v647 = vrot.slane %v555, 7
    %v648 = vrot.slane %v561, 7
    %v649 = vrot.slane %v565, 7
    %v650 = vrot.slane %v571, 7
    %v651 = vrot.slane %v575, 7
    %v652 = vlaneseq
    %v653 = vshrl.u32 %v652, 7
    %vm654 = vcmp.lt.s32.totalorder %v653, 1
    %v655 = vsel %vm654, %v650, %v651
    %v656 = vsel %vm654, %v649, %v650
    %v657 = vsel %vm654, %v648, %v649
    %v658 = vsel %vm654, %v647, %v648
    %v659 = vsel %vm654, %v646, %v647
    %v660 = vsel %vm654, %v645, %v646
    %v661 = vsel %vm654, %v644, %v645
    %v662 = vsel %vm654, %v651, %v644
    %v663 = vrot.slane %v614, 1
    %v664 = vrot.slane %v617, 1
    %v665 = vrot.slane %v622, 1
    %v666 = vrot.slane %v625, 1
    %v667 = vrot.slane %v630, 1
    %v668 = vrot.slane %v633, 1
    %v669 = vrot.slane %v638, 1
    %v670 = vrot.slane %v641, 1
    %vm671 = vcmp.lt.s32.totalorder %v653, 7
    %v672 = vsel %vm671, %v669, %v670
    %v673 = vsel %vm671, %v668, %v669
    %v674 = vsel %vm671, %v667, %v668
    %v675 = vsel %vm671, %v666, %v667
    %v676 = vsel %vm671, %v665, %v666
    %v677 = vsel %vm671, %v664, %v665
    %v678 = vsel %vm671, %v663, %v664
    %v679 = vsel %vm671, %v670, %v663
    %681 = vset.pattern.permute.xlu0 0
    %682 = vperm.xlu0 %681, %v441
    %v683 = vpop.permute.xlu0 %682
    %686 = vset.pattern.permute.xlu0 0
    %687 = vperm.xlu0 %686, %v442
    %v688 = vpop.permute.xlu0 %687
    %691 = vset.pattern.permute.xlu0 0
    %692 = vperm.xlu0 %691, %v443
    %v693 = vpop.permute.xlu0 %692
    %696 = vset.pattern.permute.xlu0 0
    %697 = vperm.xlu0 %696, %v444
    %v698 = vpop.permute.xlu0 %697
    %701 = vset.pattern.permute.xlu0 0
    %702 = vperm.xlu0 %701, %v445
    %v703 = vpop.permute.xlu0 %702
    %706 = vset.pattern.permute.xlu0 0
    %707 = vperm.xlu0 %706, %v446
    %v708 = vpop.permute.xlu0 %707
    %711 = vset.pattern.permute.xlu0 0
    %712 = vperm.xlu0 %711, %v447
    %v713 = vpop.permute.xlu0 %712
    %716 = vset.pattern.permute.xlu0 0
    %717 = vperm.xlu0 %716, %v448
    %v718 = vpop.permute.xlu0 %717
    %v720 = vmul.f32 %v683, %v662
    %v721 = vmul.f32 %v688, %v661
    %v722 = vmul.f32 %v693, %v660
    %v723 = vmul.f32 %v698, %v659
    %v724 = vmul.f32 %v703, %v658
    %v725 = vmul.f32 %v708, %v657
    %v726 = vmul.f32 %v713, %v656
    %v727 = vmul.f32 %v718, %v655
    %v728 = vadd.f32 %v720, %v543
    %v729 = vadd.f32 %v721, %v547
    %v730 = vadd.f32 %v722, %v553
    %v731 = vadd.f32 %v723, %v557
    %v732 = vadd.f32 %v724, %v563
    %v733 = vadd.f32 %v725, %v567
    %v734 = vadd.f32 %v726, %v573
    %v735 = vadd.f32 %v727, %v577
    %737 = vset.pattern.permute.xlu0 0
    %738 = vperm.xlu0 %737, %v449
    %v739 = vpop.permute.xlu0 %738
    %742 = vset.pattern.permute.xlu0 0
    %743 = vperm.xlu0 %742, %v450
    %v744 = vpop.permute.xlu0 %743
    %747 = vset.pattern.permute.xlu0 0
    %748 = vperm.xlu0 %747, %v451
    %v749 = vpop.permute.xlu0 %748
    %752 = vset.pattern.permute.xlu0 0
    %753 = vperm.xlu0 %752, %v452
    %v754 = vpop.permute.xlu0 %753
    %757 = vset.pattern.permute.xlu0 0
    %758 = vperm.xlu0 %757, %v453
    %v759 = vpop.permute.xlu0 %758
    %762 = vset.pattern.permute.xlu0 0
    %763 = vperm.xlu0 %762, %v454
    %v764 = vpop.permute.xlu0 %763
    %767 = vset.pattern.permute.xlu0 0
    %768 = vperm.xlu0 %767, %v455
    %v769 = vpop.permute.xlu0 %768
    %772 = vset.pattern.permute.xlu0 0
    %773 = vperm.xlu0 %772, %v456
    %v774 = vpop.permute.xlu0 %773
    %v776 = vmul.f32 %v739, %v678
    %v777 = vmul.f32 %v744, %v677
    %v778 = vmul.f32 %v749, %v676
    %v779 = vmul.f32 %v754, %v675
    %v780 = vmul.f32 %v759, %v674
    %v781 = vmul.f32 %v764, %v673
    %v782 = vmul.f32 %v769, %v672
    %v783 = vmul.f32 %v774, %v679
    %v784 = vadd.f32 %v728, %v776
    %v785 = vadd.f32 %v729, %v777
    %v786 = vadd.f32 %v730, %v778
    %v787 = vadd.f32 %v731, %v779
    %v788 = vadd.f32 %v732, %v780
    %v789 = vadd.f32 %v733, %v781
    %v790 = vadd.f32 %v734, %v782
    %v791 = vadd.f32 %v735, %v783
    %v793 = vlaneseq
    %v794 = vshrl.u32 %v793, 7
    %v795 = vsub.s32 0, %v794
    %v796 = vrot.slane %v440, %v795
    %v798 = vadd.f32 %v784, %v796
    %v799 = vadd.f32 %v785, %v796
    %v800 = vadd.f32 %v786, %v796
    %v801 = vadd.f32 %v787, %v796
    %v802 = vadd.f32 %v788, %v796
    %v803 = vadd.f32 %v789, %v796
    %v804 = vadd.f32 %v790, %v796
    %v805 = vadd.f32 %v791, %v796
    %v806 = vmax.f32 %v798, 0.0
    %v807 = vmax.f32 %v799, 0.0
    %v808 = vmax.f32 %v800, 0.0
    %v809 = vmax.f32 %v801, 0.0
    %v810 = vmax.f32 %v802, 0.0
    %v811 = vmax.f32 %v803, 0.0
    %v812 = vmax.f32 %v804, 0.0
    %v813 = vmax.f32 %v805, 0.0
    %v814 = vld [vmem:[#allocation8] sm:$0xff]
    %v815 = vld [vmem:[#allocation8 + $0x8] sm:$0xf]
    %v816 = vld [vmem:[#allocation8 + $0xc] sm:$0xff]
    %v817 = vld [vmem:[#allocation8 + $0x14] sm:$0xf]
    %v818 = vld [vmem:[#allocation8 + $0x18] sm:$0xff]
    %v819 = vld [vmem:[#allocation8 + $0x20] sm:$0xf]
    %v820 = vld [vmem:[#allocation8 + $0x24] sm:$0xff]
    %v821 = vld [vmem:[#allocation8 + $0x2c] sm:$0xf]
    %v822 = vld [vmem:[#allocation8 + $0x30] sm:$0xff]
    %v823 = vld [vmem:[#allocation8 + $0x38] sm:$0xf]
    %v824 = vld [vmem:[#allocation8 + $0x3c] sm:$0xff]
    %v825 = vld [vmem:[#allocation8 + $0x44] sm:$0xf]
    %v826 = vld [vmem:[#allocation8 + $0x48] sm:$0xff]
    %v827 = vld [vmem:[#allocation8 + $0x50] sm:$0xf]
    %v828 = vld [vmem:[#allocation8 + $0x54] sm:$0xff]
    %v829 = vld [vmem:[#allocation8 + $0x5c] sm:$0xf]
    %v830 = vld [vmem:[#allocation8 + $0x60] sm:$0xff]
    %v831 = vld [vmem:[#allocation8 + $0x68] sm:$0xf]
    %v832 = vld [vmem:[#allocation8 + $0x6c] sm:$0xff]
    %v833 = vld [vmem:[#allocation8 + $0x74] sm:$0xf]
    %v834 = vld [vmem:[#allocation8 + $0x78] sm:$0xff]
    %v835 = vld [vmem:[#allocation8 + $0x80] sm:$0xf]
    %v836 = vld [vmem:[#allocation8 + $0x84] sm:$0xff]
    %v837 = vld [vmem:[#allocation8 + $0x8c] sm:$0xf]
    %v838 = vld [vmem:[#allocation8 + $0x90] sm:$0xff]
    %v839 = vld [vmem:[#allocation8 + $0x98] sm:$0xf]
    %v840 = vld [vmem:[#allocation8 + $0x9c] sm:$0xff]
    %v841 = vld [vmem:[#allocation8 + $0xa4] sm:$0xf]
    %v842 = vld [vmem:[#allocation8 + $0xa8] sm:$0xff]
    %v843 = vld [vmem:[#allocation8 + $0xb0] sm:$0xf]
    %v844 = vld [vmem:[#allocation8 + $0xb4] sm:$0xff]
    %v845 = vld [vmem:[#allocation8 + $0xbc] sm:$0xf]
    %v846 = vld [vmem:[#allocation10] sm:$0x1]
    %v847 = vpack.c.bf16 %v807, %v806
    %v848 = vpack.c.bf16 %v809, %v808
    %v849 = vpack.c.bf16 %v811, %v810
    %v850 = vpack.c.bf16 %v813, %v812
    %v883 = vunpack.c.l.b16 %v814
    %v884 = vunpack.c.h.b16 %v814
    %v885 = vunpack.c.l.b16 %v815
    %v886 = vunpack.c.l.b16 %v816
    %v887 = vunpack.c.h.b16 %v816
    %v888 = vunpack.c.l.b16 %v817
    %v889 = vunpack.c.l.b16 %v818
    %v890 = vunpack.c.h.b16 %v818
    %v891 = vunpack.c.l.b16 %v819
    %v892 = vunpack.c.l.b16 %v820
    %v893 = vunpack.c.h.b16 %v820
    %v894 = vunpack.c.l.b16 %v821
    %v895 = vunpack.c.l.b16 %v822
    %v896 = vunpack.c.h.b16 %v822
    %v897 = vunpack.c.l.b16 %v823
    %v898 = vunpack.c.l.b16 %v824
    %v899 = vunpack.c.h.b16 %v824
    %v900 = vunpack.c.l.b16 %v825
    %v901 = vunpack.c.l.b16 %v826
    %v902 = vunpack.c.h.b16 %v826
    %v903 = vunpack.c.l.b16 %v827
    %v904 = vunpack.c.l.b16 %v828
    %v905 = vunpack.c.h.b16 %v828
    %v906 = vunpack.c.l.b16 %v829
    %v907 = vunpack.c.l.b16 %v830
    %v908 = vunpack.c.h.b16 %v830
    %v909 = vunpack.c.l.b16 %v831
    %v910 = vunpack.c.l.b16 %v832
    %v911 = vunpack.c.h.b16 %v832
    %v912 = vunpack.c.l.b16 %v833
    %v913 = vunpack.c.l.b16 %v834
    %v914 = vunpack.c.h.b16 %v834
    %v915 = vunpack.c.l.b16 %v835
    %v916 = vunpack.c.l.b16 %v836
    %v917 = vunpack.c.h.b16 %v836
    %v918 = vunpack.c.l.b16 %v837
    %v919 = vunpack.c.l.b16 %v838
    %v920 = vunpack.c.h.b16 %v838
    %v921 = vunpack.c.l.b16 %v839
    %v922 = vunpack.c.l.b16 %v840
    %v923 = vunpack.c.h.b16 %v840
    %v924 = vunpack.c.l.b16 %v841
    %v925 = vunpack.c.l.b16 %v842
    %v926 = vunpack.c.h.b16 %v842
    %v927 = vunpack.c.l.b16 %v843
    %v928 = vunpack.c.l.b16 %v844
    %v929 = vunpack.c.h.b16 %v844
    %v930 = vunpack.c.l.b16 %v845
    %v931 = vpack.c.b16 %v886, %v883
    %v932 = vpack.c.b16 %v887, %v884
    %v933 = vpack.c.b16 %v888, %v885
    %v934 = vpack.c.b16 %v892, %v889
    %v935 = vpack.c.b16 %v893, %v890
    %v936 = vpack.c.b16 %v894, %v891
    %v937 = vpack.c.b16 %v898, %v895
    %v938 = vpack.c.b16 %v899, %v896
    %v939 = vpack.c.b16 %v900, %v897
    %v940 = vpack.c.b16 %v904, %v901
    %v941 = vpack.c.b16 %v905, %v902
    %v942 = vpack.c.b16 %v906, %v903
    %v943 = vpack.c.b16 %v910, %v907
    %v944 = vpack.c.b16 %v911, %v908
    %v945 = vpack.c.b16 %v912, %v909
    %v946 = vpack.c.b16 %v916, %v913
    %v947 = vpack.c.b16 %v917, %v914
    %v948 = vpack.c.b16 %v918, %v915
    %v949 = vpack.c.b16 %v922, %v919
    %v950 = vpack.c.b16 %v923, %v920
    %v951 = vpack.c.b16 %v924, %v921
    %v952 = vpack.c.b16 %v928, %v925
    %v953 = vpack.c.b16 %v929, %v926
    %v954 = vpack.c.b16 %v930, %v927
    %979 = vmatprep.subr.bf16.mxu0 %v953
    %980 = vmatpush1.bf16.msra.mxu0 %v952
    %981 = vmatprep.subr.bf16.mxu0 %v950
    %982 = vmatpush1.bf16.msra.mxu0 %v949
    %983 = vmatprep.subr.bf16.mxu0 %v947
    %984 = vmatpush1.bf16.msra.mxu0 %v946
    %985 = vmatprep.subr.bf16.mxu0 %v944
    %986 = vmatpush1.bf16.msra.mxu0 %v943
    %987 = vmatprep.subr.bf16.mxu0 %v941
    %988 = vmatpush1.bf16.msra.mxu0 %v940
    %989 = vmatprep.subr.bf16.mxu0 %v938
    %990 = vmatpush1.bf16.msra.mxu0 %v937
    %991 = vmatprep.subr.bf16.mxu0 %v935
    %992 = vmatpush1.bf16.msra.mxu0 %v934
    %993 = vmatprep.subr.bf16.mxu0 %v932
    %994 = vmatpush1.bf16.msra.mxu0 %v931
    %995 = vmatprep.subr.bf16.mxu0 0
    %996 = vmatpush2.bf16.msra.mxu0 0
    %997 = vmatprep.subr.bf16.mxu0 0
    %998 = vmatpush2.bf16.msra.mxu0 0
    %999 = vmatprep.subr.bf16.mxu0 0
    %1000 = vmatpush2.bf16.msra.mxu0 0
    %1001 = vmatprep.subr.bf16.mxu0 0
    %1002 = vmatpush2.bf16.msra.mxu0 0
    %1003 = vmatprep.subr.bf16.mxu0 0
    %1004 = vmatpush2.bf16.msra.mxu0 0
    %1005 = vmatprep.subr.bf16.mxu0 0
    %1006 = vmatpush2.bf16.msra.mxu0 0
    %1007 = vmatprep.subr.bf16.mxu0 0
    %1008 = vmatpush2.bf16.msra.mxu0 0
    %1009 = vmatprep.subr.bf16.mxu0 0
    %1010 = vmatpush2.bf16.msra.mxu0 0
    %1011 = vmatprep.mubr.bf16.mxu0 0
    %1012 = vmatmul.mubr.bf16.gmra.mxu0 %v847
    %v1013 = vpop.f32.mrf.mxu0
    %v1014 = vadd.f32 0.0, %v1013
    %v1015 = vpop.f32.mrf.mxu0
    %v1016 = vadd.f32 0.0, %v1015
    %v1017 = vpop.f32.mrf.mxu0
    %v1018 = vadd.f32 0.0, %v1017
    %v1019 = vpop.f32.mrf.mxu0
    %v1020 = vadd.f32 0.0, %v1019
    %1021 = vmatprep.mubr.bf16.mxu0 0
    %1022 = vmatmul.mubr.bf16.gmra.mxu0 %v848
    %v1023 = vpop.f32.mrf.mxu0
    %v1024 = vadd.f32 0.0, %v1023
    %v1025 = vpop.f32.mrf.mxu0
    %v1026 = vadd.f32 0.0, %v1025
    %v1027 = vpop.f32.mrf.mxu0
    %v1028 = vadd.f32 0.0, %v1027
    %v1029 = vpop.f32.mrf.mxu0
    %v1030 = vadd.f32 0.0, %v1029
    %1031 = vmatprep.mubr.bf16.mxu0 0
    %1032 = vmatmul.mubr.bf16.gmra.mxu0 %v849
    %v1033 = vpop.f32.mrf.mxu0
    %v1034 = vadd.f32 0.0, %v1033
    %v1035 = vpop.f32.mrf.mxu0
    %v1036 = vadd.f32 0.0, %v1035
    %v1037 = vpop.f32.mrf.mxu0
    %v1038 = vadd.f32 0.0, %v1037
    %v1039 = vpop.f32.mrf.mxu0
    %v1040 = vadd.f32 0.0, %v1039
    %1041 = vmatprep.mubr.bf16.mxu0 0
    %1042 = vmatmul.mubr.bf16.gmra.mxu0 %v850
    %v1043 = vpop.f32.mrf.mxu0
    %v1044 = vadd.f32 0.0, %v1043
    %v1045 = vpop.f32.mrf.mxu0
    %v1046 = vadd.f32 0.0, %v1045
    %v1047 = vpop.f32.mrf.mxu0
    %v1048 = vadd.f32 0.0, %v1047
    %v1049 = vpop.f32.mrf.mxu0
    %v1050 = vadd.f32 0.0, %v1049
    %1051 = vdwg.mxu0
    %1052 = vmatprep.subr.bf16.mxu0 0
    %1053 = vmatpush1.bf16.msra.mxu0 %v954
    %1054 = vmatprep.subr.bf16.mxu0 0
    %1055 = vmatpush1.bf16.msra.mxu0 %v951
    %1056 = vmatprep.subr.bf16.mxu0 0
    %1057 = vmatpush1.bf16.msra.mxu0 %v948
    %1058 = vmatprep.subr.bf16.mxu0 0
    %1059 = vmatpush1.bf16.msra.mxu0 %v945
    %1060 = vmatprep.subr.bf16.mxu0 0
    %1061 = vmatpush1.bf16.msra.mxu0 %v942
    %1062 = vmatprep.subr.bf16.mxu0 0
    %1063 = vmatpush1.bf16.msra.mxu0 %v939
    %1064 = vmatprep.subr.bf16.mxu0 0
    %1065 = vmatpush1.bf16.msra.mxu0 %v936
    %1066 = vmatprep.subr.bf16.mxu0 0
    %1067 = vmatpush1.bf16.msra.mxu0 %v933
    %1068 = vmatprep.subr.bf16.mxu0 0
    %1069 = vmatpush2.bf16.msra.mxu0 0
    %1070 = vmatprep.subr.bf16.mxu0 0
    %1071 = vmatpush2.bf16.msra.mxu0 0
    %1072 = vmatprep.subr.bf16.mxu0 0
    %1073 = vmatpush2.bf16.msra.mxu0 0
    %1074 = vmatprep.subr.bf16.mxu0 0
    %1075 = vmatpush2.bf16.msra.mxu0 0
    %1076 = vmatprep.subr.bf16.mxu0 0
    %1077 = vmatpush2.bf16.msra.mxu0 0
    %1078 = vmatprep.subr.bf16.mxu0 0
    %1079 = vmatpush2.bf16.msra.mxu0 0
    %1080 = vmatprep.subr.bf16.mxu0 0
    %1081 = vmatpush2.bf16.msra.mxu0 0
    %1082 = vmatprep.subr.bf16.mxu0 0
    %1083 = vmatpush2.bf16.msra.mxu0 0
    %1084 = vmatprep.mubr.bf16.mxu0 0
    %1085 = vmatmul.mubr.bf16.gmra.mxu0 %v847
    %v1086 = vpop.f32.mrf.mxu0
    %v1087 = vadd.f32 0.0, %v1086
    %v1088 = vpop.f32.mrf.mxu0
    %v1089 = vpop.f32.mrf.mxu0
    %v1090 = vadd.f32 0.0, %v1089
    %v1091 = vpop.f32.mrf.mxu0
    %1092 = vmatprep.mubr.bf16.mxu0 0
    %1093 = vmatmul.mubr.bf16.gmra.mxu0 %v848
    %v1094 = vpop.f32.mrf.mxu0
    %v1095 = vadd.f32 0.0, %v1094
    %v1096 = vpop.f32.mrf.mxu0
    %v1097 = vpop.f32.mrf.mxu0
    %v1098 = vadd.f32 0.0, %v1097
    %v1099 = vpop.f32.mrf.mxu0
    %1100 = vmatprep.mubr.bf16.mxu0 0
    %1101 = vmatmul.mubr.bf16.gmra.mxu0 %v849
    %v1102 = vpop.f32.mrf.mxu0
    %v1103 = vadd.f32 0.0, %v1102
    %v1104 = vpop.f32.mrf.mxu0
    %v1105 = vpop.f32.mrf.mxu0
    %v1106 = vadd.f32 0.0, %v1105
    %v1107 = vpop.f32.mrf.mxu0
    %1108 = vmatprep.mubr.bf16.mxu0 0
    %1109 = vmatmul.mubr.bf16.gmra.mxu0 %v850
    %v1110 = vpop.f32.mrf.mxu0
    %v1111 = vadd.f32 0.0, %v1110
    %v1112 = vpop.f32.mrf.mxu0
    %v1113 = vpop.f32.mrf.mxu0
    %v1114 = vadd.f32 0.0, %v1113
    %v1115 = vpop.f32.mrf.mxu0
    %1116 = vdwg.mxu0
    %v1117 = vrot.slane %v1014, 7
    %v1118 = vrot.slane %v1018, 7
    %v1119 = vrot.slane %v1024, 7
    %v1120 = vrot.slane %v1028, 7
    %v1121 = vrot.slane %v1034, 7
    %v1122 = vrot.slane %v1038, 7
    %v1123 = vrot.slane %v1044, 7
    %v1124 = vrot.slane %v1048, 7
    %v1125 = vsel %vm654, %v1123, %v1124
    %v1126 = vsel %vm654, %v1122, %v1123
    %v1127 = vsel %vm654, %v1121, %v1122
    %v1128 = vsel %vm654, %v1120, %v1121
    %v1129 = vsel %vm654, %v1119, %v1120
    %v1130 = vsel %vm654, %v1118, %v1119
    %v1131 = vsel %vm654, %v1117, %v1118
    %v1132 = vsel %vm654, %v1124, %v1117
    %v1133 = vrot.slane %v1087, 1
    %v1134 = vrot.slane %v1090, 1
    %v1135 = vrot.slane %v1095, 1
    %v1136 = vrot.slane %v1098, 1
    %v1137 = vrot.slane %v1103, 1
    %v1138 = vrot.slane %v1106, 1
    %v1139 = vrot.slane %v1111, 1
    %v1140 = vrot.slane %v1114, 1
    %v1141 = vsel %vm671, %v1139, %v1140
    %v1142 = vsel %vm671, %v1138, %v1139
    %v1143 = vsel %vm671, %v1137, %v1138
    %v1144 = vsel %vm671, %v1136, %v1137
    %v1145 = vsel %vm671, %v1135, %v1136
    %v1146 = vsel %vm671, %v1134, %v1135
    %v1147 = vsel %vm671, %v1133, %v1134
    %v1148 = vsel %vm671, %v1140, %v1133
    %v1149 = vmul.f32 %v683, %v1132
    %v1150 = vmul.f32 %v688, %v1131
    %v1151 = vmul.f32 %v693, %v1130
    %v1152 = vmul.f32 %v698, %v1129
    %v1153 = vmul.f32 %v703, %v1128
    %v1154 = vmul.f32 %v708, %v1127
    %v1155 = vmul.f32 %v713, %v1126
    %v1156 = vmul.f32 %v718, %v1125
    %v1157 = vadd.f32 %v1149, %v1016
    %v1158 = vadd.f32 %v1150, %v1020
    %v1159 = vadd.f32 %v1151, %v1026
    %v1160 = vadd.f32 %v1152, %v1030
    %v1161 = vadd.f32 %v1153, %v1036
    %v1162 = vadd.f32 %v1154, %v1040
    %v1163 = vadd.f32 %v1155, %v1046
    %v1164 = vadd.f32 %v1156, %v1050
    %v1165 = vmul.f32 %v739, %v1147
    %v1166 = vmul.f32 %v744, %v1146
    %v1167 = vmul.f32 %v749, %v1145
    %v1168 = vmul.f32 %v754, %v1144
    %v1169 = vmul.f32 %v759, %v1143
    %v1170 = vmul.f32 %v764, %v1142
    %v1171 = vmul.f32 %v769, %v1141
    %v1172 = vmul.f32 %v774, %v1148
    %v1173 = vadd.f32 %v1157, %v1165
    %v1174 = vadd.f32 %v1158, %v1166
    %v1175 = vadd.f32 %v1159, %v1167
    %v1176 = vadd.f32 %v1160, %v1168
    %v1177 = vadd.f32 %v1161, %v1169
    %v1178 = vadd.f32 %v1162, %v1170
    %v1179 = vadd.f32 %v1163, %v1171
    %v1180 = vadd.f32 %v1164, %v1172
    %v1182 = vlaneseq
    %v1183 = vshrl.u32 %v1182, 7
    %v1184 = vsub.s32 0, %v1183
    %v1185 = vrot.slane %v846, %v1184
    %v1187 = vadd.f32 %v1173, %v1185
    %v1188 = vadd.f32 %v1174, %v1185
    %v1189 = vadd.f32 %v1175, %v1185
    %v1190 = vadd.f32 %v1176, %v1185
    %v1191 = vadd.f32 %v1177, %v1185
    %v1192 = vadd.f32 %v1178, %v1185
    %v1193 = vadd.f32 %v1179, %v1185
    %v1194 = vadd.f32 %v1180, %v1185
    %v1195 = vmax.f32 %v1187, 0.0
    %v1196 = vmax.f32 %v1188, 0.0
    %v1197 = vmax.f32 %v1189, 0.0
    %v1198 = vmax.f32 %v1190, 0.0
    %v1199 = vmax.f32 %v1191, 0.0
    %v1200 = vmax.f32 %v1192, 0.0
    %v1201 = vmax.f32 %v1193, 0.0
    %v1202 = vmax.f32 %v1194, 0.0
    %v1203 = vld [vmem:[#allocation38] sm:$0xf]
    %v1204 = vld [vmem:[#allocation38 + $0x4] sm:$0xf]
    %v1205 = vld [vmem:[#allocation38 + $0x8] sm:$0xf]
    %v1206 = vld [vmem:[#allocation38 + $0xc] sm:$0xf]
    %v1207 = vld [vmem:[#allocation38 + $0x10] sm:$0xf]
    %v1208 = vld [vmem:[#allocation38 + $0x14] sm:$0xf]
    %v1209 = vld [vmem:[#allocation38 + $0x18] sm:$0xf]
    %v1210 = vld [vmem:[#allocation38 + $0x1c] sm:$0xf]
    %v1211 = vld [vmem:[#allocation38 + $0x20] sm:$0xf]
    %v1212 = vld [vmem:[#allocation38 + $0x24] sm:$0xf]
    %v1213 = vld [vmem:[#allocation38 + $0x28] sm:$0xf]
    %v1214 = vld [vmem:[#allocation38 + $0x2c] sm:$0xf]
    %v1215 = vld [vmem:[#allocation38 + $0x30] sm:$0xf]
    %v1216 = vld [vmem:[#allocation38 + $0x34] sm:$0xf]
    %v1217 = vld [vmem:[#allocation38 + $0x38] sm:$0xf]
    %v1218 = vld [vmem:[#allocation38 + $0x3c] sm:$0xf]
    %v1219 = vrot.slane %v1195, 1
    %v1220 = vrot.slane %v1196, 1
    %v1221 = vrot.slane %v1197, 1
    %v1222 = vrot.slane %v1198, 1
    %v1223 = vrot.slane %v1199, 1
    %v1224 = vrot.slane %v1200, 1
    %v1225 = vrot.slane %v1201, 1
    %v1226 = vrot.slane %v1202, 1
    %v1227 = vsel %vm671, %v1225, %v1226
    %v1228 = vsel %vm671, %v1224, %v1225
    %v1229 = vsel %vm671, %v1223, %v1224
    %v1230 = vsel %vm671, %v1222, %v1223
    %v1231 = vsel %vm671, %v1221, %v1222
    %v1232 = vsel %vm671, %v1220, %v1221
    %v1233 = vsel %vm671, %v1219, %v1220
    %v1234 = vsel %vm671, %v1226, %v1219
    %v1235 = vmax.f32 %v1195, %v1233
    %v1236 = vmax.f32 %v1196, %v1232
    %v1237 = vmax.f32 %v1197, %v1231
    %v1238 = vmax.f32 %v1198, %v1230
    %v1239 = vmax.f32 %v1199, %v1229
    %v1240 = vmax.f32 %v1200, %v1228
    %v1241 = vmax.f32 %v1201, %v1227
    %v1242 = vmax.f32 %v1202, %v1234
    %1243 = vst [vmem:[#allocation2] sm:$0xff] %v1235
    %1244 = vst [vmem:[#allocation2 + $0x8] sm:$0xff] %v1236
    %1245 = vst [vmem:[#allocation2 + $0x10] sm:$0xff] %v1237
    %1246 = vst [vmem:[#allocation2 + $0x18] sm:$0xff] %v1238
    %1247 = vst [vmem:[#allocation2 + $0x20] sm:$0xff] %v1239
    %1248 = vst [vmem:[#allocation2 + $0x28] sm:$0xff] %v1240
    %1249 = vst [vmem:[#allocation2 + $0x30] sm:$0xff] %v1241
    %1250 = vst [vmem:[#allocation2 + $0x38] sm:$0xff] %v1242
    %v1251 = vld [vmem:[#allocation2] ss:$2 sm:$0xff]
    %s1252 = scalar_lea.vmem [#allocation2], 16
    %v1253 = vld [vmem:[%s1252] ss:$2 sm:$0xff]
    %s1254 = scalar_lea.vmem [#allocation2], 32
    %v1255 = vld [vmem:[%s1254] ss:$2 sm:$0xff]
    %s1256 = scalar_lea.vmem [#allocation2], 48
    %v1257 = vld [vmem:[%s1256] ss:$2 sm:$0xff]
    %1258 = vrot.lane.b32.xlu0 %v1251, 124
    %v1259 = vpop.permute.xlu0 %1258
    %1260 = vrot.lane.b32.xlu0 %v1253, 124
    %v1261 = vpop.permute.xlu0 %1260
    %1262 = vrot.lane.b32.xlu0 %v1255, 124
    %v1263 = vpop.permute.xlu0 %1262
    %1264 = vrot.lane.b32.xlu0 %v1257, 124
    %v1265 = vpop.permute.xlu0 %1264
    %v1266 = vmax.f32 %v1251, %v1259
    %v1267 = vmax.f32 %v1253, %v1261
    %v1268 = vmax.f32 %v1255, %v1263
    %v1269 = vmax.f32 %v1257, %v1265
    %v1270 = vpack.c.bf16 %v1267, %v1266
    %v1271 = vpack.c.bf16 %v1269, %v1268
    %v1288 = vunpack.c.l.b16 %v1203
    %v1289 = vunpack.c.l.b16 %v1204
    %v1290 = vunpack.c.l.b16 %v1205
    %v1291 = vunpack.c.l.b16 %v1206
    %v1292 = vunpack.c.l.b16 %v1207
    %v1293 = vunpack.c.l.b16 %v1208
    %v1294 = vunpack.c.l.b16 %v1209
    %v1295 = vunpack.c.l.b16 %v1210
    %v1296 = vunpack.c.l.b16 %v1211
    %v1297 = vunpack.c.l.b16 %v1212
    %v1298 = vunpack.c.l.b16 %v1213
    %v1299 = vunpack.c.l.b16 %v1214
    %v1300 = vunpack.c.l.b16 %v1215
    %v1301 = vunpack.c.l.b16 %v1216
    %v1302 = vunpack.c.l.b16 %v1217
    %v1303 = vunpack.c.l.b16 %v1218
    %v1304 = vpack.c.b16 %v1289, %v1288
    %v1305 = vpack.c.b16 %v1291, %v1290
    %v1306 = vpack.c.b16 %v1293, %v1292
    %v1307 = vpack.c.b16 %v1295, %v1294
    %v1308 = vpack.c.b16 %v1297, %v1296
    %v1309 = vpack.c.b16 %v1299, %v1298
    %v1310 = vpack.c.b16 %v1301, %v1300
    %v1311 = vpack.c.b16 %v1303, %v1302
    %1320 = vmatprep.subr.bf16.mxu0 0
    %1321 = vmatpush1.bf16.msra.mxu0 %v1311
    %1322 = vmatprep.subr.bf16.mxu0 0
    %1323 = vmatpush1.bf16.msra.mxu0 %v1310
    %1324 = vmatprep.subr.bf16.mxu0 0
    %1325 = vmatpush1.bf16.msra.mxu0 %v1309
    %1326 = vmatprep.subr.bf16.mxu0 0
    %1327 = vmatpush1.bf16.msra.mxu0 %v1308
    %1328 = vmatprep.subr.bf16.mxu0 0
    %1329 = vmatpush1.bf16.msra.mxu0 %v1307
    %1330 = vmatprep.subr.bf16.mxu0 0
    %1331 = vmatpush1.bf16.msra.mxu0 %v1306
    %1332 = vmatprep.subr.bf16.mxu0 0
    %1333 = vmatpush1.bf16.msra.mxu0 %v1305
    %1334 = vmatprep.subr.bf16.mxu0 0
    %1335 = vmatpush1.bf16.msra.mxu0 %v1304
    %1336 = vmatprep.subr.bf16.mxu0 0
    %1337 = vmatpush2.bf16.msra.mxu0 0
    %1338 = vmatprep.subr.bf16.mxu0 0
    %1339 = vmatpush2.bf16.msra.mxu0 0
    %1340 = vmatprep.subr.bf16.mxu0 0
    %1341 = vmatpush2.bf16.msra.mxu0 0
    %1342 = vmatprep.subr.bf16.mxu0 0
    %1343 = vmatpush2.bf16.msra.mxu0 0
    %1344 = vmatprep.subr.bf16.mxu0 0
    %1345 = vmatpush2.bf16.msra.mxu0 0
    %1346 = vmatprep.subr.bf16.mxu0 0
    %1347 = vmatpush2.bf16.msra.mxu0 0
    %1348 = vmatprep.subr.bf16.mxu0 0
    %1349 = vmatpush2.bf16.msra.mxu0 0
    %1350 = vmatprep.subr.bf16.mxu0 0
    %1351 = vmatpush2.bf16.msra.mxu0 0
    %1352 = vmatprep.mubr.bf16.mxu0 0
    %1353 = vmatmul.mubr.bf16.gmra.mxu0 %v1270
    %v1354 = vpop.f32.mrf.mxu0
    %v1355 = vadd.f32 0.0, %v1354
    %v1356 = vpop.f32.mrf.mxu0
    %v1357 = vpop.f32.mrf.mxu0
    %v1358 = vadd.f32 0.0, %v1357
    %v1359 = vpop.f32.mrf.mxu0
    %1360 = vmatprep.mubr.bf16.mxu0 0
    %1361 = vmatmul.mubr.bf16.gmra.mxu0 %v1271
    %v1362 = vpop.f32.mrf.mxu0
    %v1363 = vadd.f32 0.0, %v1362
    %v1364 = vpop.f32.mrf.mxu0
    %v1365 = vpop.f32.mrf.mxu0
    %v1366 = vadd.f32 0.0, %v1365
    %v1367 = vpop.f32.mrf.mxu0
    %1368 = vdwg.mxu0
    %v1369 = vld [vmem:[#allocation11] sm:$0xff]
    %v1370 = vld [vmem:[#allocation11 + $0x8] sm:$0xf]
    %v1371 = vld [vmem:[#allocation11 + $0xc] sm:$0xff]
    %v1372 = vld [vmem:[#allocation11 + $0x14] sm:$0xf]
    %v1373 = vld [vmem:[#allocation11 + $0x18] sm:$0xff]
    %v1374 = vld [vmem:[#allocation11 + $0x20] sm:$0xf]
    %v1375 = vld [vmem:[#allocation11 + $0x24] sm:$0xff]
    %v1376 = vld [vmem:[#allocation11 + $0x2c] sm:$0xf]
    %v1377 = vld [vmem:[#allocation11 + $0x30] sm:$0xff]
    %v1378 = vld [vmem:[#allocation11 + $0x38] sm:$0xf]
    %v1379 = vld [vmem:[#allocation11 + $0x3c] sm:$0xff]
    %v1380 = vld [vmem:[#allocation11 + $0x44] sm:$0xf]
    %v1381 = vld [vmem:[#allocation11 + $0x48] sm:$0xff]
    %v1382 = vld [vmem:[#allocation11 + $0x50] sm:$0xf]
    %v1383 = vld [vmem:[#allocation11 + $0x54] sm:$0xff]
    %v1384 = vld [vmem:[#allocation11 + $0x5c] sm:$0xf]
    %v1385 = vld [vmem:[#allocation13] sm:$0x1]
    %v1386 = vld [vmem:[#allocation32] sm:$0xff]
    %v1387 = vld [vmem:[#allocation32 + $0x8] sm:$0xff]
    %v1388 = vld [vmem:[#allocation32 + $0x10] sm:$0xff]
    %v1389 = vld [vmem:[#allocation32 + $0x18] sm:$0xff]
    %v1390 = vld [vmem:[%s20] sm:$0xff]
    %v1391 = vld [vmem:[%s20 + $0x8] sm:$0xff]
    %v1392 = vld [vmem:[%s20 + $0x10] sm:$0xff]
    %v1393 = vld [vmem:[%s20 + $0x18] sm:$0xff]
    %v1394 = vpack.c.bf16 %v1358, %v1355
    %v1395 = vpack.c.bf16 %v1366, %v1363
    %v1412 = vunpack.c.l.b16 %v1369
    %v1413 = vunpack.c.h.b16 %v1369
    %v1414 = vunpack.c.l.b16 %v1370
    %v1415 = vunpack.c.l.b16 %v1371
    %v1416 = vunpack.c.h.b16 %v1371
    %v1417 = vunpack.c.l.b16 %v1372
    %v1418 = vunpack.c.l.b16 %v1373
    %v1419 = vunpack.c.h.b16 %v1373
    %v1420 = vunpack.c.l.b16 %v1374
    %v1421 = vunpack.c.l.b16 %v1375
    %v1422 = vunpack.c.h.b16 %v1375
    %v1423 = vunpack.c.l.b16 %v1376
    %v1424 = vunpack.c.l.b16 %v1377
    %v1425 = vunpack.c.h.b16 %v1377
    %v1426 = vunpack.c.l.b16 %v1378
    %v1427 = vunpack.c.l.b16 %v1379
    %v1428 = vunpack.c.h.b16 %v1379
    %v1429 = vunpack.c.l.b16 %v1380
    %v1430 = vunpack.c.l.b16 %v1381
    %v1431 = vunpack.c.h.b16 %v1381
    %v1432 = vunpack.c.l.b16 %v1382
    %v1433 = vunpack.c.l.b16 %v1383
    %v1434 = vunpack.c.h.b16 %v1383
    %v1435 = vunpack.c.l.b16 %v1384
    %v1436 = vpack.c.b16 %v1415, %v1412
    %v1437 = vpack.c.b16 %v1416, %v1413
    %v1438 = vpack.c.b16 %v1417, %v1414
    %v1439 = vpack.c.b16 %v1421, %v1418
    %v1440 = vpack.c.b16 %v1422, %v1419
    %v1441 = vpack.c.b16 %v1423, %v1420
    %v1442 = vpack.c.b16 %v1427, %v1424
    %v1443 = vpack.c.b16 %v1428, %v1425
    %v1444 = vpack.c.b16 %v1429, %v1426
    %v1445 = vpack.c.b16 %v1433, %v1430
    %v1446 = vpack.c.b16 %v1434, %v1431
    %v1447 = vpack.c.b16 %v1435, %v1432
    %vm1460 = vcmask 523264
    %v1462 = vsel %vm1460, %v1394, 0
    %v1465 = vsel %vm1460, %v1395, 0
    %1467 = vmatprep.subr.bf16.mxu0 0
    %1468 = vmatpush1.bf16.msra.mxu0 0
    %1469 = vmatprep.subr.bf16.mxu0 0
    %1470 = vmatpush1.bf16.msra.mxu0 0
    %1471 = vmatprep.subr.bf16.mxu0 0
    %1472 = vmatpush1.bf16.msra.mxu0 0
    %1473 = vmatprep.subr.bf16.mxu0 0
    %1474 = vmatpush1.bf16.msra.mxu0 0
    %1475 = vmatprep.subr.bf16.mxu0 %v1446
    %1476 = vmatpush1.bf16.msra.mxu0 %v1445
    %1477 = vmatprep.subr.bf16.mxu0 %v1443
    %1478 = vmatpush1.bf16.msra.mxu0 %v1442
    %1479 = vmatprep.subr.bf16.mxu0 %v1440
    %1480 = vmatpush1.bf16.msra.mxu0 %v1439
    %1481 = vmatprep.subr.bf16.mxu0 %v1437
    %1482 = vmatpush1.bf16.msra.mxu0 %v1436
    %1483 = vmatprep.subr.bf16.mxu0 0
    %1484 = vmatpush2.bf16.msra.mxu0 0
    %1485 = vmatprep.subr.bf16.mxu0 0
    %1486 = vmatpush2.bf16.msra.mxu0 0
    %1487 = vmatprep.subr.bf16.mxu0 0
    %1488 = vmatpush2.bf16.msra.mxu0 0
    %1489 = vmatprep.subr.bf16.mxu0 0
    %1490 = vmatpush2.bf16.msra.mxu0 0
    %1491 = vmatprep.subr.bf16.mxu0 0
    %1492 = vmatpush2.bf16.msra.mxu0 0
    %1493 = vmatprep.subr.bf16.mxu0 0
    %1494 = vmatpush2.bf16.msra.mxu0 0
    %1495 = vmatprep.subr.bf16.mxu0 0
    %1496 = vmatpush2.bf16.msra.mxu0 0
    %1497 = vmatprep.subr.bf16.mxu0 0
    %1498 = vmatpush2.bf16.msra.mxu0 0
    %1499 = vmatprep.mubr.bf16.mxu0 0
    %1500 = vmatmul.mubr.bf16.gmra.mxu0 %v1462
    %v1501 = vpop.f32.mrf.mxu0
    %v1502 = vadd.f32 0.0, %v1501
    %v1503 = vpop.f32.mrf.mxu0
    %v1504 = vadd.f32 0.0, %v1503
    %v1505 = vpop.f32.mrf.mxu0
    %v1506 = vadd.f32 0.0, %v1505
    %v1507 = vpop.f32.mrf.mxu0
    %v1508 = vadd.f32 0.0, %v1507
    %1509 = vmatprep.mubr.bf16.mxu0 0
    %1510 = vmatmul.mubr.bf16.gmra.mxu0 %v1465
    %v1511 = vpop.f32.mrf.mxu0
    %v1512 = vadd.f32 0.0, %v1511
    %v1513 = vpop.f32.mrf.mxu0
    %v1514 = vadd.f32 0.0, %v1513
    %v1515 = vpop.f32.mrf.mxu0
    %v1516 = vadd.f32 0.0, %v1515
    %v1517 = vpop.f32.mrf.mxu0
    %v1518 = vadd.f32 0.0, %v1517
    %1519 = vdwg.mxu0
    %1520 = vmatprep.subr.bf16.mxu0 0
    %1521 = vmatpush1.bf16.msra.mxu0 0
    %1522 = vmatprep.subr.bf16.mxu0 0
    %1523 = vmatpush1.bf16.msra.mxu0 0
    %1524 = vmatprep.subr.bf16.mxu0 0
    %1525 = vmatpush1.bf16.msra.mxu0 0
    %1526 = vmatprep.subr.bf16.mxu0 0
    %1527 = vmatpush1.bf16.msra.mxu0 0
    %1528 = vmatprep.subr.bf16.mxu0 0
    %1529 = vmatpush1.bf16.msra.mxu0 %v1447
    %1530 = vmatprep.subr.bf16.mxu0 0
    %1531 = vmatpush1.bf16.msra.mxu0 %v1444
    %1532 = vmatprep.subr.bf16.mxu0 0
    %1533 = vmatpush1.bf16.msra.mxu0 %v1441
    %1534 = vmatprep.subr.bf16.mxu0 0
    %1535 = vmatpush1.bf16.msra.mxu0 %v1438
    %1536 = vmatprep.subr.bf16.mxu0 0
    %1537 = vmatpush2.bf16.msra.mxu0 0
    %1538 = vmatprep.subr.bf16.mxu0 0
    %1539 = vmatpush2.bf16.msra.mxu0 0
    %1540 = vmatprep.subr.bf16.mxu0 0
    %1541 = vmatpush2.bf16.msra.mxu0 0
    %1542 = vmatprep.subr.bf16.mxu0 0
    %1543 = vmatpush2.bf16.msra.mxu0 0
    %1544 = vmatprep.subr.bf16.mxu0 0
    %1545 = vmatpush2.bf16.msra.mxu0 0
    %1546 = vmatprep.subr.bf16.mxu0 0
    %1547 = vmatpush2.bf16.msra.mxu0 0
    %1548 = vmatprep.subr.bf16.mxu0 0
    %1549 = vmatpush2.bf16.msra.mxu0 0
    %1550 = vmatprep.subr.bf16.mxu0 0
    %1551 = vmatpush2.bf16.msra.mxu0 0
    %1552 = vmatprep.mubr.bf16.mxu0 0
    %1553 = vmatmul.mubr.bf16.gmra.mxu0 %v1462
    %v1554 = vpop.f32.mrf.mxu0
    %v1555 = vadd.f32 0.0, %v1554
    %v1556 = vpop.f32.mrf.mxu0
    %v1557 = vpop.f32.mrf.mxu0
    %v1558 = vadd.f32 0.0, %v1557
    %v1559 = vpop.f32.mrf.mxu0
    %1560 = vmatprep.mubr.bf16.mxu0 0
    %1561 = vmatmul.mubr.bf16.gmra.mxu0 %v1465
    %v1562 = vpop.f32.mrf.mxu0
    %v1563 = vadd.f32 0.0, %v1562
    %v1564 = vpop.f32.mrf.mxu0
    %v1565 = vpop.f32.mrf.mxu0
    %v1566 = vadd.f32 0.0, %v1565
    %v1567 = vpop.f32.mrf.mxu0
    %1568 = vdwg.mxu0
    %v1569 = vrot.slane %v1502, 7
    %v1570 = vrot.slane %v1506, 7
    %v1571 = vrot.slane %v1512, 7
    %v1572 = vrot.slane %v1516, 7
    %v1573 = vsel %vm654, %v1571, %v1572
    %v1574 = vsel %vm654, %v1570, %v1571
    %v1575 = vsel %vm654, %v1569, %v1570
    %v1576 = vsel %vm654, %v1572, %v1569
    %v1577 = vrot.slane %v1555, 1
    %v1578 = vrot.slane %v1558, 1
    %v1579 = vrot.slane %v1563, 1
    %v1580 = vrot.slane %v1566, 1
    %v1581 = vsel %vm671, %v1579, %v1580
    %v1582 = vsel %vm671, %v1578, %v1579
    %v1583 = vsel %vm671, %v1577, %v1578
    %v1584 = vsel %vm671, %v1580, %v1577
    %1586 = vset.pattern.permute.xlu0 0
    %1587 = vperm.xlu0 %1586, %v1386
    %v1588 = vpop.permute.xlu0 %1587
    %1591 = vset.pattern.permute.xlu0 0
    %1592 = vperm.xlu0 %1591, %v1387
    %v1593 = vpop.permute.xlu0 %1592
    %1596 = vset.pattern.permute.xlu0 0
    %1597 = vperm.xlu0 %1596, %v1388
    %v1598 = vpop.permute.xlu0 %1597
    %1601 = vset.pattern.permute.xlu0 0
    %1602 = vperm.xlu0 %1601, %v1389
    %v1603 = vpop.permute.xlu0 %1602
    %v1605 = vmul.f32 %v1588, %v1576
    %v1606 = vmul.f32 %v1593, %v1575
    %v1607 = vmul.f32 %v1598, %v1574
    %v1608 = vmul.f32 %v1603, %v1573
    %v1609 = vadd.f32 %v1605, %v1504
    %v1610 = vadd.f32 %v1606, %v1508
    %v1611 = vadd.f32 %v1607, %v1514
    %v1612 = vadd.f32 %v1608, %v1518
    %1614 = vset.pattern.permute.xlu0 0
    %1615 = vperm.xlu0 %1614, %v1390
    %v1616 = vpop.permute.xlu0 %1615
    %1619 = vset.pattern.permute.xlu0 0
    %1620 = vperm.xlu0 %1619, %v1391
    %v1621 = vpop.permute.xlu0 %1620
    %1624 = vset.pattern.permute.xlu0 0
    %1625 = vperm.xlu0 %1624, %v1392
    %v1626 = vpop.permute.xlu0 %1625
    %1629 = vset.pattern.permute.xlu0 0
    %1630 = vperm.xlu0 %1629, %v1393
    %v1631 = vpop.permute.xlu0 %1630
    %v1633 = vmul.f32 %v1616, %v1583
    %v1634 = vmul.f32 %v1621, %v1582
    %v1635 = vmul.f32 %v1626, %v1581
    %v1636 = vmul.f32 %v1631, %v1584
    %v1637 = vadd.f32 %v1609, %v1633
    %v1638 = vadd.f32 %v1610, %v1634
    %v1639 = vadd.f32 %v1611, %v1635
    %v1640 = vadd.f32 %v1612, %v1636
    %v1642 = vlaneseq
    %v1643 = vshrl.u32 %v1642, 7
    %v1644 = vsub.s32 0, %v1643
    %v1645 = vrot.slane %v1385, %v1644
    %v1647 = vadd.f32 %v1637, %v1645
    %v1648 = vadd.f32 %v1638, %v1645
    %v1649 = vadd.f32 %v1639, %v1645
    %v1650 = vadd.f32 %v1640, %v1645
    %v1651 = vmax.f32 %v1647, 0.0
    %v1652 = vmax.f32 %v1648, 0.0
    %v1653 = vmax.f32 %v1649, 0.0
    %v1654 = vmax.f32 %v1650, 0.0
    %v1655 = vld [vmem:[#allocation14] sm:$0xff]
    %v1656 = vld [vmem:[#allocation14 + $0x8] sm:$0xf]
    %v1657 = vld [vmem:[#allocation14 + $0xc] sm:$0xff]
    %v1658 = vld [vmem:[#allocation14 + $0x14] sm:$0xf]
    %v1659 = vld [vmem:[#allocation14 + $0x18] sm:$0xff]
    %v1660 = vld [vmem:[#allocation14 + $0x20] sm:$0xf]
    %v1661 = vld [vmem:[#allocation14 + $0x24] sm:$0xff]
    %v1662 = vld [vmem:[#allocation14 + $0x2c] sm:$0xf]
    %v1663 = vld [vmem:[#allocation14 + $0x30] sm:$0xff]
    %v1664 = vld [vmem:[#allocation14 + $0x38] sm:$0xf]
    %v1665 = vld [vmem:[#allocation14 + $0x3c] sm:$0xff]
    %v1666 = vld [vmem:[#allocation14 + $0x44] sm:$0xf]
    %v1667 = vld [vmem:[#allocation14 + $0x48] sm:$0xff]
    %v1668 = vld [vmem:[#allocation14 + $0x50] sm:$0xf]
    %v1669 = vld [vmem:[#allocation14 + $0x54] sm:$0xff]
    %v1670 = vld [vmem:[#allocation14 + $0x5c] sm:$0xf]
    %v1671 = vld [vmem:[#allocation14 + $0x60] sm:$0xff]
    %v1672 = vld [vmem:[#allocation14 + $0x68] sm:$0xf]
    %v1673 = vld [vmem:[#allocation14 + $0x6c] sm:$0xff]
    %v1674 = vld [vmem:[#allocation14 + $0x74] sm:$0xf]
    %v1675 = vld [vmem:[#allocation14 + $0x78] sm:$0xff]
    %v1676 = vld [vmem:[#allocation14 + $0x80] sm:$0xf]
    %v1677 = vld [vmem:[#allocation14 + $0x84] sm:$0xff]
    %v1678 = vld [vmem:[#allocation14 + $0x8c] sm:$0xf]
    %v1679 = vld [vmem:[#allocation14 + $0x90] sm:$0xff]
    %v1680 = vld [vmem:[#allocation14 + $0x98] sm:$0xf]
    %v1681 = vld [vmem:[#allocation14 + $0x9c] sm:$0xff]
    %v1682 = vld [vmem:[#allocation14 + $0xa4] sm:$0xf]
    %v1683 = vld [vmem:[#allocation14 + $0xa8] sm:$0xff]
    %v1684 = vld [vmem:[#allocation14 + $0xb0] sm:$0xf]
    %v1685 = vld [vmem:[#allocation14 + $0xb4] sm:$0xff]
    %v1686 = vld [vmem:[#allocation14 + $0xbc] sm:$0xf]
    %v1687 = vld [vmem:[#allocation16] sm:$0x1]
    %v1688 = vpack.c.bf16 %v1652, %v1651
    %v1689 = vpack.c.bf16 %v1654, %v1653
    %v1722 = vunpack.c.l.b16 %v1655
    %v1723 = vunpack.c.h.b16 %v1655
    %v1724 = vunpack.c.l.b16 %v1656
    %v1725 = vunpack.c.l.b16 %v1657
    %v1726 = vunpack.c.h.b16 %v1657
    %v1727 = vunpack.c.l.b16 %v1658
    %v1728 = vunpack.c.l.b16 %v1659
    %v1729 = vunpack.c.h.b16 %v1659
    %v1730 = vunpack.c.l.b16 %v1660
    %v1731 = vunpack.c.l.b16 %v1661
    %v1732 = vunpack.c.h.b16 %v1661
    %v1733 = vunpack.c.l.b16 %v1662
    %v1734 = vunpack.c.l.b16 %v1663
    %v1735 = vunpack.c.h.b16 %v1663
    %v1736 = vunpack.c.l.b16 %v1664
    %v1737 = vunpack.c.l.b16 %v1665
    %v1738 = vunpack.c.h.b16 %v1665
    %v1739 = vunpack.c.l.b16 %v1666
    %v1740 = vunpack.c.l.b16 %v1667
    %v1741 = vunpack.c.h.b16 %v1667
    %v1742 = vunpack.c.l.b16 %v1668
    %v1743 = vunpack.c.l.b16 %v1669
    %v1744 = vunpack.c.h.b16 %v1669
    %v1745 = vunpack.c.l.b16 %v1670
    %v1746 = vunpack.c.l.b16 %v1671
    %v1747 = vunpack.c.h.b16 %v1671
    %v1748 = vunpack.c.l.b16 %v1672
    %v1749 = vunpack.c.l.b16 %v1673
    %v1750 = vunpack.c.h.b16 %v1673
    %v1751 = vunpack.c.l.b16 %v1674
    %v1752 = vunpack.c.l.b16 %v1675
    %v1753 = vunpack.c.h.b16 %v1675
    %v1754 = vunpack.c.l.b16 %v1676
    %v1755 = vunpack.c.l.b16 %v1677
    %v1756 = vunpack.c.h.b16 %v1677
    %v1757 = vunpack.c.l.b16 %v1678
    %v1758 = vunpack.c.l.b16 %v1679
    %v1759 = vunpack.c.h.b16 %v1679
    %v1760 = vunpack.c.l.b16 %v1680
    %v1761 = vunpack.c.l.b16 %v1681
    %v1762 = vunpack.c.h.b16 %v1681
    %v1763 = vunpack.c.l.b16 %v1682
    %v1764 = vunpack.c.l.b16 %v1683
    %v1765 = vunpack.c.h.b16 %v1683
    %v1766 = vunpack.c.l.b16 %v1684
    %v1767 = vunpack.c.l.b16 %v1685
    %v1768 = vunpack.c.h.b16 %v1685
    %v1769 = vunpack.c.l.b16 %v1686
    %v1770 = vpack.c.b16 %v1725, %v1722
    %v1771 = vpack.c.b16 %v1726, %v1723
    %v1772 = vpack.c.b16 %v1727, %v1724
    %v1773 = vpack.c.b16 %v1731, %v1728
    %v1774 = vpack.c.b16 %v1732, %v1729
    %v1775 = vpack.c.b16 %v1733, %v1730
    %v1776 = vpack.c.b16 %v1737, %v1734
    %v1777 = vpack.c.b16 %v1738, %v1735
    %v1778 = vpack.c.b16 %v1739, %v1736
    %v1779 = vpack.c.b16 %v1743, %v1740
    %v1780 = vpack.c.b16 %v1744, %v1741
    %v1781 = vpack.c.b16 %v1745, %v1742
    %v1782 = vpack.c.b16 %v1749, %v1746
    %v1783 = vpack.c.b16 %v1750, %v1747
    %v1784 = vpack.c.b16 %v1751, %v1748
    %v1785 = vpack.c.b16 %v1755, %v1752
    %v1786 = vpack.c.b16 %v1756, %v1753
    %v1787 = vpack.c.b16 %v1757, %v1754
    %v1788 = vpack.c.b16 %v1761, %v1758
    %v1789 = vpack.c.b16 %v1762, %v1759
    %v1790 = vpack.c.b16 %v1763, %v1760
    %v1791 = vpack.c.b16 %v1767, %v1764
    %v1792 = vpack.c.b16 %v1768, %v1765
    %v1793 = vpack.c.b16 %v1769, %v1766
    %1818 = vmatprep.subr.bf16.mxu0 %v1792
    %1819 = vmatpush1.bf16.msra.mxu0 %v1791
    %1820 = vmatprep.subr.bf16.mxu0 %v1789
    %1821 = vmatpush1.bf16.msra.mxu0 %v1788
    %1822 = vmatprep.subr.bf16.mxu0 %v1786
    %1823 = vmatpush1.bf16.msra.mxu0 %v1785
    %1824 = vmatprep.subr.bf16.mxu0 %v1783
    %1825 = vmatpush1.bf16.msra.mxu0 %v1782
    %1826 = vmatprep.subr.bf16.mxu0 %v1780
    %1827 = vmatpush1.bf16.msra.mxu0 %v1779
    %1828 = vmatprep.subr.bf16.mxu0 %v1777
    %1829 = vmatpush1.bf16.msra.mxu0 %v1776
    %1830 = vmatprep.subr.bf16.mxu0 %v1774
    %1831 = vmatpush1.bf16.msra.mxu0 %v1773
    %1832 = vmatprep.subr.bf16.mxu0 %v1771
    %1833 = vmatpush1.bf16.msra.mxu0 %v1770
    %1834 = vmatprep.subr.bf16.mxu0 0
    %1835 = vmatpush2.bf16.msra.mxu0 0
    %1836 = vmatprep.subr.bf16.mxu0 0
    %1837 = vmatpush2.bf16.msra.mxu0 0
    %1838 = vmatprep.subr.bf16.mxu0 0
    %1839 = vmatpush2.bf16.msra.mxu0 0
    %1840 = vmatprep.subr.bf16.mxu0 0
    %1841 = vmatpush2.bf16.msra.mxu0 0
    %1842 = vmatprep.subr.bf16.mxu0 0
    %1843 = vmatpush2.bf16.msra.mxu0 0
    %1844 = vmatprep.subr.bf16.mxu0 0
    %1845 = vmatpush2.bf16.msra.mxu0 0
    %1846 = vmatprep.subr.bf16.mxu0 0
    %1847 = vmatpush2.bf16.msra.mxu0 0
    %1848 = vmatprep.subr.bf16.mxu0 0
    %1849 = vmatpush2.bf16.msra.mxu0 0
    %1850 = vmatprep.mubr.bf16.mxu0 0
    %1851 = vmatmul.mubr.bf16.gmra.mxu0 %v1688
    %v1852 = vpop.f32.mrf.mxu0
    %v1853 = vadd.f32 0.0, %v1852
    %v1854 = vpop.f32.mrf.mxu0
    %v1855 = vadd.f32 0.0, %v1854
    %v1856 = vpop.f32.mrf.mxu0
    %v1857 = vadd.f32 0.0, %v1856
    %v1858 = vpop.f32.mrf.mxu0
    %v1859 = vadd.f32 0.0, %v1858
    %1860 = vmatprep.mubr.bf16.mxu0 0
    %1861 = vmatmul.mubr.bf16.gmra.mxu0 %v1689
    %v1862 = vpop.f32.mrf.mxu0
    %v1863 = vadd.f32 0.0, %v1862
    %v1864 = vpop.f32.mrf.mxu0
    %v1865 = vadd.f32 0.0, %v1864
    %v1866 = vpop.f32.mrf.mxu0
    %v1867 = vadd.f32 0.0, %v1866
    %v1868 = vpop.f32.mrf.mxu0
    %v1869 = vadd.f32 0.0, %v1868
    %1870 = vdwg.mxu0
    %1871 = vmatprep.subr.bf16.mxu0 0
    %1872 = vmatpush1.bf16.msra.mxu0 %v1793
    %1873 = vmatprep.subr.bf16.mxu0 0
    %1874 = vmatpush1.bf16.msra.mxu0 %v1790
    %1875 = vmatprep.subr.bf16.mxu0 0
    %1876 = vmatpush1.bf16.msra.mxu0 %v1787
    %1877 = vmatprep.subr.bf16.mxu0 0
    %1878 = vmatpush1.bf16.msra.mxu0 %v1784
    %1879 = vmatprep.subr.bf16.mxu0 0
    %1880 = vmatpush1.bf16.msra.mxu0 %v1781
    %1881 = vmatprep.subr.bf16.mxu0 0
    %1882 = vmatpush1.bf16.msra.mxu0 %v1778
    %1883 = vmatprep.subr.bf16.mxu0 0
    %1884 = vmatpush1.bf16.msra.mxu0 %v1775
    %1885 = vmatprep.subr.bf16.mxu0 0
    %1886 = vmatpush1.bf16.msra.mxu0 %v1772
    %1887 = vmatprep.subr.bf16.mxu0 0
    %1888 = vmatpush2.bf16.msra.mxu0 0
    %1889 = vmatprep.subr.bf16.mxu0 0
    %1890 = vmatpush2.bf16.msra.mxu0 0
    %1891 = vmatprep.subr.bf16.mxu0 0
    %1892 = vmatpush2.bf16.msra.mxu0 0
    %1893 = vmatprep.subr.bf16.mxu0 0
    %1894 = vmatpush2.bf16.msra.mxu0 0
    %1895 = vmatprep.subr.bf16.mxu0 0
    %1896 = vmatpush2.bf16.msra.mxu0 0
    %1897 = vmatprep.subr.bf16.mxu0 0
    %1898 = vmatpush2.bf16.msra.mxu0 0
    %1899 = vmatprep.subr.bf16.mxu0 0
    %1900 = vmatpush2.bf16.msra.mxu0 0
    %1901 = vmatprep.subr.bf16.mxu0 0
    %1902 = vmatpush2.bf16.msra.mxu0 0
    %1903 = vmatprep.mubr.bf16.mxu0 0
    %1904 = vmatmul.mubr.bf16.gmra.mxu0 %v1688
    %v1905 = vpop.f32.mrf.mxu0
    %v1906 = vadd.f32 0.0, %v1905
    %v1907 = vpop.f32.mrf.mxu0
    %v1908 = vpop.f32.mrf.mxu0
    %v1909 = vadd.f32 0.0, %v1908
    %v1910 = vpop.f32.mrf.mxu0
    %1911 = vmatprep.mubr.bf16.mxu0 0
    %1912 = vmatmul.mubr.bf16.gmra.mxu0 %v1689
    %v1913 = vpop.f32.mrf.mxu0
    %v1914 = vadd.f32 0.0, %v1913
    %v1915 = vpop.f32.mrf.mxu0
    %v1916 = vpop.f32.mrf.mxu0
    %v1917 = vadd.f32 0.0, %v1916
    %v1918 = vpop.f32.mrf.mxu0
    %1919 = vdwg.mxu0
    %v1920 = vrot.slane %v1853, 7
    %v1921 = vrot.slane %v1857, 7
    %v1922 = vrot.slane %v1863, 7
    %v1923 = vrot.slane %v1867, 7
    %v1924 = vsel %vm654, %v1922, %v1923
    %v1925 = vsel %vm654, %v1921, %v1922
    %v1926 = vsel %vm654, %v1920, %v1921
    %v1927 = vsel %vm654, %v1923, %v1920
    %v1928 = vrot.slane %v1906, 1
    %v1929 = vrot.slane %v1909, 1
    %v1930 = vrot.slane %v1914, 1
    %v1931 = vrot.slane %v1917, 1
    %v1932 = vsel %vm671, %v1930, %v1931
    %v1933 = vsel %vm671, %v1929, %v1930
    %v1934 = vsel %vm671, %v1928, %v1929
    %v1935 = vsel %vm671, %v1931, %v1928
    %v1936 = vmul.f32 %v1588, %v1927
    %v1937 = vmul.f32 %v1593, %v1926
    %v1938 = vmul.f32 %v1598, %v1925
    %v1939 = vmul.f32 %v1603, %v1924
    %v1940 = vadd.f32 %v1936, %v1855
    %v1941 = vadd.f32 %v1937, %v1859
    %v1942 = vadd.f32 %v1938, %v1865
    %v1943 = vadd.f32 %v1939, %v1869
    %v1944 = vmul.f32 %v1616, %v1934
    %v1945 = vmul.f32 %v1621, %v1933
    %v1946 = vmul.f32 %v1626, %v1932
    %v1947 = vmul.f32 %v1631, %v1935
    %v1948 = vadd.f32 %v1940, %v1944
    %v1949 = vadd.f32 %v1941, %v1945
    %v1950 = vadd.f32 %v1942, %v1946
    %v1951 = vadd.f32 %v1943, %v1947
    %v1953 = vlaneseq
    %v1954 = vshrl.u32 %v1953, 7
    %v1955 = vsub.s32 0, %v1954
    %v1956 = vrot.slane %v1687, %v1955
    %v1958 = vadd.f32 %v1948, %v1956
    %v1959 = vadd.f32 %v1949, %v1956
    %v1960 = vadd.f32 %v1950, %v1956
    %v1961 = vadd.f32 %v1951, %v1956
    %v1962 = vmax.f32 %v1958, 0.0
    %v1963 = vmax.f32 %v1959, 0.0
    %v1964 = vmax.f32 %v1960, 0.0
    %v1965 = vmax.f32 %v1961, 0.0
    %v1966 = vld [vmem:[#allocation40] sm:$0xf]
    %v1967 = vld [vmem:[#allocation40 + $0x4] sm:$0xf]
    %v1968 = vld [vmem:[#allocation40 + $0x8] sm:$0xf]
    %v1969 = vld [vmem:[#allocation40 + $0xc] sm:$0xf]
    %v1970 = vld [vmem:[#allocation40 + $0x10] sm:$0xf]
    %v1971 = vld [vmem:[#allocation40 + $0x14] sm:$0xf]
    %v1972 = vld [vmem:[#allocation40 + $0x18] sm:$0xf]
    %v1973 = vld [vmem:[#allocation40 + $0x1c] sm:$0xf]
    %v1974 = vld [vmem:[#allocation40 + $0x20] sm:$0xf]
    %v1975 = vld [vmem:[#allocation40 + $0x24] sm:$0xf]
    %v1976 = vld [vmem:[#allocation40 + $0x28] sm:$0xf]
    %v1977 = vld [vmem:[#allocation40 + $0x2c] sm:$0xf]
    %v1978 = vld [vmem:[#allocation40 + $0x30] sm:$0xf]
    %v1979 = vld [vmem:[#allocation40 + $0x34] sm:$0xf]
    %v1980 = vld [vmem:[#allocation40 + $0x38] sm:$0xf]
    %v1981 = vld [vmem:[#allocation40 + $0x3c] sm:$0xf]
    %v1982 = vrot.slane %v1962, 1
    %v1983 = vrot.slane %v1963, 1
    %v1984 = vrot.slane %v1964, 1
    %v1985 = vrot.slane %v1965, 1
    %v1986 = vsel %vm671, %v1984, %v1985
    %v1987 = vsel %vm671, %v1983, %v1984
    %v1988 = vsel %vm671, %v1982, %v1983
    %v1989 = vsel %vm671, %v1985, %v1982
    %v1990 = vmax.f32 %v1962, %v1988
    %v1991 = vmax.f32 %v1963, %v1987
    %v1992 = vmax.f32 %v1964, %v1986
    %v1993 = vmax.f32 %v1965, %v1989
    %1994 = vst [vmem:[#allocation2] sm:$0xff] %v1990
    %1995 = vst [vmem:[#allocation2 + $0x8] sm:$0xff] %v1991
    %1996 = vst [vmem:[#allocation2 + $0x10] sm:$0xff] %v1992
    %1997 = vst [vmem:[#allocation2 + $0x18] sm:$0xff] %v1993
    %v1998 = vld [vmem:[#allocation2] ss:$2 sm:$0xff]
    %s1999 = scalar_lea.vmem [#allocation2], 16
    %v2000 = vld [vmem:[%s1999] ss:$2 sm:$0xff]
    %2001 = vrot.lane.b32.xlu0 %v1998, 120
    %v2002 = vpop.permute.xlu0 %2001
    %2003 = vrot.lane.b32.xlu0 %v2000, 120
    %v2004 = vpop.permute.xlu0 %2003
    %v2005 = vmax.f32 %v1998, %v2002
    %v2006 = vmax.f32 %v2000, %v2004
    %v2007 = vpack.c.bf16 %v2006, %v2005
    %v2024 = vunpack.c.l.b16 %v1966
    %v2025 = vunpack.c.l.b16 %v1967
    %v2026 = vunpack.c.l.b16 %v1968
    %v2027 = vunpack.c.l.b16 %v1969
    %v2028 = vunpack.c.l.b16 %v1970
    %v2029 = vunpack.c.l.b16 %v1971
    %v2030 = vunpack.c.l.b16 %v1972
    %v2031 = vunpack.c.l.b16 %v1973
    %v2032 = vunpack.c.l.b16 %v1974
    %v2033 = vunpack.c.l.b16 %v1975
    %v2034 = vunpack.c.l.b16 %v1976
    %v2035 = vunpack.c.l.b16 %v1977
    %v2036 = vunpack.c.l.b16 %v1978
    %v2037 = vunpack.c.l.b16 %v1979
    %v2038 = vunpack.c.l.b16 %v1980
    %v2039 = vunpack.c.l.b16 %v1981
    %v2040 = vpack.c.b16 %v2025, %v2024
    %v2041 = vpack.c.b16 %v2027, %v2026
    %v2042 = vpack.c.b16 %v2029, %v2028
    %v2043 = vpack.c.b16 %v2031, %v2030
    %v2044 = vpack.c.b16 %v2033, %v2032
    %v2045 = vpack.c.b16 %v2035, %v2034
    %v2046 = vpack.c.b16 %v2037, %v2036
    %v2047 = vpack.c.b16 %v2039, %v2038
    %2056 = vmatprep.subr.bf16.mxu0 0
    %2057 = vmatpush1.bf16.msra.mxu0 %v2047
    %2058 = vmatprep.subr.bf16.mxu0 0
    %2059 = vmatpush1.bf16.msra.mxu0 %v2046
    %2060 = vmatprep.subr.bf16.mxu0 0
    %2061 = vmatpush1.bf16.msra.mxu0 %v2045
    %2062 = vmatprep.subr.bf16.mxu0 0
    %2063 = vmatpush1.bf16.msra.mxu0 %v2044
    %2064 = vmatprep.subr.bf16.mxu0 0
    %2065 = vmatpush1.bf16.msra.mxu0 %v2043
    %2066 = vmatprep.subr.bf16.mxu0 0
    %2067 = vmatpush1.bf16.msra.mxu0 %v2042
    %2068 = vmatprep.subr.bf16.mxu0 0
    %2069 = vmatpush1.bf16.msra.mxu0 %v2041
    %2070 = vmatprep.subr.bf16.mxu0 0
    %2071 = vmatpush1.bf16.msra.mxu0 %v2040
    %2072 = vmatprep.subr.bf16.mxu0 0
    %2073 = vmatpush2.bf16.msra.mxu0 0
    %2074 = vmatprep.subr.bf16.mxu0 0
    %2075 = vmatpush2.bf16.msra.mxu0 0
    %2076 = vmatprep.subr.bf16.mxu0 0
    %2077 = vmatpush2.bf16.msra.mxu0 0
    %2078 = vmatprep.subr.bf16.mxu0 0
    %2079 = vmatpush2.bf16.msra.mxu0 0
    %2080 = vmatprep.subr.bf16.mxu0 0
    %2081 = vmatpush2.bf16.msra.mxu0 0
    %2082 = vmatprep.subr.bf16.mxu0 0
    %2083 = vmatpush2.bf16.msra.mxu0 0
    %2084 = vmatprep.subr.bf16.mxu0 0
    %2085 = vmatpush2.bf16.msra.mxu0 0
    %2086 = vmatprep.subr.bf16.mxu0 0
    %2087 = vmatpush2.bf16.msra.mxu0 0
    %2088 = vmatprep.mubr.bf16.mxu0 0
    %2089 = vmatmul.mubr.bf16.gmra.mxu0 %v2007
    %v2090 = vpop.f32.mrf.mxu0
    %v2091 = vadd.f32 0.0, %v2090
    %v2092 = vpop.f32.mrf.mxu0
    %v2093 = vpop.f32.mrf.mxu0
    %v2094 = vadd.f32 0.0, %v2093
    %v2095 = vpop.f32.mrf.mxu0
    %2096 = vdwg.mxu0
    %v2097 = vld [vmem:[#allocation17] sm:$0xff]
    %v2098 = vld [vmem:[#allocation17 + $0x8] sm:$0xf]
    %v2099 = vld [vmem:[#allocation17 + $0xc] sm:$0xff]
    %v2100 = vld [vmem:[#allocation17 + $0x14] sm:$0xf]
    %v2101 = vld [vmem:[#allocation17 + $0x18] sm:$0xff]
    %v2102 = vld [vmem:[#allocation17 + $0x20] sm:$0xf]
    %v2103 = vld [vmem:[#allocation17 + $0x24] sm:$0xff]
    %v2104 = vld [vmem:[#allocation17 + $0x2c] sm:$0xf]
    %v2105 = vld [vmem:[#allocation17 + $0x30] sm:$0xff]
    %v2106 = vld [vmem:[#allocation17 + $0x38] sm:$0xf]
    %v2107 = vld [vmem:[#allocation17 + $0x3c] sm:$0xff]
    %v2108 = vld [vmem:[#allocation17 + $0x44] sm:$0xf]
    %v2109 = vld [vmem:[#allocation17 + $0x48] sm:$0xff]
    %v2110 = vld [vmem:[#allocation17 + $0x50] sm:$0xf]
    %v2111 = vld [vmem:[#allocation17 + $0x54] sm:$0xff]
    %v2112 = vld [vmem:[#allocation17 + $0x5c] sm:$0xf]
    %v2113 = vld [vmem:[#allocation19] sm:$0x1]
    %v2114 = vld [vmem:[#allocation34] sm:$0xff]
    %v2115 = vld [vmem:[#allocation34 + $0x8] sm:$0xff]
    %v2116 = vld [vmem:[#allocation35] sm:$0xff]
    %v2117 = vld [vmem:[#allocation35 + $0x8] sm:$0xff]
    %v2118 = vpack.c.bf16 %v2094, %v2091
    %v2135 = vunpack.c.l.b16 %v2097
    %v2136 = vunpack.c.h.b16 %v2097
    %v2137 = vunpack.c.l.b16 %v2098
    %v2138 = vunpack.c.l.b16 %v2099
    %v2139 = vunpack.c.h.b16 %v2099
    %v2140 = vunpack.c.l.b16 %v2100
    %v2141 = vunpack.c.l.b16 %v2101
    %v2142 = vunpack.c.h.b16 %v2101
    %v2143 = vunpack.c.l.b16 %v2102
    %v2144 = vunpack.c.l.b16 %v2103
    %v2145 = vunpack.c.h.b16 %v2103
    %v2146 = vunpack.c.l.b16 %v2104
    %v2147 = vunpack.c.l.b16 %v2105
    %v2148 = vunpack.c.h.b16 %v2105
    %v2149 = vunpack.c.l.b16 %v2106
    %v2150 = vunpack.c.l.b16 %v2107
    %v2151 = vunpack.c.h.b16 %v2107
    %v2152 = vunpack.c.l.b16 %v2108
    %v2153 = vunpack.c.l.b16 %v2109
    %v2154 = vunpack.c.h.b16 %v2109
    %v2155 = vunpack.c.l.b16 %v2110
    %v2156 = vunpack.c.l.b16 %v2111
    %v2157 = vunpack.c.h.b16 %v2111
    %v2158 = vunpack.c.l.b16 %v2112
    %v2159 = vpack.c.b16 %v2138, %v2135
    %v2160 = vpack.c.b16 %v2139, %v2136
    %v2161 = vpack.c.b16 %v2140, %v2137
    %v2162 = vpack.c.b16 %v2144, %v2141
    %v2163 = vpack.c.b16 %v2145, %v2142
    %v2164 = vpack.c.b16 %v2146, %v2143
    %v2165 = vpack.c.b16 %v2150, %v2147
    %v2166 = vpack.c.b16 %v2151, %v2148
    %v2167 = vpack.c.b16 %v2152, %v2149
    %v2168 = vpack.c.b16 %v2156, %v2153
    %v2169 = vpack.c.b16 %v2157, %v2154
    %v2170 = vpack.c.b16 %v2158, %v2155
    %v2184 = vsel %vm1460, %v2118, 0
    %2186 = vmatprep.subr.bf16.mxu0 0
    %2187 = vmatpush1.bf16.msra.mxu0 0
    %2188 = vmatprep.subr.bf16.mxu0 0
    %2189 = vmatpush1.bf16.msra.mxu0 0
    %2190 = vmatprep.subr.bf16.mxu0 0
    %2191 = vmatpush1.bf16.msra.mxu0 0
    %2192 = vmatprep.subr.bf16.mxu0 0
    %2193 = vmatpush1.bf16.msra.mxu0 0
    %2194 = vmatprep.subr.bf16.mxu0 %v2169
    %2195 = vmatpush1.bf16.msra.mxu0 %v2168
    %2196 = vmatprep.subr.bf16.mxu0 %v2166
    %2197 = vmatpush1.bf16.msra.mxu0 %v2165
    %2198 = vmatprep.subr.bf16.mxu0 %v2163
    %2199 = vmatpush1.bf16.msra.mxu0 %v2162
    %2200 = vmatprep.subr.bf16.mxu0 %v2160
    %2201 = vmatpush1.bf16.msra.mxu0 %v2159
    %2202 = vmatprep.subr.bf16.mxu0 0
    %2203 = vmatpush2.bf16.msra.mxu0 0
    %2204 = vmatprep.subr.bf16.mxu0 0
    %2205 = vmatpush2.bf16.msra.mxu0 0
    %2206 = vmatprep.subr.bf16.mxu0 0
    %2207 = vmatpush2.bf16.msra.mxu0 0
    %2208 = vmatprep.subr.bf16.mxu0 0
    %2209 = vmatpush2.bf16.msra.mxu0 0
    %2210 = vmatprep.subr.bf16.mxu0 0
    %2211 = vmatpush2.bf16.msra.mxu0 0
    %2212 = vmatprep.subr.bf16.mxu0 0
    %2213 = vmatpush2.bf16.msra.mxu0 0
    %2214 = vmatprep.subr.bf16.mxu0 0
    %2215 = vmatpush2.bf16.msra.mxu0 0
    %2216 = vmatprep.subr.bf16.mxu0 0
    %2217 = vmatpush2.bf16.msra.mxu0 0
    %2218 = vmatprep.mubr.bf16.mxu0 0
    %2219 = vmatmul.mubr.bf16.gmra.mxu0 %v2184
    %v2220 = vpop.f32.mrf.mxu0
    %v2221 = vadd.f32 0.0, %v2220
    %v2222 = vpop.f32.mrf.mxu0
    %v2223 = vadd.f32 0.0, %v2222
    %v2224 = vpop.f32.mrf.mxu0
    %v2225 = vadd.f32 0.0, %v2224
    %v2226 = vpop.f32.mrf.mxu0
    %v2227 = vadd.f32 0.0, %v2226
    %2228 = vdwg.mxu0
    %2229 = vmatprep.subr.bf16.mxu0 0
    %2230 = vmatpush1.bf16.msra.mxu0 0
    %2231 = vmatprep.subr.bf16.mxu0 0
    %2232 = vmatpush1.bf16.msra.mxu0 0
    %2233 = vmatprep.subr.bf16.mxu0 0
    %2234 = vmatpush1.bf16.msra.mxu0 0
    %2235 = vmatprep.subr.bf16.mxu0 0
    %2236 = vmatpush1.bf16.msra.mxu0 0
    %2237 = vmatprep.subr.bf16.mxu0 0
    %2238 = vmatpush1.bf16.msra.mxu0 %v2170
    %2239 = vmatprep.subr.bf16.mxu0 0
    %2240 = vmatpush1.bf16.msra.mxu0 %v2167
    %2241 = vmatprep.subr.bf16.mxu0 0
    %2242 = vmatpush1.bf16.msra.mxu0 %v2164
    %2243 = vmatprep.subr.bf16.mxu0 0
    %2244 = vmatpush1.bf16.msra.mxu0 %v2161
    %2245 = vmatprep.subr.bf16.mxu0 0
    %2246 = vmatpush2.bf16.msra.mxu0 0
    %2247 = vmatprep.subr.bf16.mxu0 0
    %2248 = vmatpush2.bf16.msra.mxu0 0
    %2249 = vmatprep.subr.bf16.mxu0 0
    %2250 = vmatpush2.bf16.msra.mxu0 0
    %2251 = vmatprep.subr.bf16.mxu0 0
    %2252 = vmatpush2.bf16.msra.mxu0 0
    %2253 = vmatprep.subr.bf16.mxu0 0
    %2254 = vmatpush2.bf16.msra.mxu0 0
    %2255 = vmatprep.subr.bf16.mxu0 0
    %2256 = vmatpush2.bf16.msra.mxu0 0
    %2257 = vmatprep.subr.bf16.mxu0 0
    %2258 = vmatpush2.bf16.msra.mxu0 0
    %2259 = vmatprep.subr.bf16.mxu0 0
    %2260 = vmatpush2.bf16.msra.mxu0 0
    %2261 = vmatprep.mubr.bf16.mxu0 0
    %2262 = vmatmul.mubr.bf16.gmra.mxu0 %v2184
    %v2263 = vpop.f32.mrf.mxu0
    %v2264 = vadd.f32 0.0, %v2263
    %v2265 = vpop.f32.mrf.mxu0
    %v2266 = vpop.f32.mrf.mxu0
    %v2267 = vadd.f32 0.0, %v2266
    %v2268 = vpop.f32.mrf.mxu0
    %2269 = vdwg.mxu0
    %v2270 = vrot.slane %v2221, 7
    %v2271 = vrot.slane %v2225, 7
    %v2272 = vsel %vm654, %v2270, %v2271
    %v2273 = vsel %vm654, %v2271, %v2270
    %v2274 = vrot.slane %v2264, 1
    %v2275 = vrot.slane %v2267, 1
    %v2276 = vsel %vm671, %v2274, %v2275
    %v2277 = vsel %vm671, %v2275, %v2274
    %2279 = vset.pattern.permute.xlu0 0
    %2280 = vperm.xlu0 %2279, %v2114
    %v2281 = vpop.permute.xlu0 %2280
    %2284 = vset.pattern.permute.xlu0 0
    %2285 = vperm.xlu0 %2284, %v2115
    %v2286 = vpop.permute.xlu0 %2285
    %v2288 = vmul.f32 %v2281, %v2273
    %v2289 = vmul.f32 %v2286, %v2272
    %v2290 = vadd.f32 %v2288, %v2223
    %v2291 = vadd.f32 %v2289, %v2227
    %2293 = vset.pattern.permute.xlu0 0
    %2294 = vperm.xlu0 %2293, %v2116
    %v2295 = vpop.permute.xlu0 %2294
    %2298 = vset.pattern.permute.xlu0 0
    %2299 = vperm.xlu0 %2298, %v2117
    %v2300 = vpop.permute.xlu0 %2299
    %v2302 = vmul.f32 %v2295, %v2276
    %v2303 = vmul.f32 %v2300, %v2277
    %v2304 = vadd.f32 %v2290, %v2302
    %v2305 = vadd.f32 %v2291, %v2303
    %v2307 = vlaneseq
    %v2308 = vshrl.u32 %v2307, 7
    %v2309 = vsub.s32 0, %v2308
    %v2310 = vrot.slane %v2113, %v2309
    %v2312 = vadd.f32 %v2304, %v2310
    %v2313 = vadd.f32 %v2305, %v2310
    %v2314 = vmax.f32 %v2312, 0.0
    %v2315 = vmax.f32 %v2313, 0.0
    %v2316 = vld [vmem:[#allocation20] sm:$0xff]
    %v2317 = vld [vmem:[#allocation20 + $0x8] sm:$0xf]
    %v2318 = vld [vmem:[#allocation20 + $0xc] sm:$0xff]
    %v2319 = vld [vmem:[#allocation20 + $0x14] sm:$0xf]
    %v2320 = vld [vmem:[#allocation20 + $0x18] sm:$0xff]
    %v2321 = vld [vmem:[#allocation20 + $0x20] sm:$0xf]
    %v2322 = vld [vmem:[#allocation20 + $0x24] sm:$0xff]
    %v2323 = vld [vmem:[#allocation20 + $0x2c] sm:$0xf]
    %v2324 = vld [vmem:[#allocation20 + $0x30] sm:$0xff]
    %v2325 = vld [vmem:[#allocation20 + $0x38] sm:$0xf]
    %v2326 = vld [vmem:[#allocation20 + $0x3c] sm:$0xff]
    %v2327 = vld [vmem:[#allocation20 + $0x44] sm:$0xf]
    %v2328 = vld [vmem:[#allocation20 + $0x48] sm:$0xff]
    %v2329 = vld [vmem:[#allocation20 + $0x50] sm:$0xf]
    %v2330 = vld [vmem:[#allocation20 + $0x54] sm:$0xff]
    %v2331 = vld [vmem:[#allocation20 + $0x5c] sm:$0xf]
    %v2332 = vld [vmem:[#allocation20 + $0x60] sm:$0xff]
    %v2333 = vld [vmem:[#allocation20 + $0x68] sm:$0xf]
    %v2334 = vld [vmem:[#allocation20 + $0x6c] sm:$0xff]
    %v2335 = vld [vmem:[#allocation20 + $0x74] sm:$0xf]
    %v2336 = vld [vmem:[#allocation20 + $0x78] sm:$0xff]
    %v2337 = vld [vmem:[#allocation20 + $0x80] sm:$0xf]
    %v2338 = vld [vmem:[#allocation20 + $0x84] sm:$0xff]
    %v2339 = vld [vmem:[#allocation20 + $0x8c] sm:$0xf]
    %v2340 = vld [vmem:[#allocation20 + $0x90] sm:$0xff]
    %v2341 = vld [vmem:[#allocation20 + $0x98] sm:$0xf]
    %v2342 = vld [vmem:[#allocation20 + $0x9c] sm:$0xff]
    %v2343 = vld [vmem:[#allocation20 + $0xa4] sm:$0xf]
    %v2344 = vld [vmem:[#allocation20 + $0xa8] sm:$0xff]
    %v2345 = vld [vmem:[#allocation20 + $0xb0] sm:$0xf]
    %v2346 = vld [vmem:[#allocation20 + $0xb4] sm:$0xff]
    %v2347 = vld [vmem:[#allocation20 + $0xbc] sm:$0xf]
    %v2348 = vld [vmem:[#allocation22] sm:$0x1]
    %v2349 = vpack.c.bf16 %v2315, %v2314
    %v2382 = vunpack.c.l.b16 %v2316
    %v2383 = vunpack.c.h.b16 %v2316
    %v2384 = vunpack.c.l.b16 %v2317
    %v2385 = vunpack.c.l.b16 %v2318
    %v2386 = vunpack.c.h.b16 %v2318
    %v2387 = vunpack.c.l.b16 %v2319
    %v2388 = vunpack.c.l.b16 %v2320
    %v2389 = vunpack.c.h.b16 %v2320
    %v2390 = vunpack.c.l.b16 %v2321
    %v2391 = vunpack.c.l.b16 %v2322
    %v2392 = vunpack.c.h.b16 %v2322
    %v2393 = vunpack.c.l.b16 %v2323
    %v2394 = vunpack.c.l.b16 %v2324
    %v2395 = vunpack.c.h.b16 %v2324
    %v2396 = vunpack.c.l.b16 %v2325
    %v2397 = vunpack.c.l.b16 %v2326
    %v2398 = vunpack.c.h.b16 %v2326
    %v2399 = vunpack.c.l.b16 %v2327
    %v2400 = vunpack.c.l.b16 %v2328
    %v2401 = vunpack.c.h.b16 %v2328
    %v2402 = vunpack.c.l.b16 %v2329
    %v2403 = vunpack.c.l.b16 %v2330
    %v2404 = vunpack.c.h.b16 %v2330
    %v2405 = vunpack.c.l.b16 %v2331
    %v2406 = vunpack.c.l.b16 %v2332
    %v2407 = vunpack.c.h.b16 %v2332
    %v2408 = vunpack.c.l.b16 %v2333
    %v2409 = vunpack.c.l.b16 %v2334
    %v2410 = vunpack.c.h.b16 %v2334
    %v2411 = vunpack.c.l.b16 %v2335
    %v2412 = vunpack.c.l.b16 %v2336
    %v2413 = vunpack.c.h.b16 %v2336
    %v2414 = vunpack.c.l.b16 %v2337
    %v2415 = vunpack.c.l.b16 %v2338
    %v2416 = vunpack.c.h.b16 %v2338
    %v2417 = vunpack.c.l.b16 %v2339
    %v2418 = vunpack.c.l.b16 %v2340
    %v2419 = vunpack.c.h.b16 %v2340
    %v2420 = vunpack.c.l.b16 %v2341
    %v2421 = vunpack.c.l.b16 %v2342
    %v2422 = vunpack.c.h.b16 %v2342
    %v2423 = vunpack.c.l.b16 %v2343
    %v2424 = vunpack.c.l.b16 %v2344
    %v2425 = vunpack.c.h.b16 %v2344
    %v2426 = vunpack.c.l.b16 %v2345
    %v2427 = vunpack.c.l.b16 %v2346
    %v2428 = vunpack.c.h.b16 %v2346
    %v2429 = vunpack.c.l.b16 %v2347
    %v2430 = vpack.c.b16 %v2385, %v2382
    %v2431 = vpack.c.b16 %v2386, %v2383
    %v2432 = vpack.c.b16 %v2387, %v2384
    %v2433 = vpack.c.b16 %v2391, %v2388
    %v2434 = vpack.c.b16 %v2392, %v2389
    %v2435 = vpack.c.b16 %v2393, %v2390
    %v2436 = vpack.c.b16 %v2397, %v2394
    %v2437 = vpack.c.b16 %v2398, %v2395
    %v2438 = vpack.c.b16 %v2399, %v2396
    %v2439 = vpack.c.b16 %v2403, %v2400
    %v2440 = vpack.c.b16 %v2404, %v2401
    %v2441 = vpack.c.b16 %v2405, %v2402
    %v2442 = vpack.c.b16 %v2409, %v2406
    %v2443 = vpack.c.b16 %v2410, %v2407
    %v2444 = vpack.c.b16 %v2411, %v2408
    %v2445 = vpack.c.b16 %v2415, %v2412
    %v2446 = vpack.c.b16 %v2416, %v2413
    %v2447 = vpack.c.b16 %v2417, %v2414
    %v2448 = vpack.c.b16 %v2421, %v2418
    %v2449 = vpack.c.b16 %v2422, %v2419
    %v2450 = vpack.c.b16 %v2423, %v2420
    %v2451 = vpack.c.b16 %v2427, %v2424
    %v2452 = vpack.c.b16 %v2428, %v2425
    %v2453 = vpack.c.b16 %v2429, %v2426
    %2478 = vmatprep.subr.bf16.mxu0 %v2452
    %2479 = vmatpush1.bf16.msra.mxu0 %v2451
    %2480 = vmatprep.subr.bf16.mxu0 %v2449
    %2481 = vmatpush1.bf16.msra.mxu0 %v2448
    %2482 = vmatprep.subr.bf16.mxu0 %v2446
    %2483 = vmatpush1.bf16.msra.mxu0 %v2445
    %2484 = vmatprep.subr.bf16.mxu0 %v2443
    %2485 = vmatpush1.bf16.msra.mxu0 %v2442
    %2486 = vmatprep.subr.bf16.mxu0 %v2440
    %2487 = vmatpush1.bf16.msra.mxu0 %v2439
    %2488 = vmatprep.subr.bf16.mxu0 %v2437
    %2489 = vmatpush1.bf16.msra.mxu0 %v2436
    %2490 = vmatprep.subr.bf16.mxu0 %v2434
    %2491 = vmatpush1.bf16.msra.mxu0 %v2433
    %2492 = vmatprep.subr.bf16.mxu0 %v2431
    %2493 = vmatpush1.bf16.msra.mxu0 %v2430
    %2494 = vmatprep.subr.bf16.mxu0 0
    %2495 = vmatpush2.bf16.msra.mxu0 0
    %2496 = vmatprep.subr.bf16.mxu0 0
    %2497 = vmatpush2.bf16.msra.mxu0 0
    %2498 = vmatprep.subr.bf16.mxu0 0
    %2499 = vmatpush2.bf16.msra.mxu0 0
    %2500 = vmatprep.subr.bf16.mxu0 0
    %2501 = vmatpush2.bf16.msra.mxu0 0
    %2502 = vmatprep.subr.bf16.mxu0 0
    %2503 = vmatpush2.bf16.msra.mxu0 0
    %2504 = vmatprep.subr.bf16.mxu0 0
    %2505 = vmatpush2.bf16.msra.mxu0 0
    %2506 = vmatprep.subr.bf16.mxu0 0
    %2507 = vmatpush2.bf16.msra.mxu0 0
    %2508 = vmatprep.subr.bf16.mxu0 0
    %2509 = vmatpush2.bf16.msra.mxu0 0
    %2510 = vmatprep.mubr.bf16.mxu0 0
    %2511 = vmatmul.mubr.bf16.gmra.mxu0 %v2349
    %v2512 = vpop.f32.mrf.mxu0
    %v2513 = vadd.f32 0.0, %v2512
    %v2514 = vpop.f32.mrf.mxu0
    %v2515 = vadd.f32 0.0, %v2514
    %v2516 = vpop.f32.mrf.mxu0
    %v2517 = vadd.f32 0.0, %v2516
    %v2518 = vpop.f32.mrf.mxu0
    %v2519 = vadd.f32 0.0, %v2518
    %2520 = vdwg.mxu0
    %2521 = vmatprep.subr.bf16.mxu0 0
    %2522 = vmatpush1.bf16.msra.mxu0 %v2453
    %2523 = vmatprep.subr.bf16.mxu0 0
    %2524 = vmatpush1.bf16.msra.mxu0 %v2450
    %2525 = vmatprep.subr.bf16.mxu0 0
    %2526 = vmatpush1.bf16.msra.mxu0 %v2447
    %2527 = vmatprep.subr.bf16.mxu0 0
    %2528 = vmatpush1.bf16.msra.mxu0 %v2444
    %2529 = vmatprep.subr.bf16.mxu0 0
    %2530 = vmatpush1.bf16.msra.mxu0 %v2441
    %2531 = vmatprep.subr.bf16.mxu0 0
    %2532 = vmatpush1.bf16.msra.mxu0 %v2438
    %2533 = vmatprep.subr.bf16.mxu0 0
    %2534 = vmatpush1.bf16.msra.mxu0 %v2435
    %2535 = vmatprep.subr.bf16.mxu0 0
    %2536 = vmatpush1.bf16.msra.mxu0 %v2432
    %2537 = vmatprep.subr.bf16.mxu0 0
    %2538 = vmatpush2.bf16.msra.mxu0 0
    %2539 = vmatprep.subr.bf16.mxu0 0
    %2540 = vmatpush2.bf16.msra.mxu0 0
    %2541 = vmatprep.subr.bf16.mxu0 0
    %2542 = vmatpush2.bf16.msra.mxu0 0
    %2543 = vmatprep.subr.bf16.mxu0 0
    %2544 = vmatpush2.bf16.msra.mxu0 0
    %2545 = vmatprep.subr.bf16.mxu0 0
    %2546 = vmatpush2.bf16.msra.mxu0 0
    %2547 = vmatprep.subr.bf16.mxu0 0
    %2548 = vmatpush2.bf16.msra.mxu0 0
    %2549 = vmatprep.subr.bf16.mxu0 0
    %2550 = vmatpush2.bf16.msra.mxu0 0
    %2551 = vmatprep.subr.bf16.mxu0 0
    %2552 = vmatpush2.bf16.msra.mxu0 0
    %2553 = vmatprep.mubr.bf16.mxu0 0
    %2554 = vmatmul.mubr.bf16.gmra.mxu0 %v2349
    %v2555 = vpop.f32.mrf.mxu0
    %v2556 = vadd.f32 0.0, %v2555
    %v2557 = vpop.f32.mrf.mxu0
    %v2558 = vpop.f32.mrf.mxu0
    %v2559 = vadd.f32 0.0, %v2558
    %v2560 = vpop.f32.mrf.mxu0
    %2561 = vdwg.mxu0
    %v2562 = vrot.slane %v2513, 7
    %v2563 = vrot.slane %v2517, 7
    %v2564 = vsel %vm654, %v2562, %v2563
    %v2565 = vsel %vm654, %v2563, %v2562
    %v2566 = vrot.slane %v2556, 1
    %v2567 = vrot.slane %v2559, 1
    %v2568 = vsel %vm671, %v2566, %v2567
    %v2569 = vsel %vm671, %v2567, %v2566
    %v2570 = vmul.f32 %v2281, %v2565
    %v2571 = vmul.f32 %v2286, %v2564
    %v2572 = vadd.f32 %v2570, %v2515
    %v2573 = vadd.f32 %v2571, %v2519
    %v2574 = vmul.f32 %v2295, %v2568
    %v2575 = vmul.f32 %v2300, %v2569
    %v2576 = vadd.f32 %v2572, %v2574
    %v2577 = vadd.f32 %v2573, %v2575
    %v2579 = vlaneseq
    %v2580 = vshrl.u32 %v2579, 7
    %v2581 = vsub.s32 0, %v2580
    %v2582 = vrot.slane %v2348, %v2581
    %v2584 = vadd.f32 %v2576, %v2582
    %v2585 = vadd.f32 %v2577, %v2582
    %v2586 = vmax.f32 %v2584, 0.0
    %v2587 = vmax.f32 %v2585, 0.0
    %v2588 = vld [vmem:[#allocation41] sm:$0xf]
    %v2589 = vld [vmem:[#allocation41 + $0x4] sm:$0xf]
    %v2590 = vld [vmem:[#allocation41 + $0x8] sm:$0xf]
    %v2591 = vld [vmem:[#allocation41 + $0xc] sm:$0xf]
    %v2592 = vld [vmem:[#allocation41 + $0x10] sm:$0xf]
    %v2593 = vld [vmem:[#allocation41 + $0x14] sm:$0xf]
    %v2594 = vld [vmem:[#allocation41 + $0x18] sm:$0xf]
    %v2595 = vld [vmem:[#allocation41 + $0x1c] sm:$0xf]
    %v2596 = vld [vmem:[#allocation41 + $0x20] sm:$0xf]
    %v2597 = vld [vmem:[#allocation41 + $0x24] sm:$0xf]
    %v2598 = vld [vmem:[#allocation41 + $0x28] sm:$0xf]
    %v2599 = vld [vmem:[#allocation41 + $0x2c] sm:$0xf]
    %v2600 = vld [vmem:[#allocation41 + $0x30] sm:$0xf]
    %v2601 = vld [vmem:[#allocation41 + $0x34] sm:$0xf]
    %v2602 = vld [vmem:[#allocation41 + $0x38] sm:$0xf]
    %v2603 = vld [vmem:[#allocation41 + $0x3c] sm:$0xf]
    %v2604 = vrot.slane %v2586, 1
    %v2605 = vrot.slane %v2587, 1
    %v2606 = vsel %vm671, %v2604, %v2605
    %v2607 = vsel %vm671, %v2605, %v2604
    %v2608 = vmax.f32 %v2586, %v2606
    %v2609 = vmax.f32 %v2587, %v2607
    %2610 = vst [vmem:[#allocation2] sm:$0xff] %v2608
    %2611 = vst [vmem:[#allocation2 + $0x8] sm:$0xff] %v2609
    %v2612 = vld [vmem:[#allocation2] ss:$2 sm:$0xff]
    %2613 = vrot.lane.b32.xlu0 %v2612, 112
    %v2614 = vpop.permute.xlu0 %2613
    %v2615 = vmax.f32 %v2612, %v2614
    %v2616 = vpack.c.bf16 %v2615, %v2615
    %v2633 = vunpack.c.l.b16 %v2588
    %v2634 = vunpack.c.l.b16 %v2589
    %v2635 = vunpack.c.l.b16 %v2590
    %v2636 = vunpack.c.l.b16 %v2591
    %v2637 = vunpack.c.l.b16 %v2592
    %v2638 = vunpack.c.l.b16 %v2593
    %v2639 = vunpack.c.l.b16 %v2594
    %v2640 = vunpack.c.l.b16 %v2595
    %v2641 = vunpack.c.l.b16 %v2596
    %v2642 = vunpack.c.l.b16 %v2597
    %v2643 = vunpack.c.l.b16 %v2598
    %v2644 = vunpack.c.l.b16 %v2599
    %v2645 = vunpack.c.l.b16 %v2600
    %v2646 = vunpack.c.l.b16 %v2601
    %v2647 = vunpack.c.l.b16 %v2602
    %v2648 = vunpack.c.l.b16 %v2603
    %v2649 = vpack.c.b16 %v2634, %v2633
    %v2650 = vpack.c.b16 %v2636, %v2635
    %v2651 = vpack.c.b16 %v2638, %v2637
    %v2652 = vpack.c.b16 %v2640, %v2639
    %v2653 = vpack.c.b16 %v2642, %v2641
    %v2654 = vpack.c.b16 %v2644, %v2643
    %v2655 = vpack.c.b16 %v2646, %v2645
    %v2656 = vpack.c.b16 %v2648, %v2647
    %2665 = vmatprep.subr.bf16.mxu0 0
    %2666 = vmatpush1.bf16.msra.mxu0 %v2656
    %2667 = vmatprep.subr.bf16.mxu0 0
    %2668 = vmatpush1.bf16.msra.mxu0 %v2655
    %2669 = vmatprep.subr.bf16.mxu0 0
    %2670 = vmatpush1.bf16.msra.mxu0 %v2654
    %2671 = vmatprep.subr.bf16.mxu0 0
    %2672 = vmatpush1.bf16.msra.mxu0 %v2653
    %2673 = vmatprep.subr.bf16.mxu0 0
    %2674 = vmatpush1.bf16.msra.mxu0 %v2652
    %2675 = vmatprep.subr.bf16.mxu0 0
    %2676 = vmatpush1.bf16.msra.mxu0 %v2651
    %2677 = vmatprep.subr.bf16.mxu0 0
    %2678 = vmatpush1.bf16.msra.mxu0 %v2650
    %2679 = vmatprep.subr.bf16.mxu0 0
    %2680 = vmatpush1.bf16.msra.mxu0 %v2649
    %2681 = vmatprep.subr.bf16.mxu0 0
    %2682 = vmatpush2.bf16.msra.mxu0 0
    %2683 = vmatprep.subr.bf16.mxu0 0
    %2684 = vmatpush2.bf16.msra.mxu0 0
    %2685 = vmatprep.subr.bf16.mxu0 0
    %2686 = vmatpush2.bf16.msra.mxu0 0
    %2687 = vmatprep.subr.bf16.mxu0 0
    %2688 = vmatpush2.bf16.msra.mxu0 0
    %2689 = vmatprep.subr.bf16.mxu0 0
    %2690 = vmatpush2.bf16.msra.mxu0 0
    %2691 = vmatprep.subr.bf16.mxu0 0
    %2692 = vmatpush2.bf16.msra.mxu0 0
    %2693 = vmatprep.subr.bf16.mxu0 0
    %2694 = vmatpush2.bf16.msra.mxu0 0
    %2695 = vmatprep.subr.bf16.mxu0 0
    %2696 = vmatpush2.bf16.msra.mxu0 0
    %2697 = vmatprep.mubr.bf16.mxu0 0
    %2698 = vmatmul.mubr.bf16.gmra.mxu0 %v2616
    %v2699 = vpop.f32.mrf.mxu0
    %v2700 = vadd.f32 0.0, %v2699
    %v2701 = vpop.f32.mrf.mxu0
    %v2702 = vpop.f32.mrf.mxu0
    %v2703 = vpop.f32.mrf.mxu0
    %2704 = vdwg.mxu0
    %v2705 = vld [vmem:[#allocation23] sm:$0xff]
    %v2706 = vld [vmem:[#allocation23 + $0x8] sm:$0xf]
    %v2707 = vld [vmem:[#allocation23 + $0xc] sm:$0xff]
    %v2708 = vld [vmem:[#allocation23 + $0x14] sm:$0xf]
    %v2709 = vld [vmem:[#allocation23 + $0x18] sm:$0xff]
    %v2710 = vld [vmem:[#allocation23 + $0x20] sm:$0xf]
    %v2711 = vld [vmem:[#allocation23 + $0x24] sm:$0xff]
    %v2712 = vld [vmem:[#allocation23 + $0x2c] sm:$0xf]
    %v2713 = vld [vmem:[#allocation23 + $0x30] sm:$0xff]
    %v2714 = vld [vmem:[#allocation23 + $0x38] sm:$0xf]
    %v2715 = vld [vmem:[#allocation23 + $0x3c] sm:$0xff]
    %v2716 = vld [vmem:[#allocation23 + $0x44] sm:$0xf]
    %v2717 = vld [vmem:[#allocation23 + $0x48] sm:$0xff]
    %v2718 = vld [vmem:[#allocation23 + $0x50] sm:$0xf]
    %v2719 = vld [vmem:[#allocation23 + $0x54] sm:$0xff]
    %v2720 = vld [vmem:[#allocation23 + $0x5c] sm:$0xf]
    %v2721 = vld [vmem:[#allocation25] sm:$0x1]
    %v2722 = vld [vmem:[#allocation37] sm:$0xff]
    %v2723 = vld [vmem:[%s24] sm:$0xff]
    %v2724 = vpack.c.bf16 %v2700, %v2700
    %v2741 = vunpack.c.l.b16 %v2705
    %v2742 = vunpack.c.h.b16 %v2705
    %v2743 = vunpack.c.l.b16 %v2706
    %v2744 = vunpack.c.l.b16 %v2707
    %v2745 = vunpack.c.h.b16 %v2707
    %v2746 = vunpack.c.l.b16 %v2708
    %v2747 = vunpack.c.l.b16 %v2709
    %v2748 = vunpack.c.h.b16 %v2709
    %v2749 = vunpack.c.l.b16 %v2710
    %v2750 = vunpack.c.l.b16 %v2711
    %v2751 = vunpack.c.h.b16 %v2711
    %v2752 = vunpack.c.l.b16 %v2712
    %v2753 = vunpack.c.l.b16 %v2713
    %v2754 = vunpack.c.h.b16 %v2713
    %v2755 = vunpack.c.l.b16 %v2714
    %v2756 = vunpack.c.l.b16 %v2715
    %v2757 = vunpack.c.h.b16 %v2715
    %v2758 = vunpack.c.l.b16 %v2716
    %v2759 = vunpack.c.l.b16 %v2717
    %v2760 = vunpack.c.h.b16 %v2717
    %v2761 = vunpack.c.l.b16 %v2718
    %v2762 = vunpack.c.l.b16 %v2719
    %v2763 = vunpack.c.h.b16 %v2719
    %v2764 = vunpack.c.l.b16 %v2720
    %v2765 = vpack.c.b16 %v2744, %v2741
    %v2766 = vpack.c.b16 %v2745, %v2742
    %v2767 = vpack.c.b16 %v2746, %v2743
    %v2768 = vpack.c.b16 %v2750, %v2747
    %v2769 = vpack.c.b16 %v2751, %v2748
    %v2770 = vpack.c.b16 %v2752, %v2749
    %v2771 = vpack.c.b16 %v2756, %v2753
    %v2772 = vpack.c.b16 %v2757, %v2754
    %v2773 = vpack.c.b16 %v2758, %v2755
    %v2774 = vpack.c.b16 %v2762, %v2759
    %v2775 = vpack.c.b16 %v2763, %v2760
    %v2776 = vpack.c.b16 %v2764, %v2761
    %v2790 = vsel %vm1460, %v2724, 0
    %2792 = vmatprep.subr.bf16.mxu0 0
    %2793 = vmatpush1.bf16.msra.mxu0 0
    %2794 = vmatprep.subr.bf16.mxu0 0
    %2795 = vmatpush1.bf16.msra.mxu0 0
    %2796 = vmatprep.subr.bf16.mxu0 0
    %2797 = vmatpush1.bf16.msra.mxu0 0
    %2798 = vmatprep.subr.bf16.mxu0 0
    %2799 = vmatpush1.bf16.msra.mxu0 0
    %2800 = vmatprep.subr.bf16.mxu0 %v2775
    %2801 = vmatpush1.bf16.msra.mxu0 %v2774
    %2802 = vmatprep.subr.bf16.mxu0 %v2772
    %2803 = vmatpush1.bf16.msra.mxu0 %v2771
    %2804 = vmatprep.subr.bf16.mxu0 %v2769
    %2805 = vmatpush1.bf16.msra.mxu0 %v2768
    %2806 = vmatprep.subr.bf16.mxu0 %v2766
    %2807 = vmatpush1.bf16.msra.mxu0 %v2765
    %2808 = vmatprep.subr.bf16.mxu0 0
    %2809 = vmatpush2.bf16.msra.mxu0 0
    %2810 = vmatprep.subr.bf16.mxu0 0
    %2811 = vmatpush2.bf16.msra.mxu0 0
    %2812 = vmatprep.subr.bf16.mxu0 0
    %2813 = vmatpush2.bf16.msra.mxu0 0
    %2814 = vmatprep.subr.bf16.mxu0 0
    %2815 = vmatpush2.bf16.msra.mxu0 0
    %2816 = vmatprep.subr.bf16.mxu0 0
    %2817 = vmatpush2.bf16.msra.mxu0 0
    %2818 = vmatprep.subr.bf16.mxu0 0
    %2819 = vmatpush2.bf16.msra.mxu0 0
    %2820 = vmatprep.subr.bf16.mxu0 0
    %2821 = vmatpush2.bf16.msra.mxu0 0
    %2822 = vmatprep.subr.bf16.mxu0 0
    %2823 = vmatpush2.bf16.msra.mxu0 0
    %2824 = vmatprep.mubr.bf16.mxu0 0
    %2825 = vmatmul.mubr.bf16.gmra.mxu0 %v2790
    %v2826 = vpop.f32.mrf.mxu0
    %v2827 = vadd.f32 0.0, %v2826
    %v2828 = vpop.f32.mrf.mxu0
    %v2829 = vadd.f32 0.0, %v2828
    %v2830 = vpop.f32.mrf.mxu0
    %v2831 = vpop.f32.mrf.mxu0
    %2832 = vdwg.mxu0
    %2833 = vmatprep.subr.bf16.mxu0 0
    %2834 = vmatpush1.bf16.msra.mxu0 0
    %2835 = vmatprep.subr.bf16.mxu0 0
    %2836 = vmatpush1.bf16.msra.mxu0 0
    %2837 = vmatprep.subr.bf16.mxu0 0
    %2838 = vmatpush1.bf16.msra.mxu0 0
    %2839 = vmatprep.subr.bf16.mxu0 0
    %2840 = vmatpush1.bf16.msra.mxu0 0
    %2841 = vmatprep.subr.bf16.mxu0 0
    %2842 = vmatpush1.bf16.msra.mxu0 %v2776
    %2843 = vmatprep.subr.bf16.mxu0 0
    %2844 = vmatpush1.bf16.msra.mxu0 %v2773
    %2845 = vmatprep.subr.bf16.mxu0 0
    %2846 = vmatpush1.bf16.msra.mxu0 %v2770
    %2847 = vmatprep.subr.bf16.mxu0 0
    %2848 = vmatpush1.bf16.msra.mxu0 %v2767
    %2849 = vmatprep.subr.bf16.mxu0 0
    %2850 = vmatpush2.bf16.msra.mxu0 0
    %2851 = vmatprep.subr.bf16.mxu0 0
    %2852 = vmatpush2.bf16.msra.mxu0 0
    %2853 = vmatprep.subr.bf16.mxu0 0
    %2854 = vmatpush2.bf16.msra.mxu0 0
    %2855 = vmatprep.subr.bf16.mxu0 0
    %2856 = vmatpush2.bf16.msra.mxu0 0
    %2857 = vmatprep.subr.bf16.mxu0 0
    %2858 = vmatpush2.bf16.msra.mxu0 0
    %2859 = vmatprep.subr.bf16.mxu0 0
    %2860 = vmatpush2.bf16.msra.mxu0 0
    %2861 = vmatprep.subr.bf16.mxu0 0
    %2862 = vmatpush2.bf16.msra.mxu0 0
    %2863 = vmatprep.subr.bf16.mxu0 0
    %2864 = vmatpush2.bf16.msra.mxu0 0
    %2865 = vmatprep.mubr.bf16.mxu0 0
    %2866 = vmatmul.mubr.bf16.gmra.mxu0 %v2790
    %v2867 = vpop.f32.mrf.mxu0
    %v2868 = vadd.f32 0.0, %v2867
    %v2869 = vpop.f32.mrf.mxu0
    %v2870 = vpop.f32.mrf.mxu0
    %v2871 = vpop.f32.mrf.mxu0
    %2872 = vdwg.mxu0
    %v2873 = vrot.slane %v2827, 7
    %v2874 = vrot.slane %v2868, 1
    %2876 = vset.pattern.permute.xlu0 0
    %2877 = vperm.xlu0 %2876, %v2722
    %v2878 = vpop.permute.xlu0 %2877
    %v2880 = vmul.f32 %v2878, %v2873
    %v2881 = vadd.f32 %v2880, %v2829
    %2883 = vset.pattern.permute.xlu0 0
    %2884 = vperm.xlu0 %2883, %v2723
    %v2885 = vpop.permute.xlu0 %2884
    %v2887 = vmul.f32 %v2885, %v2874
    %v2888 = vadd.f32 %v2881, %v2887
    %v2890 = vlaneseq
    %v2891 = vshrl.u32 %v2890, 7
    %v2892 = vsub.s32 0, %v2891
    %v2893 = vrot.slane %v2721, %v2892
    %v2895 = vadd.f32 %v2888, %v2893
    %v2896 = vmax.f32 %v2895, 0.0
    %v2897 = vld [vmem:[#allocation26] sm:$0xff]
    %v2898 = vld [vmem:[#allocation26 + $0x8] sm:$0xf]
    %v2899 = vld [vmem:[#allocation26 + $0xc] sm:$0xff]
    %v2900 = vld [vmem:[#allocation26 + $0x14] sm:$0xf]
    %v2901 = vld [vmem:[#allocation26 + $0x18] sm:$0xff]
    %v2902 = vld [vmem:[#allocation26 + $0x20] sm:$0xf]
    %v2903 = vld [vmem:[#allocation26 + $0x24] sm:$0xff]
    %v2904 = vld [vmem:[#allocation26 + $0x2c] sm:$0xf]
    %v2905 = vld [vmem:[#allocation26 + $0x30] sm:$0xff]
    %v2906 = vld [vmem:[#allocation26 + $0x38] sm:$0xf]
    %v2907 = vld [vmem:[#allocation26 + $0x3c] sm:$0xff]
    %v2908 = vld [vmem:[#allocation26 + $0x44] sm:$0xf]
    %v2909 = vld [vmem:[#allocation26 + $0x48] sm:$0xff]
    %v2910 = vld [vmem:[#allocation26 + $0x50] sm:$0xf]
    %v2911 = vld [vmem:[#allocation26 + $0x54] sm:$0xff]
    %v2912 = vld [vmem:[#allocation26 + $0x5c] sm:$0xf]
    %v2913 = vld [vmem:[#allocation26 + $0x60] sm:$0xff]
    %v2914 = vld [vmem:[#allocation26 + $0x68] sm:$0xf]
    %v2915 = vld [vmem:[#allocation26 + $0x6c] sm:$0xff]
    %v2916 = vld [vmem:[#allocation26 + $0x74] sm:$0xf]
    %v2917 = vld [vmem:[#allocation26 + $0x78] sm:$0xff]
    %v2918 = vld [vmem:[#allocation26 + $0x80] sm:$0xf]
    %v2919 = vld [vmem:[#allocation26 + $0x84] sm:$0xff]
    %v2920 = vld [vmem:[#allocation26 + $0x8c] sm:$0xf]
    %v2921 = vld [vmem:[#allocation26 + $0x90] sm:$0xff]
    %v2922 = vld [vmem:[#allocation26 + $0x98] sm:$0xf]
    %v2923 = vld [vmem:[#allocation26 + $0x9c] sm:$0xff]
    %v2924 = vld [vmem:[#allocation26 + $0xa4] sm:$0xf]
    %v2925 = vld [vmem:[#allocation26 + $0xa8] sm:$0xff]
    %v2926 = vld [vmem:[#allocation26 + $0xb0] sm:$0xf]
    %v2927 = vld [vmem:[#allocation26 + $0xb4] sm:$0xff]
    %v2928 = vld [vmem:[#allocation26 + $0xbc] sm:$0xf]
    %v2929 = vld [vmem:[#allocation28] sm:$0x1]
    %v2930 = vpack.c.bf16 %v2896, %v2896
    %v2963 = vunpack.c.l.b16 %v2897
    %v2964 = vunpack.c.h.b16 %v2897
    %v2965 = vunpack.c.l.b16 %v2898
    %v2966 = vunpack.c.l.b16 %v2899
    %v2967 = vunpack.c.h.b16 %v2899
    %v2968 = vunpack.c.l.b16 %v2900
    %v2969 = vunpack.c.l.b16 %v2901
    %v2970 = vunpack.c.h.b16 %v2901
    %v2971 = vunpack.c.l.b16 %v2902
    %v2972 = vunpack.c.l.b16 %v2903
    %v2973 = vunpack.c.h.b16 %v2903
    %v2974 = vunpack.c.l.b16 %v2904
    %v2975 = vunpack.c.l.b16 %v2905
    %v2976 = vunpack.c.h.b16 %v2905
    %v2977 = vunpack.c.l.b16 %v2906
    %v2978 = vunpack.c.l.b16 %v2907
    %v2979 = vunpack.c.h.b16 %v2907
    %v2980 = vunpack.c.l.b16 %v2908
    %v2981 = vunpack.c.l.b16 %v2909
    %v2982 = vunpack.c.h.b16 %v2909
    %v2983 = vunpack.c.l.b16 %v2910
    %v2984 = vunpack.c.l.b16 %v2911
    %v2985 = vunpack.c.h.b16 %v2911
    %v2986 = vunpack.c.l.b16 %v2912
    %v2987 = vunpack.c.l.b16 %v2913
    %v2988 = vunpack.c.h.b16 %v2913
    %v2989 = vunpack.c.l.b16 %v2914
    %v2990 = vunpack.c.l.b16 %v2915
    %v2991 = vunpack.c.h.b16 %v2915
    %v2992 = vunpack.c.l.b16 %v2916
    %v2993 = vunpack.c.l.b16 %v2917
    %v2994 = vunpack.c.h.b16 %v2917
    %v2995 = vunpack.c.l.b16 %v2918
    %v2996 = vunpack.c.l.b16 %v2919
    %v2997 = vunpack.c.h.b16 %v2919
    %v2998 = vunpack.c.l.b16 %v2920
    %v2999 = vunpack.c.l.b16 %v2921
    %v3000 = vunpack.c.h.b16 %v2921
    %v3001 = vunpack.c.l.b16 %v2922
    %v3002 = vunpack.c.l.b16 %v2923
    %v3003 = vunpack.c.h.b16 %v2923
    %v3004 = vunpack.c.l.b16 %v2924
    %v3005 = vunpack.c.l.b16 %v2925
    %v3006 = vunpack.c.h.b16 %v2925
    %v3007 = vunpack.c.l.b16 %v2926
    %v3008 = vunpack.c.l.b16 %v2927
    %v3009 = vunpack.c.h.b16 %v2927
    %v3010 = vunpack.c.l.b16 %v2928
    %v3011 = vpack.c.b16 %v2966, %v2963
    %v3012 = vpack.c.b16 %v2967, %v2964
    %v3013 = vpack.c.b16 %v2968, %v2965
    %v3014 = vpack.c.b16 %v2972, %v2969
    %v3015 = vpack.c.b16 %v2973, %v2970
    %v3016 = vpack.c.b16 %v2974, %v2971
    %v3017 = vpack.c.b16 %v2978, %v2975
    %v3018 = vpack.c.b16 %v2979, %v2976
    %v3019 = vpack.c.b16 %v2980, %v2977
    %v3020 = vpack.c.b16 %v2984, %v2981
    %v3021 = vpack.c.b16 %v2985, %v2982
    %v3022 = vpack.c.b16 %v2986, %v2983
    %v3023 = vpack.c.b16 %v2990, %v2987
    %v3024 = vpack.c.b16 %v2991, %v2988
    %v3025 = vpack.c.b16 %v2992, %v2989
    %v3026 = vpack.c.b16 %v2996, %v2993
    %v3027 = vpack.c.b16 %v2997, %v2994
    %v3028 = vpack.c.b16 %v2998, %v2995
    %v3029 = vpack.c.b16 %v3002, %v2999
    %v3030 = vpack.c.b16 %v3003, %v3000
    %v3031 = vpack.c.b16 %v3004, %v3001
    %v3032 = vpack.c.b16 %v3008, %v3005
    %v3033 = vpack.c.b16 %v3009, %v3006
    %v3034 = vpack.c.b16 %v3010, %v3007
    %3059 = vmatprep.subr.bf16.mxu0 %v3033
    %3060 = vmatpush1.bf16.msra.mxu0 %v3032
    %3061 = vmatprep.subr.bf16.mxu0 %v3030
    %3062 = vmatpush1.bf16.msra.mxu0 %v3029
    %3063 = vmatprep.subr.bf16.mxu0 %v3027
    %3064 = vmatpush1.bf16.msra.mxu0 %v3026
    %3065 = vmatprep.subr.bf16.mxu0 %v3024
    %3066 = vmatpush1.bf16.msra.mxu0 %v3023
    %3067 = vmatprep.subr.bf16.mxu0 %v3021
    %3068 = vmatpush1.bf16.msra.mxu0 %v3020
    %3069 = vmatprep.subr.bf16.mxu0 %v3018
    %3070 = vmatpush1.bf16.msra.mxu0 %v3017
    %3071 = vmatprep.subr.bf16.mxu0 %v3015
    %3072 = vmatpush1.bf16.msra.mxu0 %v3014
    %3073 = vmatprep.subr.bf16.mxu0 %v3012
    %3074 = vmatpush1.bf16.msra.mxu0 %v3011
    %3075 = vmatprep.subr.bf16.mxu0 0
    %3076 = vmatpush2.bf16.msra.mxu0 0
    %3077 = vmatprep.subr.bf16.mxu0 0
    %3078 = vmatpush2.bf16.msra.mxu0 0
    %3079 = vmatprep.subr.bf16.mxu0 0
    %3080 = vmatpush2.bf16.msra.mxu0 0
    %3081 = vmatprep.subr.bf16.mxu0 0
    %3082 = vmatpush2.bf16.msra.mxu0 0
    %3083 = vmatprep.subr.bf16.mxu0 0
    %3084 = vmatpush2.bf16.msra.mxu0 0
    %3085 = vmatprep.subr.bf16.mxu0 0
    %3086 = vmatpush2.bf16.msra.mxu0 0
    %3087 = vmatprep.subr.bf16.mxu0 0
    %3088 = vmatpush2.bf16.msra.mxu0 0
    %3089 = vmatprep.subr.bf16.mxu0 0
    %3090 = vmatpush2.bf16.msra.mxu0 0
    %3091 = vmatprep.mubr.bf16.mxu0 0
    %3092 = vmatmul.mubr.bf16.gmra.mxu0 %v2930
    %v3093 = vpop.f32.mrf.mxu0
    %v3094 = vadd.f32 0.0, %v3093
    %v3095 = vpop.f32.mrf.mxu0
    %v3096 = vadd.f32 0.0, %v3095
    %v3097 = vpop.f32.mrf.mxu0
    %v3098 = vpop.f32.mrf.mxu0
    %3099 = vdwg.mxu0
    %3100 = vmatprep.subr.bf16.mxu0 0
    %3101 = vmatpush1.bf16.msra.mxu0 %v3034
    %3102 = vmatprep.subr.bf16.mxu0 0
    %3103 = vmatpush1.bf16.msra.mxu0 %v3031
    %3104 = vmatprep.subr.bf16.mxu0 0
    %3105 = vmatpush1.bf16.msra.mxu0 %v3028
    %3106 = vmatprep.subr.bf16.mxu0 0
    %3107 = vmatpush1.bf16.msra.mxu0 %v3025
    %3108 = vmatprep.subr.bf16.mxu0 0
    %3109 = vmatpush1.bf16.msra.mxu0 %v3022
    %3110 = vmatprep.subr.bf16.mxu0 0
    %3111 = vmatpush1.bf16.msra.mxu0 %v3019
    %3112 = vmatprep.subr.bf16.mxu0 0
    %3113 = vmatpush1.bf16.msra.mxu0 %v3016
    %3114 = vmatprep.subr.bf16.mxu0 0
    %3115 = vmatpush1.bf16.msra.mxu0 %v3013
    %3116 = vmatprep.subr.bf16.mxu0 0
    %3117 = vmatpush2.bf16.msra.mxu0 0
    %3118 = vmatprep.subr.bf16.mxu0 0
    %3119 = vmatpush2.bf16.msra.mxu0 0
    %3120 = vmatprep.subr.bf16.mxu0 0
    %3121 = vmatpush2.bf16.msra.mxu0 0
    %3122 = vmatprep.subr.bf16.mxu0 0
    %3123 = vmatpush2.bf16.msra.mxu0 0
    %3124 = vmatprep.subr.bf16.mxu0 0
    %3125 = vmatpush2.bf16.msra.mxu0 0
    %3126 = vmatprep.subr.bf16.mxu0 0
    %3127 = vmatpush2.bf16.msra.mxu0 0
    %3128 = vmatprep.subr.bf16.mxu0 0
    %3129 = vmatpush2.bf16.msra.mxu0 0
    %3130 = vmatprep.subr.bf16.mxu0 0
    %3131 = vmatpush2.bf16.msra.mxu0 0
    %3132 = vmatprep.mubr.bf16.mxu0 0
    %3133 = vmatmul.mubr.bf16.gmra.mxu0 %v2930
    %v3134 = vpop.f32.mrf.mxu0
    %v3135 = vadd.f32 0.0, %v3134
    %v3136 = vpop.f32.mrf.mxu0
    %v3137 = vpop.f32.mrf.mxu0
    %v3138 = vpop.f32.mrf.mxu0
    %3139 = vdwg.mxu0
    %v3140 = vrot.slane %v3094, 7
    %v3141 = vrot.slane %v3135, 1
    %v3142 = vmul.f32 %v2878, %v3140
    %v3143 = vadd.f32 %v3142, %v3096
    %v3144 = vmul.f32 %v2885, %v3141
    %v3145 = vadd.f32 %v3143, %v3144
    %v3147 = vlaneseq
    %v3148 = vshrl.u32 %v3147, 7
    %v3149 = vsub.s32 0, %v3148
    %v3150 = vrot.slane %v2929, %v3149
    %v3152 = vadd.f32 %v3145, %v3150
    %v3153 = vmax.f32 %v3152, 0.0
    %3154 = vst [vmem:[%s28] sm:$0xff] %v3153
    // Predicated region
    $region218: #{encoder_forward.1} parent=1 // pred_check
      _
    $region219: #{encoder_forward.1} parent=1 // pred_check_branch
      %3156 = sbr.rel (0) target = $region221
    $region220: #{encoder_forward.1} parent=1 // pred_region
      _
    $region221: #{encoder_forward.1} parent=1 // pred_fallthru
      _
    // Predicated region
    $region222: #{encoder_forward.1} parent=1 // pred_check
      _
    $region223: #{encoder_forward.1} parent=1 // pred_check_branch
      %3158 = sbr.rel (0) target = $region225
    $region224: #{encoder_forward.1} parent=1 // pred_region
      _
    $region225: #{encoder_forward.1} parent=1 // pred_fallthru
      _
    %3159 = vsyncpa [#allocation4], 1
    %3160 = vsyncpa [#allocation6], 1
    %3161 = vsyncpa [#allocation9], 1
    %3162 = vsyncpa [#allocation12], 1
    %3163 = vsyncpa [#allocation15], 1
    %3164 = vsyncpa [#allocation18], 1
    %3165 = vsyncpa [#allocation21], 1
    %3166 = vsyncpa [#allocation24], 1
    %3167 = vsyncpa [#allocation27], 1
    %3168 = vsyncpa [#allocation30], 1
    %3169 = vsyncpa [#allocation33], 1
    %3170 = vsyncpa [#allocation36], 1
    %3171 = vsyncpa [#allocation39], 1
    %3172 = vsyncpa [#allocation42], 1

</llo_original>
